<compile_context>
chip_gen: v5e
topology: v5e:2x2
jax: 0.10.0
libtpu: 0.0.40
codegen_flags: <defaults>
</compile_context>

<pallas_src>
import jax
import jax.numpy as jnp
from jax import lax
from jax.experimental import pallas as pl
from jax.experimental.pallas import tpu as pltpu

HIDDEN_SIZE = 50
INPUT_SIZE = 4
NUM_LAYERS = 2
OUTPUT_SIZE = 1

H_PAD = 128          # hidden padded so every gate block is 128-lane aligned
B_SUBLANE = 8        # batch padded to a full sublane group


def _lstm_fc_kernel(x_ref,                 # (T*Bp, D)     time-major, batch-padded, f32
                    wih0_ref,              # (D,    4*Hp)  layer-0 input weights, f32
                    b0_ref,                # (1,    4*Hp)  layer-0 combined bias, f32
                    wbig_ref,              # (2*Hp, 8*Hp)  fused [[whh0, wih1],[0, whh1]], bf16
                    b1_ref,                # (1,    4*Hp)  layer-1 combined bias, f32
                    fcw_ref,               # (1,    Hp)    fc weight row (O == 1), f32
                    fcb_ref,               # (1,    O)     fc bias, f32
                    out_ref,               # (Bp,   O)
                    g0_scr):               # VMEM scratch (T*Bp, 4*Hp), f32
    Bp = out_ref.shape[0]
    T = x_ref.shape[0] // Bp
    Hp = wbig_ref.shape[0] // 2

    # Hoisted layer-0 input projection (+ bias): no recurrence dependence, so
    # it is computed once for all timesteps before the serial loop.
    g0_scr[...] = (jnp.dot(x_ref[...], wih0_ref[...],
                           preferred_element_type=jnp.float32) + b0_ref[...])

    # Hoist the layer-1 bias broadcast out of the loop (JAX does not CSE it).
    b1_full = jnp.broadcast_to(b1_ref[...], (Bp, 4 * Hp))

    def step(t, carry):
        # r0 == h0_{t-1} @ whh0, precomputed by the previous iteration's fused
        # matmul (zero for t == 0 since h0_{-1} == 0).
        r0, h1, c0, c1 = carry

        # ---------------- layer 0 (no matmul: add the carried recurrent term)
        row = pl.multiple_of(t * Bp, Bp)                       # sublane-aligned
        g0 = g0_scr[pl.ds(row, Bp), :] + r0
        i0 = jax.nn.sigmoid(g0[:, 0 * Hp:1 * Hp])              # 128-lane aligned
        f0 = jax.nn.sigmoid(g0[:, 1 * Hp:2 * Hp])
        g0g = jnp.tanh(g0[:, 2 * Hp:3 * Hp])
        o0 = jax.nn.sigmoid(g0[:, 3 * Hp:4 * Hp])
        c0 = f0 * c0 + i0 * g0g
        h0 = o0 * jnp.tanh(c0)

        # ---------------- single fused wave matmul --------------------------
        #   [h0_t | h1_{t-1}] (Bp, 2*Hp)  @  [[whh0, wih1], [0, whh1]] (2*Hp, 8*Hp)
        # columns [0, 4*Hp)  -> h0_t @ whh0            (layer-0 recurrent term, t+1)
        # columns [4*Hp, 8*Hp) -> h0_t @ wih1 + h1 @ whh1 (layer-1 gates, step t)
        # The concat is a lane-aligned placement of two 128-lane blocks (no
        # VMEM round-trip); bf16 operands, f32 accumulation.
        hh = jnp.concatenate(
            [h0.astype(jnp.bfloat16), h1.astype(jnp.bfloat16)], axis=1)
        big = jnp.dot(hh, wbig_ref[...], preferred_element_type=jnp.float32)
        r0_next = big[:, 0:4 * Hp]

        # ---------------- layer 1 gates --------------------------------------
        g1 = big[:, 4 * Hp:8 * Hp] + b1_full
        i1 = jax.nn.sigmoid(g1[:, 0 * Hp:1 * Hp])
        f1 = jax.nn.sigmoid(g1[:, 1 * Hp:2 * Hp])
        g1g = jnp.tanh(g1[:, 2 * Hp:3 * Hp])
        o1 = jax.nn.sigmoid(g1[:, 3 * Hp:4 * Hp])
        c1 = f1 * c1 + i1 * g1g
        h1 = o1 * jnp.tanh(c1)
        return r0_next, h1, c0, c1

    zero_h = jnp.zeros((Bp, Hp), jnp.float32)
    zero_r = jnp.zeros((Bp, 4 * Hp), jnp.float32)
    _, h1, _, _ = lax.fori_loop(0, T, step,
                                (zero_r, zero_h, zero_h, zero_h), unroll=True)

    # fc(out[:, -1, :]) with output_size == 1: computed on VPU/XLU (elementwise
    # multiply + cross-lane reduce) instead of an MXU dot against a single
    # column -- avoids an MXU weight load/drain and a near-empty result pass.
    out_ref[...] = (jnp.sum(h1 * fcw_ref[...], axis=-1, keepdims=True)
                    + fcb_ref[...])


def lstm_fc_forward(x, p):
    """x: (B, T, D) batch-first float32.  p: packed/padded kernel params."""
    B, T, D = x.shape
    Hp = p["wbig"].shape[0] // 2
    O = p["fcb"].shape[1]
    Bp = ((B + B_SUBLANE - 1) // B_SUBLANE) * B_SUBLANE

    # batch-first -> time-major, pad batch to a full sublane group, flatten so
    # the hoisted input projection is one (T*Bp, D) @ (D, 4*Hp) matmul.
    x_tm = jnp.transpose(x.astype(jnp.float32), (1, 0, 2))        # (T, B, D)
    x_tm = jnp.pad(x_tm, ((0, 0), (0, Bp - B), (0, 0)))           # (T, Bp, D)
    x_flat = x_tm.reshape(T * Bp, D)

    vmem = pl.BlockSpec(memory_space=pltpu.MemorySpace.VMEM)
    out = pl.pallas_call(
        _lstm_fc_kernel,
        out_shape=jax.ShapeDtypeStruct((Bp, O), jnp.float32),
        in_specs=[vmem] * 7,
        out_specs=vmem,
        scratch_shapes=[pltpu.VMEM((T * Bp, 4 * Hp), jnp.float32)],
    )(x_flat, p["wih0"], p["b0"], p["wbig"], p["b1"], p["fcw"], p["fcb"])
    return out[:B]


def make_params(key, input_size, hidden_size, output_size, h_pad=H_PAD):
    """Deterministic init mimicking PyTorch's U(-1/sqrt(H), 1/sqrt(H)) default.

    Returns (raw, packed): `raw` holds PyTorch-layout tensors (used by the
    pure-JAX reference), `packed` holds the transposed / gate-padded kernel
    layout.  Padding is all zeros (exactly representable in bf16 too), so
    padded hidden lanes stay exactly 0 through the recurrence.
    """
    H = hidden_size
    k = 1.0 / jnp.sqrt(jnp.float32(H))
    ks = jax.random.split(key, 10)

    def u(kk, shape):
        return jax.random.uniform(kk, shape, jnp.float32, -k, k)

    raw = dict(
        w_ih_l0=u(ks[0], (4 * H, input_size)),
        w_hh_l0=u(ks[1], (4 * H, H)),
        b_ih_l0=u(ks[2], (4 * H,)),
        b_hh_l0=u(ks[3], (4 * H,)),
        w_ih_l1=u(ks[4], (4 * H, H)),
        w_hh_l1=u(ks[5], (4 * H, H)),
        b_ih_l1=u(ks[6], (4 * H,)),
        b_hh_l1=u(ks[7], (4 * H,)),
        fc_w=u(ks[8], (output_size, H)),
        fc_b=u(ks[9], (output_size,)),
    )

    def pad_gate_cols(w_t):          # (K, 4H) -> (K, 4*h_pad): per-gate zero pad
        K = w_t.shape[0]
        return jnp.pad(w_t.reshape(K, 4, H),
                       ((0, 0), (0, 0), (0, h_pad - H))).reshape(K, 4 * h_pad)

    def pad_gate_bias(b):            # (4H,) -> (1, 4*h_pad)
        return jnp.pad(b.reshape(4, H),
                       ((0, h_pad - H))[::-1] if False else ((0, 0), (0, h_pad - H))
                       ).reshape(1, 4 * h_pad)

    def pad_rows(w, rows):           # zero-pad the contraction dimension
        return jnp.pad(w, ((0, rows - w.shape[0]), (0, 0)))

    wih0 = pad_gate_cols(raw["w_ih_l0"].T)                       # (D,  4*Hp) f32
    whh0 = pad_rows(pad_gate_cols(raw["w_hh_l0"].T), h_pad)      # (Hp, 4*Hp)
    wih1 = pad_rows(pad_gate_cols(raw["w_ih_l1"].T), h_pad)      # (Hp, 4*Hp)
    whh1 = pad_rows(pad_gate_cols(raw["w_hh_l1"].T), h_pad)      # (Hp, 4*Hp)

    # Fused in-loop RHS:  [[whh0, wih1], [0, whh1]]  -> (2*Hp, 8*Hp), bf16.
    wbig = jnp.concatenate(
        [jnp.concatenate([whh0, wih1], axis=1),
         jnp.concatenate([jnp.zeros_like(whh0), whh1], axis=1)],
        axis=0).astype(jnp.bfloat16)

    packed = dict(
        wih0=wih0,                                               # (D,  4*Hp) f32
        b0=pad_gate_bias(raw["b_ih_l0"] + raw["b_hh_l0"]),       # (1,  4*Hp) f32
        wbig=wbig,                                               # (2*Hp, 8*Hp) bf16
        b1=pad_gate_bias(raw["b_ih_l1"] + raw["b_hh_l1"]),       # (1,  4*Hp) f32
        fcw=jnp.pad(raw["fc_w"], ((0, 0), (0, h_pad - H))),      # (1,  Hp) f32 (O == 1)
        fcb=raw["fc_b"].reshape(1, output_size),                 # (1,  O)  f32
    )
    return raw, packed


@jax.jit
def lstm_module_forward(x, params1, params2):
    """Mirrors PyTorch LSTM.forward: fc1(lstm1(x)[:, -1, :]) is dead code in
    the original module (immediately overwritten), so it is not launched; the
    returned value is identical."""
    del params1  # dead path; would be DCE'd under jit anyway
    return lstm_fc_forward(x, params2)


def reference_forward(x, raw):
    """Pure-JAX oracle: nn.LSTM(2 layers, batch_first) + nn.Linear on the last
    timestep, using PyTorch weight layout (gate order [i, f, g, o])."""
    def cell(x_t, h, c, w_ih, w_hh, b_ih, b_hh):
        H = h.shape[1]
        g = x_t @ w_ih.T + h @ w_hh.T + b_ih + b_hh
        i = jax.nn.sigmoid(g[:, 0 * H:1 * H])
        f = jax.nn.sigmoid(g[:, 1 * H:2 * H])
        gg = jnp.tanh(g[:, 2 * H:3 * H])
        o = jax.nn.sigmoid(g[:, 3 * H:4 * H])
        c = f * c + i * gg
        return o * jnp.tanh(c), c

    B, T, _ = x.shape
    H = raw["w_hh_l0"].shape[1]
    h0 = c0 = h1 = c1 = jnp.zeros((B, H), jnp.float32)
    for t in range(T):
        h0, c0 = cell(x[:, t], h0, c0, raw["w_ih_l0"], raw["w_hh_l0"],
                      raw["b_ih_l0"], raw["b_hh_l0"])
        h1, c1 = cell(h0, h1, c1, raw["w_ih_l1"], raw["w_hh_l1"],
                      raw["b_ih_l1"], raw["b_hh_l1"])
    return h1 @ raw["fc_w"].T + raw["fc_b"]


if __name__ == "__main__":
    key = jax.random.PRNGKey(0)
    k_x, k_p1, k_p2 = jax.random.split(key, 3)

    B, T = 2, 8
    x = jax.random.normal(k_x, (B, T, INPUT_SIZE), dtype=jnp.float32)

    raw1, packed1 = make_params(k_p1, INPUT_SIZE, HIDDEN_SIZE, OUTPUT_SIZE)  # lstm1+fc1
    raw2, packed2 = make_params(k_p2, INPUT_SIZE, HIDDEN_SIZE, OUTPUT_SIZE)  # lstm2+fc2

    out = lstm_module_forward(x, packed1, packed2)
    out = jax.block_until_ready(out)

    ref = reference_forward(x, raw2)
    assert out.shape == (B, OUTPUT_SIZE)
    assert bool(jnp.all(jnp.isfinite(out)))
    assert bool(jnp.allclose(out, ref, atol=2e-2, rtol=2e-2))
    print("KERNEL_OK")
</pallas_src>

<mosaic_0001>
module attributes {stable_mosaic.version = 11 : i64} {
  func.func @_lstm_fc_kernel(%arg0: memref<64x4xf32, #tpu.memory_space<vmem>>, %arg1: memref<4x512xf32, #tpu.memory_space<vmem>>, %arg2: memref<1x512xf32, #tpu.memory_space<vmem>>, %arg3: memref<256x1024xbf16, #tpu.memory_space<vmem>>, %arg4: memref<1x512xf32, #tpu.memory_space<vmem>>, %arg5: memref<1x128xf32, #tpu.memory_space<vmem>>, %arg6: memref<1x1xf32, #tpu.memory_space<vmem>>, %arg7: memref<8x1xf32, #tpu.memory_space<vmem>>, %arg8: memref<64x512xf32, #tpu.memory_space<vmem>>) attributes {dimension_semantics = [], scalar_prefetch = 0 : i64, scratch_operands = 1 : i64, tpu.core_type = #tpu.core_type<tc>} {
    %c0 = arith.constant 0 : index
    %c0_0 = arith.constant 0 : index
    %0 = vector.load %arg0[%c0, %c0_0] : memref<64x4xf32, #tpu.memory_space<vmem>>, vector<64x4xf32>
    %c0_1 = arith.constant 0 : index
    %c0_2 = arith.constant 0 : index
    %1 = vector.load %arg1[%c0_1, %c0_2] : memref<4x512xf32, #tpu.memory_space<vmem>>, vector<4x512xf32>
    %cst = arith.constant dense<0.000000e+00> : vector<64x512xf32>
    %2 = tpu.matmul %0, %1, %cst {dimension_numbers = #tpu.dot_dimension_numbers<[1], [0], [0], [1], [0, 0, 1, 1], [], []>} : vector<64x4xf32>, vector<4x512xf32>, vector<64x512xf32> -> vector<64x512xf32>
    %c0_3 = arith.constant 0 : index
    %c0_4 = arith.constant 0 : index
    %3 = vector.load %arg2[%c0_3, %c0_4] : memref<1x512xf32, #tpu.memory_space<vmem>>, vector<1x512xf32>
    %4 = vector.broadcast %3 : vector<1x512xf32> to vector<64x512xf32>
    %5 = arith.addf %2, %4 : vector<64x512xf32>
    %c0_5 = arith.constant 0 : index
    %c0_6 = arith.constant 0 : index
    %6 = vector.load %arg8[%c0_5, %c0_6] : memref<64x512xf32, #tpu.memory_space<vmem>>, vector<64x512xf32>
    tpu.vector_store %arg8[%c0_5, %c0_6], %5 {strides = array<i32>} : memref<64x512xf32, #tpu.memory_space<vmem>>, vector<64x512xf32>,
    %c0_7 = arith.constant 0 : index
    %c0_8 = arith.constant 0 : index
    %7 = vector.load %arg4[%c0_7, %c0_8] : memref<1x512xf32, #tpu.memory_space<vmem>>, vector<1x512xf32>
    %8 = vector.shape_cast %7 : vector<1x512xf32> to vector<1x512xf32>
    %9 = vector.broadcast %8 : vector<1x512xf32> to vector<8x512xf32>
    %cst_9 = arith.constant 0.000000e+00 : f32
    %10 = vector.broadcast %cst_9 : f32 to vector<8x128xf32>
    %cst_10 = arith.constant 0.000000e+00 : f32
    %11 = vector.broadcast %cst_10 : f32 to vector<8x512xf32>
    %c0_i32 = arith.constant 0 : i32
    %c8_i32 = arith.constant 8 : i32
    %12 = arith.muli %c0_i32, %c8_i32 : i32
    %13 = tpu.assume_multiple %12, 8 : i32
    %14 = arith.index_cast %13 : i32 to index
    %c0_11 = arith.constant 0 : index
    %15 = vector.load %arg8[%14, %c0_11] : memref<64x512xf32, #tpu.memory_space<vmem>>, vector<8x512xf32>
    %16 = arith.addf %15, %11 : vector<8x512xf32>
    %17 = vector.extract_strided_slice %16 {offsets = [0, 0], sizes = [8, 128], strides = [1, 1]} : vector<8x512xf32> to vector<8x128xf32>
    %18 = arith.negf %17 : vector<8x128xf32>
    %19 = math.exp %18 : vector<8x128xf32>
    %cst_12 = arith.constant 1.000000e+00 : f32
    %20 = vector.broadcast %cst_12 : f32 to vector<8x128xf32>
    %21 = arith.addf %20, %19 : vector<8x128xf32>
    %22 = arith.divf %20, %21 : vector<8x128xf32>
    %23 = vector.extract_strided_slice %16 {offsets = [0, 128], sizes = [8, 128], strides = [1, 1]} : vector<8x512xf32> to vector<8x128xf32>
    %24 = arith.negf %23 : vector<8x128xf32>
    %25 = math.exp %24 : vector<8x128xf32>
    %cst_13 = arith.constant 1.000000e+00 : f32
    %26 = vector.broadcast %cst_13 : f32 to vector<8x128xf32>
    %27 = arith.addf %26, %25 : vector<8x128xf32>
    %28 = arith.divf %26, %27 : vector<8x128xf32>
    %29 = vector.extract_strided_slice %16 {offsets = [0, 256], sizes = [8, 128], strides = [1, 1]} : vector<8x512xf32> to vector<8x128xf32>
    %30 = math.tanh %29 : vector<8x128xf32>
    %31 = vector.extract_strided_slice %16 {offsets = [0, 384], sizes = [8, 128], strides = [1, 1]} : vector<8x512xf32> to vector<8x128xf32>
    %32 = arith.negf %31 : vector<8x128xf32>
    %33 = math.exp %32 : vector<8x128xf32>
    %cst_14 = arith.constant 1.000000e+00 : f32
    %34 = vector.broadcast %cst_14 : f32 to vector<8x128xf32>
    %35 = arith.addf %34, %33 : vector<8x128xf32>
    %36 = arith.divf %34, %35 : vector<8x128xf32>
    %37 = arith.mulf %28, %10 : vector<8x128xf32>
    %38 = arith.mulf %22, %30 : vector<8x128xf32>
    %39 = arith.addf %37, %38 : vector<8x128xf32>
    %40 = math.tanh %39 : vector<8x128xf32>
    %41 = arith.mulf %36, %40 : vector<8x128xf32>
    %42 = arith.truncf %41 : vector<8x128xf32> to vector<8x128xbf16>
    %43 = arith.truncf %10 : vector<8x128xf32> to vector<8x128xbf16>
    %44 = tpu.concatenate %42, %43 in 1 : vector<8x128xbf16>, vector<8x128xbf16> -> vector<8x256xbf16>
    %c0_15 = arith.constant 0 : index
    %c0_16 = arith.constant 0 : index
    %45 = vector.load %arg3[%c0_15, %c0_16] : memref<256x1024xbf16, #tpu.memory_space<vmem>>, vector<256x1024xbf16>
    %cst_17 = arith.constant dense<0.000000e+00> : vector<8x1024xf32>
    %46 = tpu.matmul %44, %45, %cst_17 {dimension_numbers = #tpu.dot_dimension_numbers<[1], [0], [0], [1], [0, 0, 1, 1], [], []>} : vector<8x256xbf16>, vector<256x1024xbf16>, vector<8x1024xf32> -> vector<8x1024xf32>
    %47 = vector.extract_strided_slice %46 {offsets = [0, 0], sizes = [8, 512], strides = [1, 1]} : vector<8x1024xf32> to vector<8x512xf32>
    %48 = vector.extract_strided_slice %46 {offsets = [0, 512], sizes = [8, 512], strides = [1, 1]} : vector<8x1024xf32> to vector<8x512xf32>
    %49 = arith.addf %48, %9 : vector<8x512xf32>
    %50 = vector.extract_strided_slice %49 {offsets = [0, 0], sizes = [8, 128], strides = [1, 1]} : vector<8x512xf32> to vector<8x128xf32>
    %51 = arith.negf %50 : vector<8x128xf32>
    %52 = math.exp %51 : vector<8x128xf32>
    %cst_18 = arith.constant 1.000000e+00 : f32
    %53 = vector.broadcast %cst_18 : f32 to vector<8x128xf32>
    %54 = arith.addf %53, %52 : vector<8x128xf32>
    %55 = arith.divf %53, %54 : vector<8x128xf32>
    %56 = vector.extract_strided_slice %49 {offsets = [0, 128], sizes = [8, 128], strides = [1, 1]} : vector<8x512xf32> to vector<8x128xf32>
    %57 = arith.negf %56 : vector<8x128xf32>
    %58 = math.exp %57 : vector<8x128xf32>
    %cst_19 = arith.constant 1.000000e+00 : f32
    %59 = vector.broadcast %cst_19 : f32 to vector<8x128xf32>
    %60 = arith.addf %59, %58 : vector<8x128xf32>
    %61 = arith.divf %59, %60 : vector<8x128xf32>
    %62 = vector.extract_strided_slice %49 {offsets = [0, 256], sizes = [8, 128], strides = [1, 1]} : vector<8x512xf32> to vector<8x128xf32>
    %63 = math.tanh %62 : vector<8x128xf32>
    %64 = vector.extract_strided_slice %49 {offsets = [0, 384], sizes = [8, 128], strides = [1, 1]} : vector<8x512xf32> to vector<8x128xf32>
    %65 = arith.negf %64 : vector<8x128xf32>
    %66 = math.exp %65 : vector<8x128xf32>
    %cst_20 = arith.constant 1.000000e+00 : f32
    %67 = vector.broadcast %cst_20 : f32 to vector<8x128xf32>
    %68 = arith.addf %67, %66 : vector<8x128xf32>
    %69 = arith.divf %67, %68 : vector<8x128xf32>
    %70 = arith.mulf %61, %10 : vector<8x128xf32>
    %71 = arith.mulf %55, %63 : vector<8x128xf32>
    %72 = arith.addf %70, %71 : vector<8x128xf32>
    %73 = math.tanh %72 : vector<8x128xf32>
    %74 = arith.mulf %69, %73 : vector<8x128xf32>
    %c1_i32 = arith.constant 1 : i32
    %c8_i32_21 = arith.constant 8 : i32
    %75 = arith.muli %c1_i32, %c8_i32_21 : i32
    %76 = tpu.assume_multiple %75, 8 : i32
    %77 = arith.index_cast %76 : i32 to index
    %c0_22 = arith.constant 0 : index
    %78 = vector.load %arg8[%77, %c0_22] : memref<64x512xf32, #tpu.memory_space<vmem>>, vector<8x512xf32>
    %79 = arith.addf %78, %47 : vector<8x512xf32>
    %80 = vector.extract_strided_slice %79 {offsets = [0, 0], sizes = [8, 128], strides = [1, 1]} : vector<8x512xf32> to vector<8x128xf32>
    %81 = arith.negf %80 : vector<8x128xf32>
    %82 = math.exp %81 : vector<8x128xf32>
    %cst_23 = arith.constant 1.000000e+00 : f32
    %83 = vector.broadcast %cst_23 : f32 to vector<8x128xf32>
    %84 = arith.addf %83, %82 : vector<8x128xf32>
    %85 = arith.divf %83, %84 : vector<8x128xf32>
    %86 = vector.extract_strided_slice %79 {offsets = [0, 128], sizes = [8, 128], strides = [1, 1]} : vector<8x512xf32> to vector<8x128xf32>
    %87 = arith.negf %86 : vector<8x128xf32>
    %88 = math.exp %87 : vector<8x128xf32>
    %cst_24 = arith.constant 1.000000e+00 : f32
    %89 = vector.broadcast %cst_24 : f32 to vector<8x128xf32>
    %90 = arith.addf %89, %88 : vector<8x128xf32>
    %91 = arith.divf %89, %90 : vector<8x128xf32>
    %92 = vector.extract_strided_slice %79 {offsets = [0, 256], sizes = [8, 128], strides = [1, 1]} : vector<8x512xf32> to vector<8x128xf32>
    %93 = math.tanh %92 : vector<8x128xf32>
    %94 = vector.extract_strided_slice %79 {offsets = [0, 384], sizes = [8, 128], strides = [1, 1]} : vector<8x512xf32> to vector<8x128xf32>
    %95 = arith.negf %94 : vector<8x128xf32>
    %96 = math.exp %95 : vector<8x128xf32>
    %cst_25 = arith.constant 1.000000e+00 : f32
    %97 = vector.broadcast %cst_25 : f32 to vector<8x128xf32>
    %98 = arith.addf %97, %96 : vector<8x128xf32>
    %99 = arith.divf %97, %98 : vector<8x128xf32>
    %100 = arith.mulf %91, %39 : vector<8x128xf32>
    %101 = arith.mulf %85, %93 : vector<8x128xf32>
    %102 = arith.addf %100, %101 : vector<8x128xf32>
    %103 = math.tanh %102 : vector<8x128xf32>
    %104 = arith.mulf %99, %103 : vector<8x128xf32>
    %105 = arith.truncf %104 : vector<8x128xf32> to vector<8x128xbf16>
    %106 = arith.truncf %74 : vector<8x128xf32> to vector<8x128xbf16>
    %107 = tpu.concatenate %105, %106 in 1 : vector<8x128xbf16>, vector<8x128xbf16> -> vector<8x256xbf16>
    %c0_26 = arith.constant 0 : index
    %c0_27 = arith.constant 0 : index
    %108 = vector.load %arg3[%c0_26, %c0_27] : memref<256x1024xbf16, #tpu.memory_space<vmem>>, vector<256x1024xbf16>
    %cst_28 = arith.constant dense<0.000000e+00> : vector<8x1024xf32>
    %109 = tpu.matmul %107, %108, %cst_28 {dimension_numbers = #tpu.dot_dimension_numbers<[1], [0], [0], [1], [0, 0, 1, 1], [], []>} : vector<8x256xbf16>, vector<256x1024xbf16>, vector<8x1024xf32> -> vector<8x1024xf32>
    %110 = vector.extract_strided_slice %109 {offsets = [0, 0], sizes = [8, 512], strides = [1, 1]} : vector<8x1024xf32> to vector<8x512xf32>
    %111 = vector.extract_strided_slice %109 {offsets = [0, 512], sizes = [8, 512], strides = [1, 1]} : vector<8x1024xf32> to vector<8x512xf32>
    %112 = arith.addf %111, %9 : vector<8x512xf32>
    %113 = vector.extract_strided_slice %112 {offsets = [0, 0], sizes = [8, 128], strides = [1, 1]} : vector<8x512xf32> to vector<8x128xf32>
    %114 = arith.negf %113 : vector<8x128xf32>
    %115 = math.exp %114 : vector<8x128xf32>
    %cst_29 = arith.constant 1.000000e+00 : f32
    %116 = vector.broadcast %cst_29 : f32 to vector<8x128xf32>
    %117 = arith.addf %116, %115 : vector<8x128xf32>
    %118 = arith.divf %116, %117 : vector<8x128xf32>
    %119 = vector.extract_strided_slice %112 {offsets = [0, 128], sizes = [8, 128], strides = [1, 1]} : vector<8x512xf32> to vector<8x128xf32>
    %120 = arith.negf %119 : vector<8x128xf32>
    %121 = math.exp %120 : vector<8x128xf32>
    %cst_30 = arith.constant 1.000000e+00 : f32
    %122 = vector.broadcast %cst_30 : f32 to vector<8x128xf32>
    %123 = arith.addf %122, %121 : vector<8x128xf32>
    %124 = arith.divf %122, %123 : vector<8x128xf32>
    %125 = vector.extract_strided_slice %112 {offsets = [0, 256], sizes = [8, 128], strides = [1, 1]} : vector<8x512xf32> to vector<8x128xf32>
    %126 = math.tanh %125 : vector<8x128xf32>
    %127 = vector.extract_strided_slice %112 {offsets = [0, 384], sizes = [8, 128], strides = [1, 1]} : vector<8x512xf32> to vector<8x128xf32>
    %128 = arith.negf %127 : vector<8x128xf32>
    %129 = math.exp %128 : vector<8x128xf32>
    %cst_31 = arith.constant 1.000000e+00 : f32
    %130 = vector.broadcast %cst_31 : f32 to vector<8x128xf32>
    %131 = arith.addf %130, %129 : vector<8x128xf32>
    %132 = arith.divf %130, %131 : vector<8x128xf32>
    %133 = arith.mulf %124, %72 : vector<8x128xf32>
    %134 = arith.mulf %118, %126 : vector<8x128xf32>
    %135 = arith.addf %133, %134 : vector<8x128xf32>
    %136 = math.tanh %135 : vector<8x128xf32>
    %137 = arith.mulf %132, %136 : vector<8x128xf32>
    %c2_i32 = arith.constant 2 : i32
    %c8_i32_32 = arith.constant 8 : i32
    %138 = arith.muli %c2_i32, %c8_i32_32 : i32
    %139 = tpu.assume_multiple %138, 8 : i32
    %140 = arith.index_cast %139 : i32 to index
    %c0_33 = arith.constant 0 : index
    %141 = vector.load %arg8[%140, %c0_33] : memref<64x512xf32, #tpu.memory_space<vmem>>, vector<8x512xf32>
    %142 = arith.addf %141, %110 : vector<8x512xf32>
    %143 = vector.extract_strided_slice %142 {offsets = [0, 0], sizes = [8, 128], strides = [1, 1]} : vector<8x512xf32> to vector<8x128xf32>
    %144 = arith.negf %143 : vector<8x128xf32>
    %145 = math.exp %144 : vector<8x128xf32>
    %cst_34 = arith.constant 1.000000e+00 : f32
    %146 = vector.broadcast %cst_34 : f32 to vector<8x128xf32>
    %147 = arith.addf %146, %145 : vector<8x128xf32>
    %148 = arith.divf %146, %147 : vector<8x128xf32>
    %149 = vector.extract_strided_slice %142 {offsets = [0, 128], sizes = [8, 128], strides = [1, 1]} : vector<8x512xf32> to vector<8x128xf32>
    %150 = arith.negf %149 : vector<8x128xf32>
    %151 = math.exp %150 : vector<8x128xf32>
    %cst_35 = arith.constant 1.000000e+00 : f32
    %152 = vector.broadcast %cst_35 : f32 to vector<8x128xf32>
    %153 = arith.addf %152, %151 : vector<8x128xf32>
    %154 = arith.divf %152, %153 : vector<8x128xf32>
    %155 = vector.extract_strided_slice %142 {offsets = [0, 256], sizes = [8, 128], strides = [1, 1]} : vector<8x512xf32> to vector<8x128xf32>
    %156 = math.tanh %155 : vector<8x128xf32>
    %157 = vector.extract_strided_slice %142 {offsets = [0, 384], sizes = [8, 128], strides = [1, 1]} : vector<8x512xf32> to vector<8x128xf32>
    %158 = arith.negf %157 : vector<8x128xf32>
    %159 = math.exp %158 : vector<8x128xf32>
    %cst_36 = arith.constant 1.000000e+00 : f32
    %160 = vector.broadcast %cst_36 : f32 to vector<8x128xf32>
    %161 = arith.addf %160, %159 : vector<8x128xf32>
    %162 = arith.divf %160, %161 : vector<8x128xf32>
    %163 = arith.mulf %154, %102 : vector<8x128xf32>
    %164 = arith.mulf %148, %156 : vector<8x128xf32>
    %165 = arith.addf %163, %164 : vector<8x128xf32>
    %166 = math.tanh %165 : vector<8x128xf32>
    %167 = arith.mulf %162, %166 : vector<8x128xf32>
    %168 = arith.truncf %167 : vector<8x128xf32> to vector<8x128xbf16>
    %169 = arith.truncf %137 : vector<8x128xf32> to vector<8x128xbf16>
    %170 = tpu.concatenate %168, %169 in 1 : vector<8x128xbf16>, vector<8x128xbf16> -> vector<8x256xbf16>
    %c0_37 = arith.constant 0 : index
    %c0_38 = arith.constant 0 : index
    %171 = vector.load %arg3[%c0_37, %c0_38] : memref<256x1024xbf16, #tpu.memory_space<vmem>>, vector<256x1024xbf16>
    %cst_39 = arith.constant dense<0.000000e+00> : vector<8x1024xf32>
    %172 = tpu.matmul %170, %171, %cst_39 {dimension_numbers = #tpu.dot_dimension_numbers<[1], [0], [0], [1], [0, 0, 1, 1], [], []>} : vector<8x256xbf16>, vector<256x1024xbf16>, vector<8x1024xf32> -> vector<8x1024xf32>
    %173 = vector.extract_strided_slice %172 {offsets = [0, 0], sizes = [8, 512], strides = [1, 1]} : vector<8x1024xf32> to vector<8x512xf32>
    %174 = vector.extract_strided_slice %172 {offsets = [0, 512], sizes = [8, 512], strides = [1, 1]} : vector<8x1024xf32> to vector<8x512xf32>
    %175 = arith.addf %174, %9 : vector<8x512xf32>
    %176 = vector.extract_strided_slice %175 {offsets = [0, 0], sizes = [8, 128], strides = [1, 1]} : vector<8x512xf32> to vector<8x128xf32>
    %177 = arith.negf %176 : vector<8x128xf32>
    %178 = math.exp %177 : vector<8x128xf32>
    %cst_40 = arith.constant 1.000000e+00 : f32
    %179 = vector.broadcast %cst_40 : f32 to vector<8x128xf32>
    %180 = arith.addf %179, %178 : vector<8x128xf32>
    %181 = arith.divf %179, %180 : vector<8x128xf32>
    %182 = vector.extract_strided_slice %175 {offsets = [0, 128], sizes = [8, 128], strides = [1, 1]} : vector<8x512xf32> to vector<8x128xf32>
    %183 = arith.negf %182 : vector<8x128xf32>
    %184 = math.exp %183 : vector<8x128xf32>
    %cst_41 = arith.constant 1.000000e+00 : f32
    %185 = vector.broadcast %cst_41 : f32 to vector<8x128xf32>
    %186 = arith.addf %185, %184 : vector<8x128xf32>
    %187 = arith.divf %185, %186 : vector<8x128xf32>
    %188 = vector.extract_strided_slice %175 {offsets = [0, 256], sizes = [8, 128], strides = [1, 1]} : vector<8x512xf32> to vector<8x128xf32>
    %189 = math.tanh %188 : vector<8x128xf32>
    %190 = vector.extract_strided_slice %175 {offsets = [0, 384], sizes = [8, 128], strides = [1, 1]} : vector<8x512xf32> to vector<8x128xf32>
    %191 = arith.negf %190 : vector<8x128xf32>
    %192 = math.exp %191 : vector<8x128xf32>
    %cst_42 = arith.constant 1.000000e+00 : f32
    %193 = vector.broadcast %cst_42 : f32 to vector<8x128xf32>
    %194 = arith.addf %193, %192 : vector<8x128xf32>
    %195 = arith.divf %193, %194 : vector<8x128xf32>
    %196 = arith.mulf %187, %135 : vector<8x128xf32>
    %197 = arith.mulf %181, %189 : vector<8x128xf32>
    %198 = arith.addf %196, %197 : vector<8x128xf32>
    %199 = math.tanh %198 : vector<8x128xf32>
    %200 = arith.mulf %195, %199 : vector<8x128xf32>
    %c3_i32 = arith.constant 3 : i32
    %c8_i32_43 = arith.constant 8 : i32
    %201 = arith.muli %c3_i32, %c8_i32_43 : i32
    %202 = tpu.assume_multiple %201, 8 : i32
    %203 = arith.index_cast %202 : i32 to index
    %c0_44 = arith.constant 0 : index
    %204 = vector.load %arg8[%203, %c0_44] : memref<64x512xf32, #tpu.memory_space<vmem>>, vector<8x512xf32>
    %205 = arith.addf %204, %173 : vector<8x512xf32>
    %206 = vector.extract_strided_slice %205 {offsets = [0, 0], sizes = [8, 128], strides = [1, 1]} : vector<8x512xf32> to vector<8x128xf32>
    %207 = arith.negf %206 : vector<8x128xf32>
    %208 = math.exp %207 : vector<8x128xf32>
    %cst_45 = arith.constant 1.000000e+00 : f32
    %209 = vector.broadcast %cst_45 : f32 to vector<8x128xf32>
    %210 = arith.addf %209, %208 : vector<8x128xf32>
    %211 = arith.divf %209, %210 : vector<8x128xf32>
    %212 = vector.extract_strided_slice %205 {offsets = [0, 128], sizes = [8, 128], strides = [1, 1]} : vector<8x512xf32> to vector<8x128xf32>
    %213 = arith.negf %212 : vector<8x128xf32>
    %214 = math.exp %213 : vector<8x128xf32>
    %cst_46 = arith.constant 1.000000e+00 : f32
    %215 = vector.broadcast %cst_46 : f32 to vector<8x128xf32>
    %216 = arith.addf %215, %214 : vector<8x128xf32>
    %217 = arith.divf %215, %216 : vector<8x128xf32>
    %218 = vector.extract_strided_slice %205 {offsets = [0, 256], sizes = [8, 128], strides = [1, 1]} : vector<8x512xf32> to vector<8x128xf32>
    %219 = math.tanh %218 : vector<8x128xf32>
    %220 = vector.extract_strided_slice %205 {offsets = [0, 384], sizes = [8, 128], strides = [1, 1]} : vector<8x512xf32> to vector<8x128xf32>
    %221 = arith.negf %220 : vector<8x128xf32>
    %222 = math.exp %221 : vector<8x128xf32>
    %cst_47 = arith.constant 1.000000e+00 : f32
    %223 = vector.broadcast %cst_47 : f32 to vector<8x128xf32>
    %224 = arith.addf %223, %222 : vector<8x128xf32>
    %225 = arith.divf %223, %224 : vector<8x128xf32>
    %226 = arith.mulf %217, %165 : vector<8x128xf32>
    %227 = arith.mulf %211, %219 : vector<8x128xf32>
    %228 = arith.addf %226, %227 : vector<8x128xf32>
    %229 = math.tanh %228 : vector<8x128xf32>
    %230 = arith.mulf %225, %229 : vector<8x128xf32>
    %231 = arith.truncf %230 : vector<8x128xf32> to vector<8x128xbf16>
    %232 = arith.truncf %200 : vector<8x128xf32> to vector<8x128xbf16>
    %233 = tpu.concatenate %231, %232 in 1 : vector<8x128xbf16>, vector<8x128xbf16> -> vector<8x256xbf16>
    %c0_48 = arith.constant 0 : index
    %c0_49 = arith.constant 0 : index
    %234 = vector.load %arg3[%c0_48, %c0_49] : memref<256x1024xbf16, #tpu.memory_space<vmem>>, vector<256x1024xbf16>
    %cst_50 = arith.constant dense<0.000000e+00> : vector<8x1024xf32>
    %235 = tpu.matmul %233, %234, %cst_50 {dimension_numbers = #tpu.dot_dimension_numbers<[1], [0], [0], [1], [0, 0, 1, 1], [], []>} : vector<8x256xbf16>, vector<256x1024xbf16>, vector<8x1024xf32> -> vector<8x1024xf32>
    %236 = vector.extract_strided_slice %235 {offsets = [0, 0], sizes = [8, 512], strides = [1, 1]} : vector<8x1024xf32> to vector<8x512xf32>
    %237 = vector.extract_strided_slice %235 {offsets = [0, 512], sizes = [8, 512], strides = [1, 1]} : vector<8x1024xf32> to vector<8x512xf32>
    %238 = arith.addf %237, %9 : vector<8x512xf32>
    %239 = vector.extract_strided_slice %238 {offsets = [0, 0], sizes = [8, 128], strides = [1, 1]} : vector<8x512xf32> to vector<8x128xf32>
    %240 = arith.negf %239 : vector<8x128xf32>
    %241 = math.exp %240 : vector<8x128xf32>
    %cst_51 = arith.constant 1.000000e+00 : f32
    %242 = vector.broadcast %cst_51 : f32 to vector<8x128xf32>
    %243 = arith.addf %242, %241 : vector<8x128xf32>
    %244 = arith.divf %242, %243 : vector<8x128xf32>
    %245 = vector.extract_strided_slice %238 {offsets = [0, 128], sizes = [8, 128], strides = [1, 1]} : vector<8x512xf32> to vector<8x128xf32>
    %246 = arith.negf %245 : vector<8x128xf32>
    %247 = math.exp %246 : vector<8x128xf32>
    %cst_52 = arith.constant 1.000000e+00 : f32
    %248 = vector.broadcast %cst_52 : f32 to vector<8x128xf32>
    %249 = arith.addf %248, %247 : vector<8x128xf32>
    %250 = arith.divf %248, %249 : vector<8x128xf32>
    %251 = vector.extract_strided_slice %238 {offsets = [0, 256], sizes = [8, 128], strides = [1, 1]} : vector<8x512xf32> to vector<8x128xf32>
    %252 = math.tanh %251 : vector<8x128xf32>
    %253 = vector.extract_strided_slice %238 {offsets = [0, 384], sizes = [8, 128], strides = [1, 1]} : vector<8x512xf32> to vector<8x128xf32>
    %254 = arith.negf %253 : vector<8x128xf32>
    %255 = math.exp %254 : vector<8x128xf32>
    %cst_53 = arith.constant 1.000000e+00 : f32
    %256 = vector.broadcast %cst_53 : f32 to vector<8x128xf32>
    %257 = arith.addf %256, %255 : vector<8x128xf32>
    %258 = arith.divf %256, %257 : vector<8x128xf32>
    %259 = arith.mulf %250, %198 : vector<8x128xf32>
    %260 = arith.mulf %244, %252 : vector<8x128xf32>
    %261 = arith.addf %259, %260 : vector<8x128xf32>
    %262 = math.tanh %261 : vector<8x128xf32>
    %263 = arith.mulf %258, %262 : vector<8x128xf32>
    %c4_i32 = arith.constant 4 : i32
    %c8_i32_54 = arith.constant 8 : i32
    %264 = arith.muli %c4_i32, %c8_i32_54 : i32
    %265 = tpu.assume_multiple %264, 8 : i32
    %266 = arith.index_cast %265 : i32 to index
    %c0_55 = arith.constant 0 : index
    %267 = vector.load %arg8[%266, %c0_55] : memref<64x512xf32, #tpu.memory_space<vmem>>, vector<8x512xf32>
    %268 = arith.addf %267, %236 : vector<8x512xf32>
    %269 = vector.extract_strided_slice %268 {offsets = [0, 0], sizes = [8, 128], strides = [1, 1]} : vector<8x512xf32> to vector<8x128xf32>
    %270 = arith.negf %269 : vector<8x128xf32>
    %271 = math.exp %270 : vector<8x128xf32>
    %cst_56 = arith.constant 1.000000e+00 : f32
    %272 = vector.broadcast %cst_56 : f32 to vector<8x128xf32>
    %273 = arith.addf %272, %271 : vector<8x128xf32>
    %274 = arith.divf %272, %273 : vector<8x128xf32>
    %275 = vector.extract_strided_slice %268 {offsets = [0, 128], sizes = [8, 128], strides = [1, 1]} : vector<8x512xf32> to vector<8x128xf32>
    %276 = arith.negf %275 : vector<8x128xf32>
    %277 = math.exp %276 : vector<8x128xf32>
    %cst_57 = arith.constant 1.000000e+00 : f32
    %278 = vector.broadcast %cst_57 : f32 to vector<8x128xf32>
    %279 = arith.addf %278, %277 : vector<8x128xf32>
    %280 = arith.divf %278, %279 : vector<8x128xf32>
    %281 = vector.extract_strided_slice %268 {offsets = [0, 256], sizes = [8, 128], strides = [1, 1]} : vector<8x512xf32> to vector<8x128xf32>
    %282 = math.tanh %281 : vector<8x128xf32>
    %283 = vector.extract_strided_slice %268 {offsets = [0, 384], sizes = [8, 128], strides = [1, 1]} : vector<8x512xf32> to vector<8x128xf32>
    %284 = arith.negf %283 : vector<8x128xf32>
    %285 = math.exp %284 : vector<8x128xf32>
    %cst_58 = arith.constant 1.000000e+00 : f32
    %286 = vector.broadcast %cst_58 : f32 to vector<8x128xf32>
    %287 = arith.addf %286, %285 : vector<8x128xf32>
    %288 = arith.divf %286, %287 : vector<8x128xf32>
    %289 = arith.mulf %280, %228 : vector<8x128xf32>
    %290 = arith.mulf %274, %282 : vector<8x128xf32>
    %291 = arith.addf %289, %290 : vector<8x128xf32>
    %292 = math.tanh %291 : vector<8x128xf32>
    %293 = arith.mulf %288, %292 : vector<8x128xf32>
    %294 = arith.truncf %293 : vector<8x128xf32> to vector<8x128xbf16>
    %295 = arith.truncf %263 : vector<8x128xf32> to vector<8x128xbf16>
    %296 = tpu.concatenate %294, %295 in 1 : vector<8x128xbf16>, vector<8x128xbf16> -> vector<8x256xbf16>
    %c0_59 = arith.constant 0 : index
    %c0_60 = arith.constant 0 : index
    %297 = vector.load %arg3[%c0_59, %c0_60] : memref<256x1024xbf16, #tpu.memory_space<vmem>>, vector<256x1024xbf16>
    %cst_61 = arith.constant dense<0.000000e+00> : vector<8x1024xf32>
    %298 = tpu.matmul %296, %297, %cst_61 {dimension_numbers = #tpu.dot_dimension_numbers<[1], [0], [0], [1], [0, 0, 1, 1], [], []>} : vector<8x256xbf16>, vector<256x1024xbf16>, vector<8x1024xf32> -> vector<8x1024xf32>
    %299 = vector.extract_strided_slice %298 {offsets = [0, 0], sizes = [8, 512], strides = [1, 1]} : vector<8x1024xf32> to vector<8x512xf32>
    %300 = vector.extract_strided_slice %298 {offsets = [0, 512], sizes = [8, 512], strides = [1, 1]} : vector<8x1024xf32> to vector<8x512xf32>
    %301 = arith.addf %300, %9 : vector<8x512xf32>
    %302 = vector.extract_strided_slice %301 {offsets = [0, 0], sizes = [8, 128], strides = [1, 1]} : vector<8x512xf32> to vector<8x128xf32>
    %303 = arith.negf %302 : vector<8x128xf32>
    %304 = math.exp %303 : vector<8x128xf32>
    %cst_62 = arith.constant 1.000000e+00 : f32
    %305 = vector.broadcast %cst_62 : f32 to vector<8x128xf32>
    %306 = arith.addf %305, %304 : vector<8x128xf32>
    %307 = arith.divf %305, %306 : vector<8x128xf32>
    %308 = vector.extract_strided_slice %301 {offsets = [0, 128], sizes = [8, 128], strides = [1, 1]} : vector<8x512xf32> to vector<8x128xf32>
    %309 = arith.negf %308 : vector<8x128xf32>
    %310 = math.exp %309 : vector<8x128xf32>
    %cst_63 = arith.constant 1.000000e+00 : f32
    %311 = vector.broadcast %cst_63 : f32 to vector<8x128xf32>
    %312 = arith.addf %311, %310 : vector<8x128xf32>
    %313 = arith.divf %311, %312 : vector<8x128xf32>
    %314 = vector.extract_strided_slice %301 {offsets = [0, 256], sizes = [8, 128], strides = [1, 1]} : vector<8x512xf32> to vector<8x128xf32>
    %315 = math.tanh %314 : vector<8x128xf32>
    %316 = vector.extract_strided_slice %301 {offsets = [0, 384], sizes = [8, 128], strides = [1, 1]} : vector<8x512xf32> to vector<8x128xf32>
    %317 = arith.negf %316 : vector<8x128xf32>
    %318 = math.exp %317 : vector<8x128xf32>
    %cst_64 = arith.constant 1.000000e+00 : f32
    %319 = vector.broadcast %cst_64 : f32 to vector<8x128xf32>
    %320 = arith.addf %319, %318 : vector<8x128xf32>
    %321 = arith.divf %319, %320 : vector<8x128xf32>
    %322 = arith.mulf %313, %261 : vector<8x128xf32>
    %323 = arith.mulf %307, %315 : vector<8x128xf32>
    %324 = arith.addf %322, %323 : vector<8x128xf32>
    %325 = math.tanh %324 : vector<8x128xf32>
    %326 = arith.mulf %321, %325 : vector<8x128xf32>
    %c5_i32 = arith.constant 5 : i32
    %c8_i32_65 = arith.constant 8 : i32
    %327 = arith.muli %c5_i32, %c8_i32_65 : i32
    %328 = tpu.assume_multiple %327, 8 : i32
    %329 = arith.index_cast %328 : i32 to index
    %c0_66 = arith.constant 0 : index
    %330 = vector.load %arg8[%329, %c0_66] : memref<64x512xf32, #tpu.memory_space<vmem>>, vector<8x512xf32>
    %331 = arith.addf %330, %299 : vector<8x512xf32>
    %332 = vector.extract_strided_slice %331 {offsets = [0, 0], sizes = [8, 128], strides = [1, 1]} : vector<8x512xf32> to vector<8x128xf32>
    %333 = arith.negf %332 : vector<8x128xf32>
    %334 = math.exp %333 : vector<8x128xf32>
    %cst_67 = arith.constant 1.000000e+00 : f32
    %335 = vector.broadcast %cst_67 : f32 to vector<8x128xf32>
    %336 = arith.addf %335, %334 : vector<8x128xf32>
    %337 = arith.divf %335, %336 : vector<8x128xf32>
    %338 = vector.extract_strided_slice %331 {offsets = [0, 128], sizes = [8, 128], strides = [1, 1]} : vector<8x512xf32> to vector<8x128xf32>
    %339 = arith.negf %338 : vector<8x128xf32>
    %340 = math.exp %339 : vector<8x128xf32>
    %cst_68 = arith.constant 1.000000e+00 : f32
    %341 = vector.broadcast %cst_68 : f32 to vector<8x128xf32>
    %342 = arith.addf %341, %340 : vector<8x128xf32>
    %343 = arith.divf %341, %342 : vector<8x128xf32>
    %344 = vector.extract_strided_slice %331 {offsets = [0, 256], sizes = [8, 128], strides = [1, 1]} : vector<8x512xf32> to vector<8x128xf32>
    %345 = math.tanh %344 : vector<8x128xf32>
    %346 = vector.extract_strided_slice %331 {offsets = [0, 384], sizes = [8, 128], strides = [1, 1]} : vector<8x512xf32> to vector<8x128xf32>
    %347 = arith.negf %346 : vector<8x128xf32>
    %348 = math.exp %347 : vector<8x128xf32>
    %cst_69 = arith.constant 1.000000e+00 : f32
    %349 = vector.broadcast %cst_69 : f32 to vector<8x128xf32>
    %350 = arith.addf %349, %348 : vector<8x128xf32>
    %351 = arith.divf %349, %350 : vector<8x128xf32>
    %352 = arith.mulf %343, %291 : vector<8x128xf32>
    %353 = arith.mulf %337, %345 : vector<8x128xf32>
    %354 = arith.addf %352, %353 : vector<8x128xf32>
    %355 = math.tanh %354 : vector<8x128xf32>
    %356 = arith.mulf %351, %355 : vector<8x128xf32>
    %357 = arith.truncf %356 : vector<8x128xf32> to vector<8x128xbf16>
    %358 = arith.truncf %326 : vector<8x128xf32> to vector<8x128xbf16>
    %359 = tpu.concatenate %357, %358 in 1 : vector<8x128xbf16>, vector<8x128xbf16> -> vector<8x256xbf16>
    %c0_70 = arith.constant 0 : index
    %c0_71 = arith.constant 0 : index
    %360 = vector.load %arg3[%c0_70, %c0_71] : memref<256x1024xbf16, #tpu.memory_space<vmem>>, vector<256x1024xbf16>
    %cst_72 = arith.constant dense<0.000000e+00> : vector<8x1024xf32>
    %361 = tpu.matmul %359, %360, %cst_72 {dimension_numbers = #tpu.dot_dimension_numbers<[1], [0], [0], [1], [0, 0, 1, 1], [], []>} : vector<8x256xbf16>, vector<256x1024xbf16>, vector<8x1024xf32> -> vector<8x1024xf32>
    %362 = vector.extract_strided_slice %361 {offsets = [0, 0], sizes = [8, 512], strides = [1, 1]} : vector<8x1024xf32> to vector<8x512xf32>
    %363 = vector.extract_strided_slice %361 {offsets = [0, 512], sizes = [8, 512], strides = [1, 1]} : vector<8x1024xf32> to vector<8x512xf32>
    %364 = arith.addf %363, %9 : vector<8x512xf32>
    %365 = vector.extract_strided_slice %364 {offsets = [0, 0], sizes = [8, 128], strides = [1, 1]} : vector<8x512xf32> to vector<8x128xf32>
    %366 = arith.negf %365 : vector<8x128xf32>
    %367 = math.exp %366 : vector<8x128xf32>
    %cst_73 = arith.constant 1.000000e+00 : f32
    %368 = vector.broadcast %cst_73 : f32 to vector<8x128xf32>
    %369 = arith.addf %368, %367 : vector<8x128xf32>
    %370 = arith.divf %368, %369 : vector<8x128xf32>
    %371 = vector.extract_strided_slice %364 {offsets = [0, 128], sizes = [8, 128], strides = [1, 1]} : vector<8x512xf32> to vector<8x128xf32>
    %372 = arith.negf %371 : vector<8x128xf32>
    %373 = math.exp %372 : vector<8x128xf32>
    %cst_74 = arith.constant 1.000000e+00 : f32
    %374 = vector.broadcast %cst_74 : f32 to vector<8x128xf32>
    %375 = arith.addf %374, %373 : vector<8x128xf32>
    %376 = arith.divf %374, %375 : vector<8x128xf32>
    %377 = vector.extract_strided_slice %364 {offsets = [0, 256], sizes = [8, 128], strides = [1, 1]} : vector<8x512xf32> to vector<8x128xf32>
    %378 = math.tanh %377 : vector<8x128xf32>
    %379 = vector.extract_strided_slice %364 {offsets = [0, 384], sizes = [8, 128], strides = [1, 1]} : vector<8x512xf32> to vector<8x128xf32>
    %380 = arith.negf %379 : vector<8x128xf32>
    %381 = math.exp %380 : vector<8x128xf32>
    %cst_75 = arith.constant 1.000000e+00 : f32
    %382 = vector.broadcast %cst_75 : f32 to vector<8x128xf32>
    %383 = arith.addf %382, %381 : vector<8x128xf32>
    %384 = arith.divf %382, %383 : vector<8x128xf32>
    %385 = arith.mulf %376, %324 : vector<8x128xf32>
    %386 = arith.mulf %370, %378 : vector<8x128xf32>
    %387 = arith.addf %385, %386 : vector<8x128xf32>
    %388 = math.tanh %387 : vector<8x128xf32>
    %389 = arith.mulf %384, %388 : vector<8x128xf32>
    %c6_i32 = arith.constant 6 : i32
    %c8_i32_76 = arith.constant 8 : i32
    %390 = arith.muli %c6_i32, %c8_i32_76 : i32
    %391 = tpu.assume_multiple %390, 8 : i32
    %392 = arith.index_cast %391 : i32 to index
    %c0_77 = arith.constant 0 : index
    %393 = vector.load %arg8[%392, %c0_77] : memref<64x512xf32, #tpu.memory_space<vmem>>, vector<8x512xf32>
    %394 = arith.addf %393, %362 : vector<8x512xf32>
    %395 = vector.extract_strided_slice %394 {offsets = [0, 0], sizes = [8, 128], strides = [1, 1]} : vector<8x512xf32> to vector<8x128xf32>
    %396 = arith.negf %395 : vector<8x128xf32>
    %397 = math.exp %396 : vector<8x128xf32>
    %cst_78 = arith.constant 1.000000e+00 : f32
    %398 = vector.broadcast %cst_78 : f32 to vector<8x128xf32>
    %399 = arith.addf %398, %397 : vector<8x128xf32>
    %400 = arith.divf %398, %399 : vector<8x128xf32>
    %401 = vector.extract_strided_slice %394 {offsets = [0, 128], sizes = [8, 128], strides = [1, 1]} : vector<8x512xf32> to vector<8x128xf32>
    %402 = arith.negf %401 : vector<8x128xf32>
    %403 = math.exp %402 : vector<8x128xf32>
    %cst_79 = arith.constant 1.000000e+00 : f32
    %404 = vector.broadcast %cst_79 : f32 to vector<8x128xf32>
    %405 = arith.addf %404, %403 : vector<8x128xf32>
    %406 = arith.divf %404, %405 : vector<8x128xf32>
    %407 = vector.extract_strided_slice %394 {offsets = [0, 256], sizes = [8, 128], strides = [1, 1]} : vector<8x512xf32> to vector<8x128xf32>
    %408 = math.tanh %407 : vector<8x128xf32>
    %409 = vector.extract_strided_slice %394 {offsets = [0, 384], sizes = [8, 128], strides = [1, 1]} : vector<8x512xf32> to vector<8x128xf32>
    %410 = arith.negf %409 : vector<8x128xf32>
    %411 = math.exp %410 : vector<8x128xf32>
    %cst_80 = arith.constant 1.000000e+00 : f32
    %412 = vector.broadcast %cst_80 : f32 to vector<8x128xf32>
    %413 = arith.addf %412, %411 : vector<8x128xf32>
    %414 = arith.divf %412, %413 : vector<8x128xf32>
    %415 = arith.mulf %406, %354 : vector<8x128xf32>
    %416 = arith.mulf %400, %408 : vector<8x128xf32>
    %417 = arith.addf %415, %416 : vector<8x128xf32>
    %418 = math.tanh %417 : vector<8x128xf32>
    %419 = arith.mulf %414, %418 : vector<8x128xf32>
    %420 = arith.truncf %419 : vector<8x128xf32> to vector<8x128xbf16>
    %421 = arith.truncf %389 : vector<8x128xf32> to vector<8x128xbf16>
    %422 = tpu.concatenate %420, %421 in 1 : vector<8x128xbf16>, vector<8x128xbf16> -> vector<8x256xbf16>
    %c0_81 = arith.constant 0 : index
    %c0_82 = arith.constant 0 : index
    %423 = vector.load %arg3[%c0_81, %c0_82] : memref<256x1024xbf16, #tpu.memory_space<vmem>>, vector<256x1024xbf16>
    %cst_83 = arith.constant dense<0.000000e+00> : vector<8x1024xf32>
    %424 = tpu.matmul %422, %423, %cst_83 {dimension_numbers = #tpu.dot_dimension_numbers<[1], [0], [0], [1], [0, 0, 1, 1], [], []>} : vector<8x256xbf16>, vector<256x1024xbf16>, vector<8x1024xf32> -> vector<8x1024xf32>
    %425 = vector.extract_strided_slice %424 {offsets = [0, 0], sizes = [8, 512], strides = [1, 1]} : vector<8x1024xf32> to vector<8x512xf32>
    %426 = vector.extract_strided_slice %424 {offsets = [0, 512], sizes = [8, 512], strides = [1, 1]} : vector<8x1024xf32> to vector<8x512xf32>
    %427 = arith.addf %426, %9 : vector<8x512xf32>
    %428 = vector.extract_strided_slice %427 {offsets = [0, 0], sizes = [8, 128], strides = [1, 1]} : vector<8x512xf32> to vector<8x128xf32>
    %429 = arith.negf %428 : vector<8x128xf32>
    %430 = math.exp %429 : vector<8x128xf32>
    %cst_84 = arith.constant 1.000000e+00 : f32
    %431 = vector.broadcast %cst_84 : f32 to vector<8x128xf32>
    %432 = arith.addf %431, %430 : vector<8x128xf32>
    %433 = arith.divf %431, %432 : vector<8x128xf32>
    %434 = vector.extract_strided_slice %427 {offsets = [0, 128], sizes = [8, 128], strides = [1, 1]} : vector<8x512xf32> to vector<8x128xf32>
    %435 = arith.negf %434 : vector<8x128xf32>
    %436 = math.exp %435 : vector<8x128xf32>
    %cst_85 = arith.constant 1.000000e+00 : f32
    %437 = vector.broadcast %cst_85 : f32 to vector<8x128xf32>
    %438 = arith.addf %437, %436 : vector<8x128xf32>
    %439 = arith.divf %437, %438 : vector<8x128xf32>
    %440 = vector.extract_strided_slice %427 {offsets = [0, 256], sizes = [8, 128], strides = [1, 1]} : vector<8x512xf32> to vector<8x128xf32>
    %441 = math.tanh %440 : vector<8x128xf32>
    %442 = vector.extract_strided_slice %427 {offsets = [0, 384], sizes = [8, 128], strides = [1, 1]} : vector<8x512xf32> to vector<8x128xf32>
    %443 = arith.negf %442 : vector<8x128xf32>
    %444 = math.exp %443 : vector<8x128xf32>
    %cst_86 = arith.constant 1.000000e+00 : f32
    %445 = vector.broadcast %cst_86 : f32 to vector<8x128xf32>
    %446 = arith.addf %445, %444 : vector<8x128xf32>
    %447 = arith.divf %445, %446 : vector<8x128xf32>
    %448 = arith.mulf %439, %387 : vector<8x128xf32>
    %449 = arith.mulf %433, %441 : vector<8x128xf32>
    %450 = arith.addf %448, %449 : vector<8x128xf32>
    %451 = math.tanh %450 : vector<8x128xf32>
    %452 = arith.mulf %447, %451 : vector<8x128xf32>
    %c7_i32 = arith.constant 7 : i32
    %c8_i32_87 = arith.constant 8 : i32
    %453 = arith.muli %c7_i32, %c8_i32_87 : i32
    %454 = tpu.assume_multiple %453, 8 : i32
    %455 = arith.index_cast %454 : i32 to index
    %c0_88 = arith.constant 0 : index
    %456 = vector.load %arg8[%455, %c0_88] : memref<64x512xf32, #tpu.memory_space<vmem>>, vector<8x512xf32>
    %457 = arith.addf %456, %425 : vector<8x512xf32>
    %458 = vector.extract_strided_slice %457 {offsets = [0, 0], sizes = [8, 128], strides = [1, 1]} : vector<8x512xf32> to vector<8x128xf32>
    %459 = arith.negf %458 : vector<8x128xf32>
    %460 = math.exp %459 : vector<8x128xf32>
    %cst_89 = arith.constant 1.000000e+00 : f32
    %461 = vector.broadcast %cst_89 : f32 to vector<8x128xf32>
    %462 = arith.addf %461, %460 : vector<8x128xf32>
    %463 = arith.divf %461, %462 : vector<8x128xf32>
    %464 = vector.extract_strided_slice %457 {offsets = [0, 128], sizes = [8, 128], strides = [1, 1]} : vector<8x512xf32> to vector<8x128xf32>
    %465 = arith.negf %464 : vector<8x128xf32>
    %466 = math.exp %465 : vector<8x128xf32>
    %cst_90 = arith.constant 1.000000e+00 : f32
    %467 = vector.broadcast %cst_90 : f32 to vector<8x128xf32>
    %468 = arith.addf %467, %466 : vector<8x128xf32>
    %469 = arith.divf %467, %468 : vector<8x128xf32>
    %470 = vector.extract_strided_slice %457 {offsets = [0, 256], sizes = [8, 128], strides = [1, 1]} : vector<8x512xf32> to vector<8x128xf32>
    %471 = math.tanh %470 : vector<8x128xf32>
    %472 = vector.extract_strided_slice %457 {offsets = [0, 384], sizes = [8, 128], strides = [1, 1]} : vector<8x512xf32> to vector<8x128xf32>
    %473 = arith.negf %472 : vector<8x128xf32>
    %474 = math.exp %473 : vector<8x128xf32>
    %cst_91 = arith.constant 1.000000e+00 : f32
    %475 = vector.broadcast %cst_91 : f32 to vector<8x128xf32>
    %476 = arith.addf %475, %474 : vector<8x128xf32>
    %477 = arith.divf %475, %476 : vector<8x128xf32>
    %478 = arith.mulf %469, %417 : vector<8x128xf32>
    %479 = arith.mulf %463, %471 : vector<8x128xf32>
    %480 = arith.addf %478, %479 : vector<8x128xf32>
    %481 = math.tanh %480 : vector<8x128xf32>
    %482 = arith.mulf %477, %481 : vector<8x128xf32>
    %483 = arith.truncf %482 : vector<8x128xf32> to vector<8x128xbf16>
    %484 = arith.truncf %452 : vector<8x128xf32> to vector<8x128xbf16>
    %485 = tpu.concatenate %483, %484 in 1 : vector<8x128xbf16>, vector<8x128xbf16> -> vector<8x256xbf16>
    %c0_92 = arith.constant 0 : index
    %c0_93 = arith.constant 0 : index
    %486 = vector.load %arg3[%c0_92, %c0_93] : memref<256x1024xbf16, #tpu.memory_space<vmem>>, vector<256x1024xbf16>
    %cst_94 = arith.constant dense<0.000000e+00> : vector<8x1024xf32>
    %487 = tpu.matmul %485, %486, %cst_94 {dimension_numbers = #tpu.dot_dimension_numbers<[1], [0], [0], [1], [0, 0, 1, 1], [], []>} : vector<8x256xbf16>, vector<256x1024xbf16>, vector<8x1024xf32> -> vector<8x1024xf32>
    %488 = vector.extract_strided_slice %487 {offsets = [0, 0], sizes = [8, 512], strides = [1, 1]} : vector<8x1024xf32> to vector<8x512xf32>
    %489 = vector.extract_strided_slice %487 {offsets = [0, 512], sizes = [8, 512], strides = [1, 1]} : vector<8x1024xf32> to vector<8x512xf32>
    %490 = arith.addf %489, %9 : vector<8x512xf32>
    %491 = vector.extract_strided_slice %490 {offsets = [0, 0], sizes = [8, 128], strides = [1, 1]} : vector<8x512xf32> to vector<8x128xf32>
    %492 = arith.negf %491 : vector<8x128xf32>
    %493 = math.exp %492 : vector<8x128xf32>
    %cst_95 = arith.constant 1.000000e+00 : f32
    %494 = vector.broadcast %cst_95 : f32 to vector<8x128xf32>
    %495 = arith.addf %494, %493 : vector<8x128xf32>
    %496 = arith.divf %494, %495 : vector<8x128xf32>
    %497 = vector.extract_strided_slice %490 {offsets = [0, 128], sizes = [8, 128], strides = [1, 1]} : vector<8x512xf32> to vector<8x128xf32>
    %498 = arith.negf %497 : vector<8x128xf32>
    %499 = math.exp %498 : vector<8x128xf32>
    %cst_96 = arith.constant 1.000000e+00 : f32
    %500 = vector.broadcast %cst_96 : f32 to vector<8x128xf32>
    %501 = arith.addf %500, %499 : vector<8x128xf32>
    %502 = arith.divf %500, %501 : vector<8x128xf32>
    %503 = vector.extract_strided_slice %490 {offsets = [0, 256], sizes = [8, 128], strides = [1, 1]} : vector<8x512xf32> to vector<8x128xf32>
    %504 = math.tanh %503 : vector<8x128xf32>
    %505 = vector.extract_strided_slice %490 {offsets = [0, 384], sizes = [8, 128], strides = [1, 1]} : vector<8x512xf32> to vector<8x128xf32>
    %506 = arith.negf %505 : vector<8x128xf32>
    %507 = math.exp %506 : vector<8x128xf32>
    %cst_97 = arith.constant 1.000000e+00 : f32
    %508 = vector.broadcast %cst_97 : f32 to vector<8x128xf32>
    %509 = arith.addf %508, %507 : vector<8x128xf32>
    %510 = arith.divf %508, %509 : vector<8x128xf32>
    %511 = arith.mulf %502, %450 : vector<8x128xf32>
    %512 = arith.mulf %496, %504 : vector<8x128xf32>
    %513 = arith.addf %511, %512 : vector<8x128xf32>
    %514 = math.tanh %513 : vector<8x128xf32>
    %515 = arith.mulf %510, %514 : vector<8x128xf32>
    %c8_i32_98 = arith.constant 8 : i32
    %c0_99 = arith.constant 0 : index
    %c0_100 = arith.constant 0 : index
    %516 = vector.load %arg5[%c0_99, %c0_100] : memref<1x128xf32, #tpu.memory_space<vmem>>, vector<1x128xf32>
    %517 = vector.broadcast %516 : vector<1x128xf32> to vector<8x128xf32>
    %518 = arith.mulf %515, %517 : vector<8x128xf32>
    %cst_101 = arith.constant dense<0.000000e+00> : vector<8xf32>
    %519 = vector.multi_reduction <add>, %518, %cst_101 [1] : vector<8x128xf32> to vector<8xf32>
    %520 = vector.shape_cast %519 : vector<8xf32> to vector<8x1xf32>
    %c0_102 = arith.constant 0 : index
    %c0_103 = arith.constant 0 : index
    %521 = vector.load %arg6[%c0_102, %c0_103] : memref<1x1xf32, #tpu.memory_space<vmem>>, vector<1x1xf32>
    %522 = vector.broadcast %521 : vector<1x1xf32> to vector<8x1xf32>
    %523 = arith.addf %520, %522 : vector<8x1xf32>
    %c0_104 = arith.constant 0 : index
    %c0_105 = arith.constant 0 : index
    %524 = vector.load %arg7[%c0_104, %c0_105] : memref<8x1xf32, #tpu.memory_space<vmem>>, vector<8x1xf32>
    tpu.vector_store %arg7[%c0_104, %c0_105], %523 {strides = array<i32>} : memref<8x1xf32, #tpu.memory_space<vmem>>, vector<8x1xf32>,
    return
  }
}

</mosaic_0001>

<llo_original>
// kernel: lstm_module_forward.1
$region0: #{lstm_module_forward.1}
  #allocation0 [shape = 'u32[]', space=smem, size = 0x4, offset = 0x4, fixed_abs, tag = 'smem constant byte address 0x4 - core index']
  #allocation1 [shape = 'u32[72,128]{1,0:T(1,128)}', space=vmem, size = 0x9000, scoped, tag = 'internal scratch']
  #allocation2 [shape = 'f32[64,512]{1,0:T(8,128)}', space=vmem, size = 0x20000, scoped, tag = 'scratch operand']
  #allocation3 [shape = 'f32[1,1]{1,0:T(1,128)S(1)}', space=vmem, size = 0x200, scoped, tag = 'scoped memory for lstm_module_forward.1']
  %s0 = inlined_call_operand.vmem [shape: f32[64,4], index: 0, kind: input, shape index: {}]
  %s1 = inlined_call_operand.vmem [shape: f32[4,512], index: 1, kind: input, shape index: {}]
  %s2 = inlined_call_operand.vmem [shape: f32[1,512], index: 2, kind: input, shape index: {}]
  %s3 = inlined_call_operand.hbm [shape: bf16[256,1024], index: 3, kind: input, shape index: {}]
  %s4 = inlined_call_operand.vmem [shape: f32[1,512], index: 4, kind: input, shape index: {}]
  %s5 = inlined_call_operand.vmem [shape: f32[1,128], index: 5, kind: input, shape index: {}]
  %s6 = inlined_call_operand.<no memory space> [shape: f32[1,1], index: 6, kind: input, shape index: {}]
  %s7 = inlined_call_operand.vmem [shape: f32[8,1], index: 7, kind: output, shape index: {}]
  %s8 = sld [smem:[#allocation0]]
  $region42: #{lstm_module_forward.1} parent=0
    _
  %s10 = ssub.s32 1, %s8
  %s11 = scalar_select 0, %s10, %s8
  %v12 = vstv %s6
  %13 = vst [vmem:[#allocation3] sm:$0x1] %v12
  $region1: #{lstm_module_forward.1} parent=0
    #allocation4 [shape = 'u8[524288]{0}', space=vmem, size = 0x80000, scoped, tag = 'input window, operand 3, single buffered']
    #allocation5 [shape = 's32[1]{0}', space=sflag, size = 0x4, scoped, tag = 'scoped memory for lstm_module_forward.1']
    %14 = vsyncpa [#allocation5], 0
    // Predicated region
    $region2: #{lstm_module_forward.1} parent=1 // pred_check
      _
    $region3: #{lstm_module_forward.1} parent=1 // pred_check_branch
      %16 = sbr.rel (0) target = $region5
    $region4: #{lstm_module_forward.1} parent=1 // pred_region
      _
    $region5: #{lstm_module_forward.1} parent=1 // pred_fallthru
      _
    // Predicated region
    $region6: #{lstm_module_forward.1} parent=1 // pred_check
      _
    $region7: #{lstm_module_forward.1} parent=1 // pred_check_branch
      %18 = sbr.rel (0) target = $region9
    $region8: #{lstm_module_forward.1} parent=1 // pred_region
      _
    $region9: #{lstm_module_forward.1} parent=1 // pred_fallthru
      _
    // Predicated region
    $region10: #{lstm_module_forward.1} parent=1 // pred_check
      _
    $region11: #{lstm_module_forward.1} parent=1 // pred_check_branch
      %20 = sbr.rel (0) target = $region13
    $region12: #{lstm_module_forward.1} parent=1 // pred_region
      _
    $region13: #{lstm_module_forward.1} parent=1 // pred_fallthru
      _
    // Predicated region
    $region14: #{lstm_module_forward.1} parent=1 // pred_check
      _
    $region15: #{lstm_module_forward.1} parent=1 // pred_check_branch
      %22 = sbr.rel (0) target = $region17
    $region16: #{lstm_module_forward.1} parent=1 // pred_region
      %24 = vsyncadd [#allocation5], 0
      %s25 = sshll.u32 %s3, 4
      %s26 = int_to_ptr.hbm [resolvable:$true] %s25
      %s27 = sshll.u32 [#allocation4], 4
      %s28 = int_to_ptr.vmem [resolvable:$true] %s27
      %33 = dma.hbm_to_vmem [thread:$0]  %s26, 16384, %s28, [#allocation5], 512, 512, 32
    $region17: #{lstm_module_forward.1} parent=1 // pred_fallthru
      _
    // Predicated region
    $region18: #{lstm_module_forward.1} parent=1 // pred_check
      _
    $region19: #{lstm_module_forward.1} parent=1 // pred_check_branch
      %35 = sbr.rel (0) target = $region21
    $region20: #{lstm_module_forward.1} parent=1 // pred_region
      _
    $region21: #{lstm_module_forward.1} parent=1 // pred_fallthru
      _
    // Predicated region
    $region22: #{lstm_module_forward.1} parent=1 // pred_check
      _
    $region23: #{lstm_module_forward.1} parent=1 // pred_check_branch
      %37 = sbr.rel (0) target = $region25
    $region24: #{lstm_module_forward.1} parent=1 // pred_region
      _
    $region25: #{lstm_module_forward.1} parent=1 // pred_fallthru
      _
    // Predicated region
    $region26: #{lstm_module_forward.1} parent=1 // pred_check
      _
    $region27: #{lstm_module_forward.1} parent=1 // pred_check_branch
      %39 = sbr.rel (0) target = $region29
    $region28: #{lstm_module_forward.1} parent=1 // pred_region
      _
    $region29: #{lstm_module_forward.1} parent=1 // pred_fallthru
      _
    // Predicated region
    $region30: #{lstm_module_forward.1} parent=1 // pred_check
      _
    $region31: #{lstm_module_forward.1} parent=1 // pred_check_branch
      %41 = sbr.rel (0) target = $region33
    $region32: #{lstm_module_forward.1} parent=1 // pred_region
      %43 = dma.done [#allocation5], 16384
    $region33: #{lstm_module_forward.1} parent=1 // pred_fallthru
      _
    %v45 = vld [vmem:[%s0] sm:$0xff]
    %v46 = vld [vmem:[%s0 + $0x8] sm:$0xff]
    %v47 = vld [vmem:[%s0 + $0x10] sm:$0xff]
    %v48 = vld [vmem:[%s0 + $0x18] sm:$0xff]
    %v49 = vld [vmem:[%s0 + $0x20] sm:$0xff]
    %v50 = vld [vmem:[%s0 + $0x28] sm:$0xff]
    %v51 = vld [vmem:[%s0 + $0x30] sm:$0xff]
    %v52 = vld [vmem:[%s0 + $0x38] sm:$0xff]
    %v53 = vld [vmem:[%s1] sm:$0xff]
    %v54 = vld [vmem:[%s1 + $0x8] sm:$0xff]
    %v55 = vld [vmem:[%s2] sm:$0xf]
    %v57 = vperm.slane %v55, 0
    %v58 = vperm.slane %v55, 1
    %v59 = vperm.slane %v55, 2
    %v60 = vperm.slane %v55, 3
    %67 = vst [vmem:[#allocation1] ss:$2 sm:$0xff] %v53
    %s68 = scalar_lea.vmem [#allocation1], 16
    %69 = vst [vmem:[%s68] ss:$2 sm:$0xff] %v54
    %v70 = vld.sshfl [vmem:[#allocation1] sm:$0xff pattern:$0x75316420]
    %v71 = vld.sshfl [vmem:[#allocation1 + $0x8] sm:$0xff pattern:$0x75316420]
    %v72 = vld.sshfl [vmem:[#allocation1 + $0x10] sm:$0xff pattern:$0x75316420]
    %v73 = vld.sshfl [vmem:[#allocation1 + $0x18] sm:$0xff pattern:$0x75316420]
    %vm74 = vcmask 31744
    %v76 = vsel %vm74, %v45, 0
    %v79 = vsel %vm74, %v46, 0
    %v82 = vsel %vm74, %v47, 0
    %v85 = vsel %vm74, %v48, 0
    %v88 = vsel %vm74, %v49, 0
    %v91 = vsel %vm74, %v50, 0
    %v94 = vsel %vm74, %v51, 0
    %v97 = vsel %vm74, %v52, 0
    %vm99 = vcmask 1043456
    %v100 = vsel %vm99, %v70, 0
    %v102 = vsel %vm99, %v71, 0
    %v104 = vsel %vm99, %v72, 0
    %v106 = vsel %vm99, %v73, 0
    %108 = vmatpush.msra.mxu0 0.0
    %109 = vmatpush.msra.mxu0 0.0
    %110 = vmatpush.msra.mxu0 0.0
    %111 = vmatpush.msra.mxu0 0.0
    %112 = vmatpush.msra.mxu0 0.0
    %113 = vmatpush.msra.mxu0 0.0
    %114 = vmatpush.msra.mxu0 0.0
    %115 = vmatpush.msra.mxu0 0.0
    %116 = vmatpush.msra.mxu0 0.0
    %117 = vmatpush.msra.mxu0 0.0
    %118 = vmatpush.msra.mxu0 0.0
    %119 = vmatpush.msra.mxu0 0.0
    %120 = vmatpush.msra.mxu0 0.0
    %121 = vmatpush.msra.mxu0 0.0
    %122 = vmatpush.msra.mxu0 0.0
    %123 = vmatpush.msra.mxu0 %v100
    %124 = vmatmul.f32.gmra.mxu0 %v76
    %v125 = vpop.f32.mrf.mxu0
    %v126 = vadd.f32 %v57, %v125
    %127 = vmatmul.f32.gmra.mxu0 %v79
    %v128 = vpop.f32.mrf.mxu0
    %v129 = vadd.f32 %v57, %v128
    %130 = vmatmul.f32.gmra.mxu0 %v82
    %v131 = vpop.f32.mrf.mxu0
    %v132 = vadd.f32 %v57, %v131
    %133 = vmatmul.f32.gmra.mxu0 %v85
    %v134 = vpop.f32.mrf.mxu0
    %v135 = vadd.f32 %v57, %v134
    %136 = vmatmul.f32.gmra.mxu0 %v88
    %v137 = vpop.f32.mrf.mxu0
    %v138 = vadd.f32 %v57, %v137
    %139 = vmatmul.f32.gmra.mxu0 %v91
    %v140 = vpop.f32.mrf.mxu0
    %v141 = vadd.f32 %v57, %v140
    %142 = vmatmul.f32.gmra.mxu0 %v94
    %v143 = vpop.f32.mrf.mxu0
    %v144 = vadd.f32 %v57, %v143
    %145 = vmatmul.f32.gmra.mxu0 %v97
    %v146 = vpop.f32.mrf.mxu0
    %v147 = vadd.f32 %v57, %v146
    %148 = vdwg.mxu0
    %149 = vmatpush.msra.mxu0 0.0
    %150 = vmatpush.msra.mxu0 0.0
    %151 = vmatpush.msra.mxu0 0.0
    %152 = vmatpush.msra.mxu0 0.0
    %153 = vmatpush.msra.mxu0 0.0
    %154 = vmatpush.msra.mxu0 0.0
    %155 = vmatpush.msra.mxu0 0.0
    %156 = vmatpush.msra.mxu0 0.0
    %157 = vmatpush.msra.mxu0 0.0
    %158 = vmatpush.msra.mxu0 0.0
    %159 = vmatpush.msra.mxu0 0.0
    %160 = vmatpush.msra.mxu0 0.0
    %161 = vmatpush.msra.mxu0 0.0
    %162 = vmatpush.msra.mxu0 0.0
    %163 = vmatpush.msra.mxu0 0.0
    %164 = vmatpush.msra.mxu0 %v102
    %165 = vmatmul.f32.gmra.mxu0 %v76
    %v166 = vpop.f32.mrf.mxu0
    %v167 = vadd.f32 %v58, %v166
    %168 = vmatmul.f32.gmra.mxu0 %v79
    %v169 = vpop.f32.mrf.mxu0
    %v170 = vadd.f32 %v58, %v169
    %171 = vmatmul.f32.gmra.mxu0 %v82
    %v172 = vpop.f32.mrf.mxu0
    %v173 = vadd.f32 %v58, %v172
    %174 = vmatmul.f32.gmra.mxu0 %v85
    %v175 = vpop.f32.mrf.mxu0
    %v176 = vadd.f32 %v58, %v175
    %177 = vmatmul.f32.gmra.mxu0 %v88
    %v178 = vpop.f32.mrf.mxu0
    %v179 = vadd.f32 %v58, %v178
    %180 = vmatmul.f32.gmra.mxu0 %v91
    %v181 = vpop.f32.mrf.mxu0
    %v182 = vadd.f32 %v58, %v181
    %183 = vmatmul.f32.gmra.mxu0 %v94
    %v184 = vpop.f32.mrf.mxu0
    %v185 = vadd.f32 %v58, %v184
    %186 = vmatmul.f32.gmra.mxu0 %v97
    %v187 = vpop.f32.mrf.mxu0
    %v188 = vadd.f32 %v58, %v187
    %189 = vdwg.mxu0
    %190 = vmatpush.msra.mxu0 0.0
    %191 = vmatpush.msra.mxu0 0.0
    %192 = vmatpush.msra.mxu0 0.0
    %193 = vmatpush.msra.mxu0 0.0
    %194 = vmatpush.msra.mxu0 0.0
    %195 = vmatpush.msra.mxu0 0.0
    %196 = vmatpush.msra.mxu0 0.0
    %197 = vmatpush.msra.mxu0 0.0
    %198 = vmatpush.msra.mxu0 0.0
    %199 = vmatpush.msra.mxu0 0.0
    %200 = vmatpush.msra.mxu0 0.0
    %201 = vmatpush.msra.mxu0 0.0
    %202 = vmatpush.msra.mxu0 0.0
    %203 = vmatpush.msra.mxu0 0.0
    %204 = vmatpush.msra.mxu0 0.0
    %205 = vmatpush.msra.mxu0 %v104
    %206 = vmatmul.f32.gmra.mxu0 %v76
    %v207 = vpop.f32.mrf.mxu0
    %v208 = vadd.f32 %v59, %v207
    %209 = vmatmul.f32.gmra.mxu0 %v79
    %v210 = vpop.f32.mrf.mxu0
    %v211 = vadd.f32 %v59, %v210
    %212 = vmatmul.f32.gmra.mxu0 %v82
    %v213 = vpop.f32.mrf.mxu0
    %v214 = vadd.f32 %v59, %v213
    %215 = vmatmul.f32.gmra.mxu0 %v85
    %v216 = vpop.f32.mrf.mxu0
    %v217 = vadd.f32 %v59, %v216
    %218 = vmatmul.f32.gmra.mxu0 %v88
    %v219 = vpop.f32.mrf.mxu0
    %v220 = vadd.f32 %v59, %v219
    %221 = vmatmul.f32.gmra.mxu0 %v91
    %v222 = vpop.f32.mrf.mxu0
    %v223 = vadd.f32 %v59, %v222
    %224 = vmatmul.f32.gmra.mxu0 %v94
    %v225 = vpop.f32.mrf.mxu0
    %v226 = vadd.f32 %v59, %v225
    %227 = vmatmul.f32.gmra.mxu0 %v97
    %v228 = vpop.f32.mrf.mxu0
    %v229 = vadd.f32 %v59, %v228
    %230 = vdwg.mxu0
    %231 = vmatpush.msra.mxu0 0.0
    %232 = vmatpush.msra.mxu0 0.0
    %233 = vmatpush.msra.mxu0 0.0
    %234 = vmatpush.msra.mxu0 0.0
    %235 = vmatpush.msra.mxu0 0.0
    %236 = vmatpush.msra.mxu0 0.0
    %237 = vmatpush.msra.mxu0 0.0
    %238 = vmatpush.msra.mxu0 0.0
    %239 = vmatpush.msra.mxu0 0.0
    %240 = vmatpush.msra.mxu0 0.0
    %241 = vmatpush.msra.mxu0 0.0
    %242 = vmatpush.msra.mxu0 0.0
    %243 = vmatpush.msra.mxu0 0.0
    %244 = vmatpush.msra.mxu0 0.0
    %245 = vmatpush.msra.mxu0 0.0
    %246 = vmatpush.msra.mxu0 %v106
    %247 = vmatmul.f32.gmra.mxu0 %v76
    %v248 = vpop.f32.mrf.mxu0
    %v249 = vadd.f32 %v60, %v248
    %250 = vmatmul.f32.gmra.mxu0 %v79
    %v251 = vpop.f32.mrf.mxu0
    %v252 = vadd.f32 %v60, %v251
    %253 = vmatmul.f32.gmra.mxu0 %v82
    %v254 = vpop.f32.mrf.mxu0
    %v255 = vadd.f32 %v60, %v254
    %256 = vmatmul.f32.gmra.mxu0 %v85
    %v257 = vpop.f32.mrf.mxu0
    %v258 = vadd.f32 %v60, %v257
    %259 = vmatmul.f32.gmra.mxu0 %v88
    %v260 = vpop.f32.mrf.mxu0
    %v261 = vadd.f32 %v60, %v260
    %262 = vmatmul.f32.gmra.mxu0 %v91
    %v263 = vpop.f32.mrf.mxu0
    %v264 = vadd.f32 %v60, %v263
    %265 = vmatmul.f32.gmra.mxu0 %v94
    %v266 = vpop.f32.mrf.mxu0
    %v267 = vadd.f32 %v60, %v266
    %268 = vmatmul.f32.gmra.mxu0 %v97
    %v269 = vpop.f32.mrf.mxu0
    %v270 = vadd.f32 %v60, %v269
    %271 = vdwg.mxu0
    %272 = vst [vmem:[#allocation2] sm:$0xff] %v126
    %273 = vst [vmem:[#allocation2 + $0x8] sm:$0xff] %v167
    %274 = vst [vmem:[#allocation2 + $0x10] sm:$0xff] %v208
    %275 = vst [vmem:[#allocation2 + $0x18] sm:$0xff] %v249
    %276 = vst [vmem:[#allocation2 + $0x20] sm:$0xff] %v129
    %277 = vst [vmem:[#allocation2 + $0x28] sm:$0xff] %v170
    %278 = vst [vmem:[#allocation2 + $0x30] sm:$0xff] %v211
    %279 = vst [vmem:[#allocation2 + $0x38] sm:$0xff] %v252
    %280 = vst [vmem:[#allocation2 + $0x40] sm:$0xff] %v132
    %281 = vst [vmem:[#allocation2 + $0x48] sm:$0xff] %v173
    %282 = vst [vmem:[#allocation2 + $0x50] sm:$0xff] %v214
    %283 = vst [vmem:[#allocation2 + $0x58] sm:$0xff] %v255
    %284 = vst [vmem:[#allocation2 + $0x60] sm:$0xff] %v135
    %285 = vst [vmem:[#allocation2 + $0x68] sm:$0xff] %v176
    %286 = vst [vmem:[#allocation2 + $0x70] sm:$0xff] %v217
    %287 = vst [vmem:[#allocation2 + $0x78] sm:$0xff] %v258
    %288 = vst [vmem:[#allocation2 + $0x80] sm:$0xff] %v138
    %289 = vst [vmem:[#allocation2 + $0x88] sm:$0xff] %v179
    %290 = vst [vmem:[#allocation2 + $0x90] sm:$0xff] %v220
    %291 = vst [vmem:[#allocation2 + $0x98] sm:$0xff] %v261
    %292 = vst [vmem:[#allocation2 + $0xa0] sm:$0xff] %v141
    %293 = vst [vmem:[#allocation2 + $0xa8] sm:$0xff] %v182
    %294 = vst [vmem:[#allocation2 + $0xb0] sm:$0xff] %v223
    %295 = vst [vmem:[#allocation2 + $0xb8] sm:$0xff] %v264
    %296 = vst [vmem:[#allocation2 + $0xc0] sm:$0xff] %v144
    %297 = vst [vmem:[#allocation2 + $0xc8] sm:$0xff] %v185
    %298 = vst [vmem:[#allocation2 + $0xd0] sm:$0xff] %v226
    %299 = vst [vmem:[#allocation2 + $0xd8] sm:$0xff] %v267
    %300 = vst [vmem:[#allocation2 + $0xe0] sm:$0xff] %v147
    %301 = vst [vmem:[#allocation2 + $0xe8] sm:$0xff] %v188
    %302 = vst [vmem:[#allocation2 + $0xf0] sm:$0xff] %v229
    %303 = vst [vmem:[#allocation2 + $0xf8] sm:$0xff] %v270
    %v304 = vld [vmem:[%s4] sm:$0xf]
    %v306 = vperm.slane %v304, 0
    %v307 = vperm.slane %v304, 1
    %v308 = vperm.slane %v304, 2
    %v309 = vperm.slane %v304, 3
    %s314 = smul.u32 0, 4
    %s315 = smul.addr %s314, 8
    %s316 = scalar_lea.vmem [#allocation2], %s315
    %v317 = vld [vmem:[%s316] sm:$0xff]
    %v318 = vld [vmem:[%s316 + $0x8] sm:$0xff]
    %v319 = vld [vmem:[%s316 + $0x10] sm:$0xff]
    %v320 = vld [vmem:[%s316 + $0x18] sm:$0xff]
    %v321 = vadd.f32 %v317, 0.0
    %v322 = vadd.f32 %v318, 0.0
    %v323 = vadd.f32 %v319, 0.0
    %v324 = vadd.f32 %v320, 0.0
    %v325 = vxor.u32 %v321, 2147483648
    %v326 = vmul.f32 %v325, 1.442695
    %v327 = vpow.pop %v326
    %v328 = vadd.f32 %v327, 1.0
    %v329 = vrcp.pop %v328
    %v330 = vmul.f32 %v328, %v329
    %v331 = vsub.f32 1.0, %v330
    %v332 = vmul.f32 %v329, %v331
    %v333 = vadd.f32 %v329, %v332
    %vm334 = vweird.f32 %v328
    %vm335 = vweird.f32 %v329
    %vm336 = vmor %vm334, %vm335
    %v337 = vsel %vm336, %v329, %v333
    %v338 = vand.u32 2147483647, %v328
    %vm339 = vcmp.eq.f32.partialorder %v338, 8.507059e+37
    %v340 = vand.u32 %v328, 2147483648
    %v341 = vor.u32 1.1754944e-38, %v340
    %v342 = vsel %vm339, %v341, %v337
    %v343 = vmul.f32 1.0, %v342
    %v344 = vxor.u32 %v322, 2147483648
    %v345 = vmul.f32 %v344, 1.442695
    %v346 = vpow.pop %v345
    %v347 = vadd.f32 %v346, 1.0
    %v348 = vrcp.pop %v347
    %v349 = vmul.f32 %v347, %v348
    %v350 = vsub.f32 1.0, %v349
    %v351 = vmul.f32 %v348, %v350
    %v352 = vadd.f32 %v348, %v351
    %vm353 = vweird.f32 %v347
    %vm354 = vweird.f32 %v348
    %vm355 = vmor %vm353, %vm354
    %v356 = vsel %vm355, %v348, %v352
    %v357 = vand.u32 2147483647, %v347
    %vm358 = vcmp.eq.f32.partialorder %v357, 8.507059e+37
    %v359 = vand.u32 %v347, 2147483648
    %v360 = vor.u32 1.1754944e-38, %v359
    %v361 = vsel %vm358, %v360, %v356
    %v362 = vmul.f32 1.0, %v361
    %v363 = vtanh.pop %v323
    %v364 = vxor.u32 %v324, 2147483648
    %v365 = vmul.f32 %v364, 1.442695
    %v366 = vpow.pop %v365
    %v367 = vadd.f32 %v366, 1.0
    %v368 = vrcp.pop %v367
    %v369 = vmul.f32 %v367, %v368
    %v370 = vsub.f32 1.0, %v369
    %v371 = vmul.f32 %v368, %v370
    %v372 = vadd.f32 %v368, %v371
    %vm373 = vweird.f32 %v367
    %vm374 = vweird.f32 %v368
    %vm375 = vmor %vm373, %vm374
    %v376 = vsel %vm375, %v368, %v372
    %v377 = vand.u32 2147483647, %v367
    %vm378 = vcmp.eq.f32.partialorder %v377, 8.507059e+37
    %v379 = vand.u32 %v367, 2147483648
    %v380 = vor.u32 1.1754944e-38, %v379
    %v381 = vsel %vm378, %v380, %v376
    %v382 = vmul.f32 1.0, %v381
    %v383 = vmul.f32 %v362, 0.0
    %v384 = vmul.f32 %v343, %v363
    %v385 = vadd.f32 %v383, %v384
    %v386 = vtanh.pop %v385
    %v387 = vmul.f32 %v382, %v386
    %v388 = vpack.c.bf16 %v387, %v387
    %v389 = vld [vmem:[#allocation4] sm:$0xff]
    %v390 = vld [vmem:[#allocation4 + $0x8] sm:$0xff]
    %v391 = vld [vmem:[#allocation4 + $0x10] sm:$0xff]
    %v392 = vld [vmem:[#allocation4 + $0x18] sm:$0xff]
    %v393 = vld [vmem:[#allocation4 + $0x20] sm:$0xff]
    %v394 = vld [vmem:[#allocation4 + $0x28] sm:$0xff]
    %v395 = vld [vmem:[#allocation4 + $0x30] sm:$0xff]
    %v396 = vld [vmem:[#allocation4 + $0x38] sm:$0xff]
    %v397 = vld [vmem:[#allocation4 + $0x40] sm:$0xff]
    %v398 = vld [vmem:[#allocation4 + $0x48] sm:$0xff]
    %v399 = vld [vmem:[#allocation4 + $0x50] sm:$0xff]
    %v400 = vld [vmem:[#allocation4 + $0x58] sm:$0xff]
    %v401 = vld [vmem:[#allocation4 + $0x60] sm:$0xff]
    %v402 = vld [vmem:[#allocation4 + $0x68] sm:$0xff]
    %v403 = vld [vmem:[#allocation4 + $0x70] sm:$0xff]
    %v404 = vld [vmem:[#allocation4 + $0x78] sm:$0xff]
    %v405 = vld [vmem:[#allocation4 + $0x80] sm:$0xff]
    %v406 = vld [vmem:[#allocation4 + $0x88] sm:$0xff]
    %v407 = vld [vmem:[#allocation4 + $0x90] sm:$0xff]
    %v408 = vld [vmem:[#allocation4 + $0x98] sm:$0xff]
    %v409 = vld [vmem:[#allocation4 + $0xa0] sm:$0xff]
    %v410 = vld [vmem:[#allocation4 + $0xa8] sm:$0xff]
    %v411 = vld [vmem:[#allocation4 + $0xb0] sm:$0xff]
    %v412 = vld [vmem:[#allocation4 + $0xb8] sm:$0xff]
    %v413 = vld [vmem:[#allocation4 + $0xc0] sm:$0xff]
    %v414 = vld [vmem:[#allocation4 + $0xc8] sm:$0xff]
    %v415 = vld [vmem:[#allocation4 + $0xd0] sm:$0xff]
    %v416 = vld [vmem:[#allocation4 + $0xd8] sm:$0xff]
    %v417 = vld [vmem:[#allocation4 + $0xe0] sm:$0xff]
    %v418 = vld [vmem:[#allocation4 + $0xe8] sm:$0xff]
    %v419 = vld [vmem:[#allocation4 + $0xf0] sm:$0xff]
    %v420 = vld [vmem:[#allocation4 + $0xf8] sm:$0xff]
    %v421 = vld [vmem:[#allocation4 + $0x100] sm:$0xff]
    %v422 = vld [vmem:[#allocation4 + $0x108] sm:$0xff]
    %v423 = vld [vmem:[#allocation4 + $0x110] sm:$0xff]
    %v424 = vld [vmem:[#allocation4 + $0x118] sm:$0xff]
    %v425 = vld [vmem:[#allocation4 + $0x120] sm:$0xff]
    %v426 = vld [vmem:[#allocation4 + $0x128] sm:$0xff]
    %v427 = vld [vmem:[#allocation4 + $0x130] sm:$0xff]
    %v428 = vld [vmem:[#allocation4 + $0x138] sm:$0xff]
    %v429 = vld [vmem:[#allocation4 + $0x140] sm:$0xff]
    %v430 = vld [vmem:[#allocation4 + $0x148] sm:$0xff]
    %v431 = vld [vmem:[#allocation4 + $0x150] sm:$0xff]
    %v432 = vld [vmem:[#allocation4 + $0x158] sm:$0xff]
    %v433 = vld [vmem:[#allocation4 + $0x160] sm:$0xff]
    %v434 = vld [vmem:[#allocation4 + $0x168] sm:$0xff]
    %v435 = vld [vmem:[#allocation4 + $0x170] sm:$0xff]
    %v436 = vld [vmem:[#allocation4 + $0x178] sm:$0xff]
    %v437 = vld [vmem:[#allocation4 + $0x180] sm:$0xff]
    %v438 = vld [vmem:[#allocation4 + $0x188] sm:$0xff]
    %v439 = vld [vmem:[#allocation4 + $0x190] sm:$0xff]
    %v440 = vld [vmem:[#allocation4 + $0x198] sm:$0xff]
    %v441 = vld [vmem:[#allocation4 + $0x1a0] sm:$0xff]
    %v442 = vld [vmem:[#allocation4 + $0x1a8] sm:$0xff]
    %v443 = vld [vmem:[#allocation4 + $0x1b0] sm:$0xff]
    %v444 = vld [vmem:[#allocation4 + $0x1b8] sm:$0xff]
    %v445 = vld [vmem:[#allocation4 + $0x1c0] sm:$0xff]
    %v446 = vld [vmem:[#allocation4 + $0x1c8] sm:$0xff]
    %v447 = vld [vmem:[#allocation4 + $0x1d0] sm:$0xff]
    %v448 = vld [vmem:[#allocation4 + $0x1d8] sm:$0xff]
    %v449 = vld [vmem:[#allocation4 + $0x1e0] sm:$0xff]
    %v450 = vld [vmem:[#allocation4 + $0x1e8] sm:$0xff]
    %v451 = vld [vmem:[#allocation4 + $0x1f0] sm:$0xff]
    %v452 = vld [vmem:[#allocation4 + $0x1f8] sm:$0xff]
    %v453 = vld [vmem:[#allocation4 + $0x200] sm:$0xff]
    %v454 = vld [vmem:[#allocation4 + $0x208] sm:$0xff]
    %v455 = vld [vmem:[#allocation4 + $0x210] sm:$0xff]
    %v456 = vld [vmem:[#allocation4 + $0x218] sm:$0xff]
    %v457 = vld [vmem:[#allocation4 + $0x220] sm:$0xff]
    %v458 = vld [vmem:[#allocation4 + $0x228] sm:$0xff]
    %v459 = vld [vmem:[#allocation4 + $0x230] sm:$0xff]
    %v460 = vld [vmem:[#allocation4 + $0x238] sm:$0xff]
    %v461 = vld [vmem:[#allocation4 + $0x240] sm:$0xff]
    %v462 = vld [vmem:[#allocation4 + $0x248] sm:$0xff]
    %v463 = vld [vmem:[#allocation4 + $0x250] sm:$0xff]
    %v464 = vld [vmem:[#allocation4 + $0x258] sm:$0xff]
    %v465 = vld [vmem:[#allocation4 + $0x260] sm:$0xff]
    %v466 = vld [vmem:[#allocation4 + $0x268] sm:$0xff]
    %v467 = vld [vmem:[#allocation4 + $0x270] sm:$0xff]
    %v468 = vld [vmem:[#allocation4 + $0x278] sm:$0xff]
    %v469 = vld [vmem:[#allocation4 + $0x280] sm:$0xff]
    %v470 = vld [vmem:[#allocation4 + $0x288] sm:$0xff]
    %v471 = vld [vmem:[#allocation4 + $0x290] sm:$0xff]
    %v472 = vld [vmem:[#allocation4 + $0x298] sm:$0xff]
    %v473 = vld [vmem:[#allocation4 + $0x2a0] sm:$0xff]
    %v474 = vld [vmem:[#allocation4 + $0x2a8] sm:$0xff]
    %v475 = vld [vmem:[#allocation4 + $0x2b0] sm:$0xff]
    %v476 = vld [vmem:[#allocation4 + $0x2b8] sm:$0xff]
    %v477 = vld [vmem:[#allocation4 + $0x2c0] sm:$0xff]
    %v478 = vld [vmem:[#allocation4 + $0x2c8] sm:$0xff]
    %v479 = vld [vmem:[#allocation4 + $0x2d0] sm:$0xff]
    %v480 = vld [vmem:[#allocation4 + $0x2d8] sm:$0xff]
    %v481 = vld [vmem:[#allocation4 + $0x2e0] sm:$0xff]
    %v482 = vld [vmem:[#allocation4 + $0x2e8] sm:$0xff]
    %v483 = vld [vmem:[#allocation4 + $0x2f0] sm:$0xff]
    %v484 = vld [vmem:[#allocation4 + $0x2f8] sm:$0xff]
    %v485 = vld [vmem:[#allocation4 + $0x300] sm:$0xff]
    %v486 = vld [vmem:[#allocation4 + $0x308] sm:$0xff]
    %v487 = vld [vmem:[#allocation4 + $0x310] sm:$0xff]
    %v488 = vld [vmem:[#allocation4 + $0x318] sm:$0xff]
    %v489 = vld [vmem:[#allocation4 + $0x320] sm:$0xff]
    %v490 = vld [vmem:[#allocation4 + $0x328] sm:$0xff]
    %v491 = vld [vmem:[#allocation4 + $0x330] sm:$0xff]
    %v492 = vld [vmem:[#allocation4 + $0x338] sm:$0xff]
    %v493 = vld [vmem:[#allocation4 + $0x340] sm:$0xff]
    %v494 = vld [vmem:[#allocation4 + $0x348] sm:$0xff]
    %v495 = vld [vmem:[#allocation4 + $0x350] sm:$0xff]
    %v496 = vld [vmem:[#allocation4 + $0x358] sm:$0xff]
    %v497 = vld [vmem:[#allocation4 + $0x360] sm:$0xff]
    %v498 = vld [vmem:[#allocation4 + $0x368] sm:$0xff]
    %v499 = vld [vmem:[#allocation4 + $0x370] sm:$0xff]
    %v500 = vld [vmem:[#allocation4 + $0x378] sm:$0xff]
    %v501 = vld [vmem:[#allocation4 + $0x380] sm:$0xff]
    %v502 = vld [vmem:[#allocation4 + $0x388] sm:$0xff]
    %v503 = vld [vmem:[#allocation4 + $0x390] sm:$0xff]
    %v504 = vld [vmem:[#allocation4 + $0x398] sm:$0xff]
    %v505 = vld [vmem:[#allocation4 + $0x3a0] sm:$0xff]
    %v506 = vld [vmem:[#allocation4 + $0x3a8] sm:$0xff]
    %v507 = vld [vmem:[#allocation4 + $0x3b0] sm:$0xff]
    %v508 = vld [vmem:[#allocation4 + $0x3b8] sm:$0xff]
    %v509 = vld [vmem:[#allocation4 + $0x3c0] sm:$0xff]
    %v510 = vld [vmem:[#allocation4 + $0x3c8] sm:$0xff]
    %v511 = vld [vmem:[#allocation4 + $0x3d0] sm:$0xff]
    %v512 = vld [vmem:[#allocation4 + $0x3d8] sm:$0xff]
    %v513 = vld [vmem:[#allocation4 + $0x3e0] sm:$0xff]
    %v514 = vld [vmem:[#allocation4 + $0x3e8] sm:$0xff]
    %v515 = vld [vmem:[#allocation4 + $0x3f0] sm:$0xff]
    %v516 = vld [vmem:[#allocation4 + $0x3f8] sm:$0xff]
    %v645 = vunpack.c.l.b16 %v389
    %v646 = vunpack.c.h.b16 %v389
    %v647 = vunpack.c.l.b16 %v390
    %v648 = vunpack.c.h.b16 %v390
    %v649 = vunpack.c.l.b16 %v391
    %v650 = vunpack.c.h.b16 %v391
    %v651 = vunpack.c.l.b16 %v392
    %v652 = vunpack.c.h.b16 %v392
    %v653 = vunpack.c.l.b16 %v393
    %v654 = vunpack.c.h.b16 %v393
    %v655 = vunpack.c.l.b16 %v394
    %v656 = vunpack.c.h.b16 %v394
    %v657 = vunpack.c.l.b16 %v395
    %v658 = vunpack.c.h.b16 %v395
    %v659 = vunpack.c.l.b16 %v396
    %v660 = vunpack.c.h.b16 %v396
    %v661 = vunpack.c.l.b16 %v397
    %v662 = vunpack.c.h.b16 %v397
    %v663 = vunpack.c.l.b16 %v398
    %v664 = vunpack.c.h.b16 %v398
    %v665 = vunpack.c.l.b16 %v399
    %v666 = vunpack.c.h.b16 %v399
    %v667 = vunpack.c.l.b16 %v400
    %v668 = vunpack.c.h.b16 %v400
    %v669 = vunpack.c.l.b16 %v401
    %v670 = vunpack.c.h.b16 %v401
    %v671 = vunpack.c.l.b16 %v402
    %v672 = vunpack.c.h.b16 %v402
    %v673 = vunpack.c.l.b16 %v403
    %v674 = vunpack.c.h.b16 %v403
    %v675 = vunpack.c.l.b16 %v404
    %v676 = vunpack.c.h.b16 %v404
    %v677 = vunpack.c.l.b16 %v405
    %v678 = vunpack.c.h.b16 %v405
    %v679 = vunpack.c.l.b16 %v406
    %v680 = vunpack.c.h.b16 %v406
    %v681 = vunpack.c.l.b16 %v407
    %v682 = vunpack.c.h.b16 %v407
    %v683 = vunpack.c.l.b16 %v408
    %v684 = vunpack.c.h.b16 %v408
    %v685 = vunpack.c.l.b16 %v409
    %v686 = vunpack.c.h.b16 %v409
    %v687 = vunpack.c.l.b16 %v410
    %v688 = vunpack.c.h.b16 %v410
    %v689 = vunpack.c.l.b16 %v411
    %v690 = vunpack.c.h.b16 %v411
    %v691 = vunpack.c.l.b16 %v412
    %v692 = vunpack.c.h.b16 %v412
    %v693 = vunpack.c.l.b16 %v413
    %v694 = vunpack.c.h.b16 %v413
    %v695 = vunpack.c.l.b16 %v414
    %v696 = vunpack.c.h.b16 %v414
    %v697 = vunpack.c.l.b16 %v415
    %v698 = vunpack.c.h.b16 %v415
    %v699 = vunpack.c.l.b16 %v416
    %v700 = vunpack.c.h.b16 %v416
    %v701 = vunpack.c.l.b16 %v417
    %v702 = vunpack.c.h.b16 %v417
    %v703 = vunpack.c.l.b16 %v418
    %v704 = vunpack.c.h.b16 %v418
    %v705 = vunpack.c.l.b16 %v419
    %v706 = vunpack.c.h.b16 %v419
    %v707 = vunpack.c.l.b16 %v420
    %v708 = vunpack.c.h.b16 %v420
    %v709 = vunpack.c.l.b16 %v421
    %v710 = vunpack.c.h.b16 %v421
    %v711 = vunpack.c.l.b16 %v422
    %v712 = vunpack.c.h.b16 %v422
    %v713 = vunpack.c.l.b16 %v423
    %v714 = vunpack.c.h.b16 %v423
    %v715 = vunpack.c.l.b16 %v424
    %v716 = vunpack.c.h.b16 %v424
    %v717 = vunpack.c.l.b16 %v425
    %v718 = vunpack.c.h.b16 %v425
    %v719 = vunpack.c.l.b16 %v426
    %v720 = vunpack.c.h.b16 %v426
    %v721 = vunpack.c.l.b16 %v427
    %v722 = vunpack.c.h.b16 %v427
    %v723 = vunpack.c.l.b16 %v428
    %v724 = vunpack.c.h.b16 %v428
    %v725 = vunpack.c.l.b16 %v429
    %v726 = vunpack.c.h.b16 %v429
    %v727 = vunpack.c.l.b16 %v430
    %v728 = vunpack.c.h.b16 %v430
    %v729 = vunpack.c.l.b16 %v431
    %v730 = vunpack.c.h.b16 %v431
    %v731 = vunpack.c.l.b16 %v432
    %v732 = vunpack.c.h.b16 %v432
    %v733 = vunpack.c.l.b16 %v433
    %v734 = vunpack.c.h.b16 %v433
    %v735 = vunpack.c.l.b16 %v434
    %v736 = vunpack.c.h.b16 %v434
    %v737 = vunpack.c.l.b16 %v435
    %v738 = vunpack.c.h.b16 %v435
    %v739 = vunpack.c.l.b16 %v436
    %v740 = vunpack.c.h.b16 %v436
    %v741 = vunpack.c.l.b16 %v437
    %v742 = vunpack.c.h.b16 %v437
    %v743 = vunpack.c.l.b16 %v438
    %v744 = vunpack.c.h.b16 %v438
    %v745 = vunpack.c.l.b16 %v439
    %v746 = vunpack.c.h.b16 %v439
    %v747 = vunpack.c.l.b16 %v440
    %v748 = vunpack.c.h.b16 %v440
    %v749 = vunpack.c.l.b16 %v441
    %v750 = vunpack.c.h.b16 %v441
    %v751 = vunpack.c.l.b16 %v442
    %v752 = vunpack.c.h.b16 %v442
    %v753 = vunpack.c.l.b16 %v443
    %v754 = vunpack.c.h.b16 %v443
    %v755 = vunpack.c.l.b16 %v444
    %v756 = vunpack.c.h.b16 %v444
    %v757 = vunpack.c.l.b16 %v445
    %v758 = vunpack.c.h.b16 %v445
    %v759 = vunpack.c.l.b16 %v446
    %v760 = vunpack.c.h.b16 %v446
    %v761 = vunpack.c.l.b16 %v447
    %v762 = vunpack.c.h.b16 %v447
    %v763 = vunpack.c.l.b16 %v448
    %v764 = vunpack.c.h.b16 %v448
    %v765 = vunpack.c.l.b16 %v449
    %v766 = vunpack.c.h.b16 %v449
    %v767 = vunpack.c.l.b16 %v450
    %v768 = vunpack.c.h.b16 %v450
    %v769 = vunpack.c.l.b16 %v451
    %v770 = vunpack.c.h.b16 %v451
    %v771 = vunpack.c.l.b16 %v452
    %v772 = vunpack.c.h.b16 %v452
    %v773 = vunpack.c.l.b16 %v453
    %v774 = vunpack.c.h.b16 %v453
    %v775 = vunpack.c.l.b16 %v454
    %v776 = vunpack.c.h.b16 %v454
    %v777 = vunpack.c.l.b16 %v455
    %v778 = vunpack.c.h.b16 %v455
    %v779 = vunpack.c.l.b16 %v456
    %v780 = vunpack.c.h.b16 %v456
    %v781 = vunpack.c.l.b16 %v457
    %v782 = vunpack.c.h.b16 %v457
    %v783 = vunpack.c.l.b16 %v458
    %v784 = vunpack.c.h.b16 %v458
    %v785 = vunpack.c.l.b16 %v459
    %v786 = vunpack.c.h.b16 %v459
    %v787 = vunpack.c.l.b16 %v460
    %v788 = vunpack.c.h.b16 %v460
    %v789 = vunpack.c.l.b16 %v461
    %v790 = vunpack.c.h.b16 %v461
    %v791 = vunpack.c.l.b16 %v462
    %v792 = vunpack.c.h.b16 %v462
    %v793 = vunpack.c.l.b16 %v463
    %v794 = vunpack.c.h.b16 %v463
    %v795 = vunpack.c.l.b16 %v464
    %v796 = vunpack.c.h.b16 %v464
    %v797 = vunpack.c.l.b16 %v465
    %v798 = vunpack.c.h.b16 %v465
    %v799 = vunpack.c.l.b16 %v466
    %v800 = vunpack.c.h.b16 %v466
    %v801 = vunpack.c.l.b16 %v467
    %v802 = vunpack.c.h.b16 %v467
    %v803 = vunpack.c.l.b16 %v468
    %v804 = vunpack.c.h.b16 %v468
    %v805 = vunpack.c.l.b16 %v469
    %v806 = vunpack.c.h.b16 %v469
    %v807 = vunpack.c.l.b16 %v470
    %v808 = vunpack.c.h.b16 %v470
    %v809 = vunpack.c.l.b16 %v471
    %v810 = vunpack.c.h.b16 %v471
    %v811 = vunpack.c.l.b16 %v472
    %v812 = vunpack.c.h.b16 %v472
    %v813 = vunpack.c.l.b16 %v473
    %v814 = vunpack.c.h.b16 %v473
    %v815 = vunpack.c.l.b16 %v474
    %v816 = vunpack.c.h.b16 %v474
    %v817 = vunpack.c.l.b16 %v475
    %v818 = vunpack.c.h.b16 %v475
    %v819 = vunpack.c.l.b16 %v476
    %v820 = vunpack.c.h.b16 %v476
    %v821 = vunpack.c.l.b16 %v477
    %v822 = vunpack.c.h.b16 %v477
    %v823 = vunpack.c.l.b16 %v478
    %v824 = vunpack.c.h.b16 %v478
    %v825 = vunpack.c.l.b16 %v479
    %v826 = vunpack.c.h.b16 %v479
    %v827 = vunpack.c.l.b16 %v480
    %v828 = vunpack.c.h.b16 %v480
    %v829 = vunpack.c.l.b16 %v481
    %v830 = vunpack.c.h.b16 %v481
    %v831 = vunpack.c.l.b16 %v482
    %v832 = vunpack.c.h.b16 %v482
    %v833 = vunpack.c.l.b16 %v483
    %v834 = vunpack.c.h.b16 %v483
    %v835 = vunpack.c.l.b16 %v484
    %v836 = vunpack.c.h.b16 %v484
    %v837 = vunpack.c.l.b16 %v485
    %v838 = vunpack.c.h.b16 %v485
    %v839 = vunpack.c.l.b16 %v486
    %v840 = vunpack.c.h.b16 %v486
    %v841 = vunpack.c.l.b16 %v487
    %v842 = vunpack.c.h.b16 %v487
    %v843 = vunpack.c.l.b16 %v488
    %v844 = vunpack.c.h.b16 %v488
    %v845 = vunpack.c.l.b16 %v489
    %v846 = vunpack.c.h.b16 %v489
    %v847 = vunpack.c.l.b16 %v490
    %v848 = vunpack.c.h.b16 %v490
    %v849 = vunpack.c.l.b16 %v491
    %v850 = vunpack.c.h.b16 %v491
    %v851 = vunpack.c.l.b16 %v492
    %v852 = vunpack.c.h.b16 %v492
    %v853 = vunpack.c.l.b16 %v493
    %v854 = vunpack.c.h.b16 %v493
    %v855 = vunpack.c.l.b16 %v494
    %v856 = vunpack.c.h.b16 %v494
    %v857 = vunpack.c.l.b16 %v495
    %v858 = vunpack.c.h.b16 %v495
    %v859 = vunpack.c.l.b16 %v496
    %v860 = vunpack.c.h.b16 %v496
    %v861 = vunpack.c.l.b16 %v497
    %v862 = vunpack.c.h.b16 %v497
    %v863 = vunpack.c.l.b16 %v498
    %v864 = vunpack.c.h.b16 %v498
    %v865 = vunpack.c.l.b16 %v499
    %v866 = vunpack.c.h.b16 %v499
    %v867 = vunpack.c.l.b16 %v500
    %v868 = vunpack.c.h.b16 %v500
    %v869 = vunpack.c.l.b16 %v501
    %v870 = vunpack.c.h.b16 %v501
    %v871 = vunpack.c.l.b16 %v502
    %v872 = vunpack.c.h.b16 %v502
    %v873 = vunpack.c.l.b16 %v503
    %v874 = vunpack.c.h.b16 %v503
    %v875 = vunpack.c.l.b16 %v504
    %v876 = vunpack.c.h.b16 %v504
    %v877 = vunpack.c.l.b16 %v505
    %v878 = vunpack.c.h.b16 %v505
    %v879 = vunpack.c.l.b16 %v506
    %v880 = vunpack.c.h.b16 %v506
    %v881 = vunpack.c.l.b16 %v507
    %v882 = vunpack.c.h.b16 %v507
    %v883 = vunpack.c.l.b16 %v508
    %v884 = vunpack.c.h.b16 %v508
    %v885 = vunpack.c.l.b16 %v509
    %v886 = vunpack.c.h.b16 %v509
    %v887 = vunpack.c.l.b16 %v510
    %v888 = vunpack.c.h.b16 %v510
    %v889 = vunpack.c.l.b16 %v511
    %v890 = vunpack.c.h.b16 %v511
    %v891 = vunpack.c.l.b16 %v512
    %v892 = vunpack.c.h.b16 %v512
    %v893 = vunpack.c.l.b16 %v513
    %v894 = vunpack.c.h.b16 %v513
    %v895 = vunpack.c.l.b16 %v514
    %v896 = vunpack.c.h.b16 %v514
    %v897 = vunpack.c.l.b16 %v515
    %v898 = vunpack.c.h.b16 %v515
    %v899 = vunpack.c.l.b16 %v516
    %v900 = vunpack.c.h.b16 %v516
    %v901 = vpack.c.b16 %v653, %v645
    %v902 = vpack.c.b16 %v654, %v646
    %v903 = vpack.c.b16 %v655, %v647
    %v904 = vpack.c.b16 %v656, %v648
    %v905 = vpack.c.b16 %v657, %v649
    %v906 = vpack.c.b16 %v658, %v650
    %v907 = vpack.c.b16 %v659, %v651
    %v908 = vpack.c.b16 %v660, %v652
    %v909 = vpack.c.b16 %v669, %v661
    %v910 = vpack.c.b16 %v670, %v662
    %v911 = vpack.c.b16 %v671, %v663
    %v912 = vpack.c.b16 %v672, %v664
    %v913 = vpack.c.b16 %v673, %v665
    %v914 = vpack.c.b16 %v674, %v666
    %v915 = vpack.c.b16 %v675, %v667
    %v916 = vpack.c.b16 %v676, %v668
    %v917 = vpack.c.b16 %v685, %v677
    %v918 = vpack.c.b16 %v686, %v678
    %v919 = vpack.c.b16 %v687, %v679
    %v920 = vpack.c.b16 %v688, %v680
    %v921 = vpack.c.b16 %v689, %v681
    %v922 = vpack.c.b16 %v690, %v682
    %v923 = vpack.c.b16 %v691, %v683
    %v924 = vpack.c.b16 %v692, %v684
    %v925 = vpack.c.b16 %v701, %v693
    %v926 = vpack.c.b16 %v702, %v694
    %v927 = vpack.c.b16 %v703, %v695
    %v928 = vpack.c.b16 %v704, %v696
    %v929 = vpack.c.b16 %v705, %v697
    %v930 = vpack.c.b16 %v706, %v698
    %v931 = vpack.c.b16 %v707, %v699
    %v932 = vpack.c.b16 %v708, %v700
    %v933 = vpack.c.b16 %v717, %v709
    %v934 = vpack.c.b16 %v718, %v710
    %v935 = vpack.c.b16 %v719, %v711
    %v936 = vpack.c.b16 %v720, %v712
    %v937 = vpack.c.b16 %v721, %v713
    %v938 = vpack.c.b16 %v722, %v714
    %v939 = vpack.c.b16 %v723, %v715
    %v940 = vpack.c.b16 %v724, %v716
    %v941 = vpack.c.b16 %v733, %v725
    %v942 = vpack.c.b16 %v734, %v726
    %v943 = vpack.c.b16 %v735, %v727
    %v944 = vpack.c.b16 %v736, %v728
    %v945 = vpack.c.b16 %v737, %v729
    %v946 = vpack.c.b16 %v738, %v730
    %v947 = vpack.c.b16 %v739, %v731
    %v948 = vpack.c.b16 %v740, %v732
    %v949 = vpack.c.b16 %v749, %v741
    %v950 = vpack.c.b16 %v750, %v742
    %v951 = vpack.c.b16 %v751, %v743
    %v952 = vpack.c.b16 %v752, %v744
    %v953 = vpack.c.b16 %v753, %v745
    %v954 = vpack.c.b16 %v754, %v746
    %v955 = vpack.c.b16 %v755, %v747
    %v956 = vpack.c.b16 %v756, %v748
    %v957 = vpack.c.b16 %v765, %v757
    %v958 = vpack.c.b16 %v766, %v758
    %v959 = vpack.c.b16 %v767, %v759
    %v960 = vpack.c.b16 %v768, %v760
    %v961 = vpack.c.b16 %v769, %v761
    %v962 = vpack.c.b16 %v770, %v762
    %v963 = vpack.c.b16 %v771, %v763
    %v964 = vpack.c.b16 %v772, %v764
    %v965 = vpack.c.b16 %v781, %v773
    %v966 = vpack.c.b16 %v782, %v774
    %v967 = vpack.c.b16 %v783, %v775
    %v968 = vpack.c.b16 %v784, %v776
    %v969 = vpack.c.b16 %v785, %v777
    %v970 = vpack.c.b16 %v786, %v778
    %v971 = vpack.c.b16 %v787, %v779
    %v972 = vpack.c.b16 %v788, %v780
    %v973 = vpack.c.b16 %v797, %v789
    %v974 = vpack.c.b16 %v798, %v790
    %v975 = vpack.c.b16 %v799, %v791
    %v976 = vpack.c.b16 %v800, %v792
    %v977 = vpack.c.b16 %v801, %v793
    %v978 = vpack.c.b16 %v802, %v794
    %v979 = vpack.c.b16 %v803, %v795
    %v980 = vpack.c.b16 %v804, %v796
    %v981 = vpack.c.b16 %v813, %v805
    %v982 = vpack.c.b16 %v814, %v806
    %v983 = vpack.c.b16 %v815, %v807
    %v984 = vpack.c.b16 %v816, %v808
    %v985 = vpack.c.b16 %v817, %v809
    %v986 = vpack.c.b16 %v818, %v810
    %v987 = vpack.c.b16 %v819, %v811
    %v988 = vpack.c.b16 %v820, %v812
    %v989 = vpack.c.b16 %v829, %v821
    %v990 = vpack.c.b16 %v830, %v822
    %v991 = vpack.c.b16 %v831, %v823
    %v992 = vpack.c.b16 %v832, %v824
    %v993 = vpack.c.b16 %v833, %v825
    %v994 = vpack.c.b16 %v834, %v826
    %v995 = vpack.c.b16 %v835, %v827
    %v996 = vpack.c.b16 %v836, %v828
    %v997 = vpack.c.b16 %v845, %v837
    %v998 = vpack.c.b16 %v846, %v838
    %v999 = vpack.c.b16 %v847, %v839
    %v1000 = vpack.c.b16 %v848, %v840
    %v1001 = vpack.c.b16 %v849, %v841
    %v1002 = vpack.c.b16 %v850, %v842
    %v1003 = vpack.c.b16 %v851, %v843
    %v1004 = vpack.c.b16 %v852, %v844
    %v1005 = vpack.c.b16 %v861, %v853
    %v1006 = vpack.c.b16 %v862, %v854
    %v1007 = vpack.c.b16 %v863, %v855
    %v1008 = vpack.c.b16 %v864, %v856
    %v1009 = vpack.c.b16 %v865, %v857
    %v1010 = vpack.c.b16 %v866, %v858
    %v1011 = vpack.c.b16 %v867, %v859
    %v1012 = vpack.c.b16 %v868, %v860
    %v1013 = vpack.c.b16 %v877, %v869
    %v1014 = vpack.c.b16 %v878, %v870
    %v1015 = vpack.c.b16 %v879, %v871
    %v1016 = vpack.c.b16 %v880, %v872
    %v1017 = vpack.c.b16 %v881, %v873
    %v1018 = vpack.c.b16 %v882, %v874
    %v1019 = vpack.c.b16 %v883, %v875
    %v1020 = vpack.c.b16 %v884, %v876
    %v1021 = vpack.c.b16 %v893, %v885
    %v1022 = vpack.c.b16 %v894, %v886
    %v1023 = vpack.c.b16 %v895, %v887
    %v1024 = vpack.c.b16 %v896, %v888
    %v1025 = vpack.c.b16 %v897, %v889
    %v1026 = vpack.c.b16 %v898, %v890
    %v1027 = vpack.c.b16 %v899, %v891
    %v1028 = vpack.c.b16 %v900, %v892
    %1157 = vmatpush.bf16.msra.mxu0 %v957
    %1158 = vmatpush.bf16.msra.mxu0 %v949
    %1159 = vmatpush.bf16.msra.mxu0 %v941
    %1160 = vmatpush.bf16.msra.mxu0 %v933
    %1161 = vmatpush.bf16.msra.mxu0 %v925
    %1162 = vmatpush.bf16.msra.mxu0 %v917
    %1163 = vmatpush.bf16.msra.mxu0 %v909
    %1164 = vmatpush.bf16.msra.mxu0 %v901
    %1165 = vmatmul.bf16.gmra.mxu0 %v388
    %v1166 = vpop.f32.mrf.mxu0
    %v1167 = vadd.f32 0.0, %v1166
    %v1168 = vpop.f32.mrf.mxu0
    %1169 = vdwg.mxu0
    %1170 = vmatpush.bf16.msra.mxu0 %v1021
    %1171 = vmatpush.bf16.msra.mxu0 %v1013
    %1172 = vmatpush.bf16.msra.mxu0 %v1005
    %1173 = vmatpush.bf16.msra.mxu0 %v997
    %1174 = vmatpush.bf16.msra.mxu0 %v989
    %1175 = vmatpush.bf16.msra.mxu0 %v981
    %1176 = vmatpush.bf16.msra.mxu0 %v973
    %1177 = vmatpush.bf16.msra.mxu0 %v965
    %1178 = vmatmul.bf16.gmra.mxu0 0
    %v1179 = vpop.f32.mrf.mxu0
    %v1180 = vadd.f32 %v1167, %v1179
    %v1181 = vpop.f32.mrf.mxu0
    %1182 = vdwg.mxu0
    %1183 = vmatpush.bf16.msra.mxu0 %v958
    %1184 = vmatpush.bf16.msra.mxu0 %v950
    %1185 = vmatpush.bf16.msra.mxu0 %v942
    %1186 = vmatpush.bf16.msra.mxu0 %v934
    %1187 = vmatpush.bf16.msra.mxu0 %v926
    %1188 = vmatpush.bf16.msra.mxu0 %v918
    %1189 = vmatpush.bf16.msra.mxu0 %v910
    %1190 = vmatpush.bf16.msra.mxu0 %v902
    %1191 = vmatmul.bf16.gmra.mxu0 %v388
    %v1192 = vpop.f32.mrf.mxu0
    %v1193 = vadd.f32 0.0, %v1192
    %v1194 = vpop.f32.mrf.mxu0
    %1195 = vdwg.mxu0
    %1196 = vmatpush.bf16.msra.mxu0 %v1022
    %1197 = vmatpush.bf16.msra.mxu0 %v1014
    %1198 = vmatpush.bf16.msra.mxu0 %v1006
    %1199 = vmatpush.bf16.msra.mxu0 %v998
    %1200 = vmatpush.bf16.msra.mxu0 %v990
    %1201 = vmatpush.bf16.msra.mxu0 %v982
    %1202 = vmatpush.bf16.msra.mxu0 %v974
    %1203 = vmatpush.bf16.msra.mxu0 %v966
    %1204 = vmatmul.bf16.gmra.mxu0 0
    %v1205 = vpop.f32.mrf.mxu0
    %v1206 = vadd.f32 %v1193, %v1205
    %v1207 = vpop.f32.mrf.mxu0
    %1208 = vdwg.mxu0
    %1209 = vmatpush.bf16.msra.mxu0 %v959
    %1210 = vmatpush.bf16.msra.mxu0 %v951
    %1211 = vmatpush.bf16.msra.mxu0 %v943
    %1212 = vmatpush.bf16.msra.mxu0 %v935
    %1213 = vmatpush.bf16.msra.mxu0 %v927
    %1214 = vmatpush.bf16.msra.mxu0 %v919
    %1215 = vmatpush.bf16.msra.mxu0 %v911
    %1216 = vmatpush.bf16.msra.mxu0 %v903
    %1217 = vmatmul.bf16.gmra.mxu0 %v388
    %v1218 = vpop.f32.mrf.mxu0
    %v1219 = vadd.f32 0.0, %v1218
    %v1220 = vpop.f32.mrf.mxu0
    %1221 = vdwg.mxu0
    %1222 = vmatpush.bf16.msra.mxu0 %v1023
    %1223 = vmatpush.bf16.msra.mxu0 %v1015
    %1224 = vmatpush.bf16.msra.mxu0 %v1007
    %1225 = vmatpush.bf16.msra.mxu0 %v999
    %1226 = vmatpush.bf16.msra.mxu0 %v991
    %1227 = vmatpush.bf16.msra.mxu0 %v983
    %1228 = vmatpush.bf16.msra.mxu0 %v975
    %1229 = vmatpush.bf16.msra.mxu0 %v967
    %1230 = vmatmul.bf16.gmra.mxu0 0
    %v1231 = vpop.f32.mrf.mxu0
    %v1232 = vadd.f32 %v1219, %v1231
    %v1233 = vpop.f32.mrf.mxu0
    %1234 = vdwg.mxu0
    %1235 = vmatpush.bf16.msra.mxu0 %v960
    %1236 = vmatpush.bf16.msra.mxu0 %v952
    %1237 = vmatpush.bf16.msra.mxu0 %v944
    %1238 = vmatpush.bf16.msra.mxu0 %v936
    %1239 = vmatpush.bf16.msra.mxu0 %v928
    %1240 = vmatpush.bf16.msra.mxu0 %v920
    %1241 = vmatpush.bf16.msra.mxu0 %v912
    %1242 = vmatpush.bf16.msra.mxu0 %v904
    %1243 = vmatmul.bf16.gmra.mxu0 %v388
    %v1244 = vpop.f32.mrf.mxu0
    %v1245 = vadd.f32 0.0, %v1244
    %v1246 = vpop.f32.mrf.mxu0
    %1247 = vdwg.mxu0
    %1248 = vmatpush.bf16.msra.mxu0 %v1024
    %1249 = vmatpush.bf16.msra.mxu0 %v1016
    %1250 = vmatpush.bf16.msra.mxu0 %v1008
    %1251 = vmatpush.bf16.msra.mxu0 %v1000
    %1252 = vmatpush.bf16.msra.mxu0 %v992
    %1253 = vmatpush.bf16.msra.mxu0 %v984
    %1254 = vmatpush.bf16.msra.mxu0 %v976
    %1255 = vmatpush.bf16.msra.mxu0 %v968
    %1256 = vmatmul.bf16.gmra.mxu0 0
    %v1257 = vpop.f32.mrf.mxu0
    %v1258 = vadd.f32 %v1245, %v1257
    %v1259 = vpop.f32.mrf.mxu0
    %1260 = vdwg.mxu0
    %1261 = vmatpush.bf16.msra.mxu0 %v961
    %1262 = vmatpush.bf16.msra.mxu0 %v953
    %1263 = vmatpush.bf16.msra.mxu0 %v945
    %1264 = vmatpush.bf16.msra.mxu0 %v937
    %1265 = vmatpush.bf16.msra.mxu0 %v929
    %1266 = vmatpush.bf16.msra.mxu0 %v921
    %1267 = vmatpush.bf16.msra.mxu0 %v913
    %1268 = vmatpush.bf16.msra.mxu0 %v905
    %1269 = vmatmul.bf16.gmra.mxu0 %v388
    %v1270 = vpop.f32.mrf.mxu0
    %v1271 = vadd.f32 0.0, %v1270
    %v1272 = vpop.f32.mrf.mxu0
    %1273 = vdwg.mxu0
    %1274 = vmatpush.bf16.msra.mxu0 %v1025
    %1275 = vmatpush.bf16.msra.mxu0 %v1017
    %1276 = vmatpush.bf16.msra.mxu0 %v1009
    %1277 = vmatpush.bf16.msra.mxu0 %v1001
    %1278 = vmatpush.bf16.msra.mxu0 %v993
    %1279 = vmatpush.bf16.msra.mxu0 %v985
    %1280 = vmatpush.bf16.msra.mxu0 %v977
    %1281 = vmatpush.bf16.msra.mxu0 %v969
    %1282 = vmatmul.bf16.gmra.mxu0 0
    %v1283 = vpop.f32.mrf.mxu0
    %v1284 = vadd.f32 %v1271, %v1283
    %v1285 = vpop.f32.mrf.mxu0
    %1286 = vdwg.mxu0
    %1287 = vmatpush.bf16.msra.mxu0 %v962
    %1288 = vmatpush.bf16.msra.mxu0 %v954
    %1289 = vmatpush.bf16.msra.mxu0 %v946
    %1290 = vmatpush.bf16.msra.mxu0 %v938
    %1291 = vmatpush.bf16.msra.mxu0 %v930
    %1292 = vmatpush.bf16.msra.mxu0 %v922
    %1293 = vmatpush.bf16.msra.mxu0 %v914
    %1294 = vmatpush.bf16.msra.mxu0 %v906
    %1295 = vmatmul.bf16.gmra.mxu0 %v388
    %v1296 = vpop.f32.mrf.mxu0
    %v1297 = vadd.f32 0.0, %v1296
    %v1298 = vpop.f32.mrf.mxu0
    %1299 = vdwg.mxu0
    %1300 = vmatpush.bf16.msra.mxu0 %v1026
    %1301 = vmatpush.bf16.msra.mxu0 %v1018
    %1302 = vmatpush.bf16.msra.mxu0 %v1010
    %1303 = vmatpush.bf16.msra.mxu0 %v1002
    %1304 = vmatpush.bf16.msra.mxu0 %v994
    %1305 = vmatpush.bf16.msra.mxu0 %v986
    %1306 = vmatpush.bf16.msra.mxu0 %v978
    %1307 = vmatpush.bf16.msra.mxu0 %v970
    %1308 = vmatmul.bf16.gmra.mxu0 0
    %v1309 = vpop.f32.mrf.mxu0
    %v1310 = vadd.f32 %v1297, %v1309
    %v1311 = vpop.f32.mrf.mxu0
    %1312 = vdwg.mxu0
    %1313 = vmatpush.bf16.msra.mxu0 %v963
    %1314 = vmatpush.bf16.msra.mxu0 %v955
    %1315 = vmatpush.bf16.msra.mxu0 %v947
    %1316 = vmatpush.bf16.msra.mxu0 %v939
    %1317 = vmatpush.bf16.msra.mxu0 %v931
    %1318 = vmatpush.bf16.msra.mxu0 %v923
    %1319 = vmatpush.bf16.msra.mxu0 %v915
    %1320 = vmatpush.bf16.msra.mxu0 %v907
    %1321 = vmatmul.bf16.gmra.mxu0 %v388
    %v1322 = vpop.f32.mrf.mxu0
    %v1323 = vadd.f32 0.0, %v1322
    %v1324 = vpop.f32.mrf.mxu0
    %1325 = vdwg.mxu0
    %1326 = vmatpush.bf16.msra.mxu0 %v1027
    %1327 = vmatpush.bf16.msra.mxu0 %v1019
    %1328 = vmatpush.bf16.msra.mxu0 %v1011
    %1329 = vmatpush.bf16.msra.mxu0 %v1003
    %1330 = vmatpush.bf16.msra.mxu0 %v995
    %1331 = vmatpush.bf16.msra.mxu0 %v987
    %1332 = vmatpush.bf16.msra.mxu0 %v979
    %1333 = vmatpush.bf16.msra.mxu0 %v971
    %1334 = vmatmul.bf16.gmra.mxu0 0
    %v1335 = vpop.f32.mrf.mxu0
    %v1336 = vadd.f32 %v1323, %v1335
    %v1337 = vpop.f32.mrf.mxu0
    %1338 = vdwg.mxu0
    %1339 = vmatpush.bf16.msra.mxu0 %v964
    %1340 = vmatpush.bf16.msra.mxu0 %v956
    %1341 = vmatpush.bf16.msra.mxu0 %v948
    %1342 = vmatpush.bf16.msra.mxu0 %v940
    %1343 = vmatpush.bf16.msra.mxu0 %v932
    %1344 = vmatpush.bf16.msra.mxu0 %v924
    %1345 = vmatpush.bf16.msra.mxu0 %v916
    %1346 = vmatpush.bf16.msra.mxu0 %v908
    %1347 = vmatmul.bf16.gmra.mxu0 %v388
    %v1348 = vpop.f32.mrf.mxu0
    %v1349 = vadd.f32 0.0, %v1348
    %v1350 = vpop.f32.mrf.mxu0
    %1351 = vdwg.mxu0
    %1352 = vmatpush.bf16.msra.mxu0 %v1028
    %1353 = vmatpush.bf16.msra.mxu0 %v1020
    %1354 = vmatpush.bf16.msra.mxu0 %v1012
    %1355 = vmatpush.bf16.msra.mxu0 %v1004
    %1356 = vmatpush.bf16.msra.mxu0 %v996
    %1357 = vmatpush.bf16.msra.mxu0 %v988
    %1358 = vmatpush.bf16.msra.mxu0 %v980
    %1359 = vmatpush.bf16.msra.mxu0 %v972
    %1360 = vmatmul.bf16.gmra.mxu0 0
    %v1361 = vpop.f32.mrf.mxu0
    %v1362 = vadd.f32 %v1349, %v1361
    %v1363 = vpop.f32.mrf.mxu0
    %1364 = vdwg.mxu0
    %v1365 = vadd.f32 %v1284, %v306
    %v1366 = vadd.f32 %v1310, %v307
    %v1367 = vadd.f32 %v1336, %v308
    %v1368 = vadd.f32 %v1362, %v309
    %v1369 = vxor.u32 %v1365, 2147483648
    %v1370 = vmul.f32 %v1369, 1.442695
    %v1371 = vpow.pop %v1370
    %v1372 = vadd.f32 %v1371, 1.0
    %v1373 = vrcp.pop %v1372
    %v1374 = vmul.f32 %v1372, %v1373
    %v1375 = vsub.f32 1.0, %v1374
    %v1376 = vmul.f32 %v1373, %v1375
    %v1377 = vadd.f32 %v1373, %v1376
    %vm1378 = vweird.f32 %v1372
    %vm1379 = vweird.f32 %v1373
    %vm1380 = vmor %vm1378, %vm1379
    %v1381 = vsel %vm1380, %v1373, %v1377
    %v1382 = vand.u32 2147483647, %v1372
    %vm1383 = vcmp.eq.f32.partialorder %v1382, 8.507059e+37
    %v1384 = vand.u32 %v1372, 2147483648
    %v1385 = vor.u32 1.1754944e-38, %v1384
    %v1386 = vsel %vm1383, %v1385, %v1381
    %v1387 = vmul.f32 1.0, %v1386
    %v1388 = vxor.u32 %v1366, 2147483648
    %v1389 = vmul.f32 %v1388, 1.442695
    %v1390 = vpow.pop %v1389
    %v1391 = vadd.f32 %v1390, 1.0
    %v1392 = vrcp.pop %v1391
    %v1393 = vmul.f32 %v1391, %v1392
    %v1394 = vsub.f32 1.0, %v1393
    %v1395 = vmul.f32 %v1392, %v1394
    %v1396 = vadd.f32 %v1392, %v1395
    %vm1397 = vweird.f32 %v1391
    %vm1398 = vweird.f32 %v1392
    %vm1399 = vmor %vm1397, %vm1398
    %v1400 = vsel %vm1399, %v1392, %v1396
    %v1401 = vand.u32 2147483647, %v1391
    %vm1402 = vcmp.eq.f32.partialorder %v1401, 8.507059e+37
    %v1403 = vand.u32 %v1391, 2147483648
    %v1404 = vor.u32 1.1754944e-38, %v1403
    %v1405 = vsel %vm1402, %v1404, %v1400
    %v1406 = vmul.f32 1.0, %v1405
    %v1407 = vtanh.pop %v1367
    %v1408 = vxor.u32 %v1368, 2147483648
    %v1409 = vmul.f32 %v1408, 1.442695
    %v1410 = vpow.pop %v1409
    %v1411 = vadd.f32 %v1410, 1.0
    %v1412 = vrcp.pop %v1411
    %v1413 = vmul.f32 %v1411, %v1412
    %v1414 = vsub.f32 1.0, %v1413
    %v1415 = vmul.f32 %v1412, %v1414
    %v1416 = vadd.f32 %v1412, %v1415
    %vm1417 = vweird.f32 %v1411
    %vm1418 = vweird.f32 %v1412
    %vm1419 = vmor %vm1417, %vm1418
    %v1420 = vsel %vm1419, %v1412, %v1416
    %v1421 = vand.u32 2147483647, %v1411
    %vm1422 = vcmp.eq.f32.partialorder %v1421, 8.507059e+37
    %v1423 = vand.u32 %v1411, 2147483648
    %v1424 = vor.u32 1.1754944e-38, %v1423
    %v1425 = vsel %vm1422, %v1424, %v1420
    %v1426 = vmul.f32 1.0, %v1425
    %v1427 = vmul.f32 %v1406, 0.0
    %v1428 = vmul.f32 %v1387, %v1407
    %v1429 = vadd.f32 %v1427, %v1428
    %v1430 = vtanh.pop %v1429
    %v1431 = vmul.f32 %v1426, %v1430
    %s1432 = smul.u32 1, 4
    %s1433 = smul.addr %s1432, 8
    %s1434 = scalar_lea.vmem [#allocation2], %s1433
    %v1435 = vld [vmem:[%s1434] sm:$0xff]
    %v1436 = vld [vmem:[%s1434 + $0x8] sm:$0xff]
    %v1437 = vld [vmem:[%s1434 + $0x10] sm:$0xff]
    %v1438 = vld [vmem:[%s1434 + $0x18] sm:$0xff]
    %v1439 = vadd.f32 %v1435, %v1180
    %v1440 = vadd.f32 %v1436, %v1206
    %v1441 = vadd.f32 %v1437, %v1232
    %v1442 = vadd.f32 %v1438, %v1258
    %v1443 = vxor.u32 %v1439, 2147483648
    %v1444 = vmul.f32 %v1443, 1.442695
    %v1445 = vpow.pop %v1444
    %v1446 = vadd.f32 %v1445, 1.0
    %v1447 = vrcp.pop %v1446
    %v1448 = vmul.f32 %v1446, %v1447
    %v1449 = vsub.f32 1.0, %v1448
    %v1450 = vmul.f32 %v1447, %v1449
    %v1451 = vadd.f32 %v1447, %v1450
    %vm1452 = vweird.f32 %v1446
    %vm1453 = vweird.f32 %v1447
    %vm1454 = vmor %vm1452, %vm1453
    %v1455 = vsel %vm1454, %v1447, %v1451
    %v1456 = vand.u32 2147483647, %v1446
    %vm1457 = vcmp.eq.f32.partialorder %v1456, 8.507059e+37
    %v1458 = vand.u32 %v1446, 2147483648
    %v1459 = vor.u32 1.1754944e-38, %v1458
    %v1460 = vsel %vm1457, %v1459, %v1455
    %v1461 = vmul.f32 1.0, %v1460
    %v1462 = vxor.u32 %v1440, 2147483648
    %v1463 = vmul.f32 %v1462, 1.442695
    %v1464 = vpow.pop %v1463
    %v1465 = vadd.f32 %v1464, 1.0
    %v1466 = vrcp.pop %v1465
    %v1467 = vmul.f32 %v1465, %v1466
    %v1468 = vsub.f32 1.0, %v1467
    %v1469 = vmul.f32 %v1466, %v1468
    %v1470 = vadd.f32 %v1466, %v1469
    %vm1471 = vweird.f32 %v1465
    %vm1472 = vweird.f32 %v1466
    %vm1473 = vmor %vm1471, %vm1472
    %v1474 = vsel %vm1473, %v1466, %v1470
    %v1475 = vand.u32 2147483647, %v1465
    %vm1476 = vcmp.eq.f32.partialorder %v1475, 8.507059e+37
    %v1477 = vand.u32 %v1465, 2147483648
    %v1478 = vor.u32 1.1754944e-38, %v1477
    %v1479 = vsel %vm1476, %v1478, %v1474
    %v1480 = vmul.f32 1.0, %v1479
    %v1481 = vtanh.pop %v1441
    %v1482 = vxor.u32 %v1442, 2147483648
    %v1483 = vmul.f32 %v1482, 1.442695
    %v1484 = vpow.pop %v1483
    %v1485 = vadd.f32 %v1484, 1.0
    %v1486 = vrcp.pop %v1485
    %v1487 = vmul.f32 %v1485, %v1486
    %v1488 = vsub.f32 1.0, %v1487
    %v1489 = vmul.f32 %v1486, %v1488
    %v1490 = vadd.f32 %v1486, %v1489
    %vm1491 = vweird.f32 %v1485
    %vm1492 = vweird.f32 %v1486
    %vm1493 = vmor %vm1491, %vm1492
    %v1494 = vsel %vm1493, %v1486, %v1490
    %v1495 = vand.u32 2147483647, %v1485
    %vm1496 = vcmp.eq.f32.partialorder %v1495, 8.507059e+37
    %v1497 = vand.u32 %v1485, 2147483648
    %v1498 = vor.u32 1.1754944e-38, %v1497
    %v1499 = vsel %vm1496, %v1498, %v1494
    %v1500 = vmul.f32 1.0, %v1499
    %v1501 = vmul.f32 %v1480, %v385
    %v1502 = vmul.f32 %v1461, %v1481
    %v1503 = vadd.f32 %v1501, %v1502
    %v1504 = vtanh.pop %v1503
    %v1505 = vmul.f32 %v1500, %v1504
    %v1506 = vpack.c.bf16 %v1505, %v1505
    %v1507 = vpack.c.bf16 %v1431, %v1431
    %1508 = vmatpush.bf16.msra.mxu0 %v957
    %1509 = vmatpush.bf16.msra.mxu0 %v949
    %1510 = vmatpush.bf16.msra.mxu0 %v941
    %1511 = vmatpush.bf16.msra.mxu0 %v933
    %1512 = vmatpush.bf16.msra.mxu0 %v925
    %1513 = vmatpush.bf16.msra.mxu0 %v917
    %1514 = vmatpush.bf16.msra.mxu0 %v909
    %1515 = vmatpush.bf16.msra.mxu0 %v901
    %1516 = vmatmul.bf16.gmra.mxu0 %v1506
    %v1517 = vpop.f32.mrf.mxu0
    %v1518 = vadd.f32 0.0, %v1517
    %v1519 = vpop.f32.mrf.mxu0
    %1520 = vdwg.mxu0
    %1521 = vmatpush.bf16.msra.mxu0 %v1021
    %1522 = vmatpush.bf16.msra.mxu0 %v1013
    %1523 = vmatpush.bf16.msra.mxu0 %v1005
    %1524 = vmatpush.bf16.msra.mxu0 %v997
    %1525 = vmatpush.bf16.msra.mxu0 %v989
    %1526 = vmatpush.bf16.msra.mxu0 %v981
    %1527 = vmatpush.bf16.msra.mxu0 %v973
    %1528 = vmatpush.bf16.msra.mxu0 %v965
    %1529 = vmatmul.bf16.gmra.mxu0 %v1507
    %v1530 = vpop.f32.mrf.mxu0
    %v1531 = vadd.f32 %v1518, %v1530
    %v1532 = vpop.f32.mrf.mxu0
    %1533 = vdwg.mxu0
    %1534 = vmatpush.bf16.msra.mxu0 %v958
    %1535 = vmatpush.bf16.msra.mxu0 %v950
    %1536 = vmatpush.bf16.msra.mxu0 %v942
    %1537 = vmatpush.bf16.msra.mxu0 %v934
    %1538 = vmatpush.bf16.msra.mxu0 %v926
    %1539 = vmatpush.bf16.msra.mxu0 %v918
    %1540 = vmatpush.bf16.msra.mxu0 %v910
    %1541 = vmatpush.bf16.msra.mxu0 %v902
    %1542 = vmatmul.bf16.gmra.mxu0 %v1506
    %v1543 = vpop.f32.mrf.mxu0
    %v1544 = vadd.f32 0.0, %v1543
    %v1545 = vpop.f32.mrf.mxu0
    %1546 = vdwg.mxu0
    %1547 = vmatpush.bf16.msra.mxu0 %v1022
    %1548 = vmatpush.bf16.msra.mxu0 %v1014
    %1549 = vmatpush.bf16.msra.mxu0 %v1006
    %1550 = vmatpush.bf16.msra.mxu0 %v998
    %1551 = vmatpush.bf16.msra.mxu0 %v990
    %1552 = vmatpush.bf16.msra.mxu0 %v982
    %1553 = vmatpush.bf16.msra.mxu0 %v974
    %1554 = vmatpush.bf16.msra.mxu0 %v966
    %1555 = vmatmul.bf16.gmra.mxu0 %v1507
    %v1556 = vpop.f32.mrf.mxu0
    %v1557 = vadd.f32 %v1544, %v1556
    %v1558 = vpop.f32.mrf.mxu0
    %1559 = vdwg.mxu0
    %1560 = vmatpush.bf16.msra.mxu0 %v959
    %1561 = vmatpush.bf16.msra.mxu0 %v951
    %1562 = vmatpush.bf16.msra.mxu0 %v943
    %1563 = vmatpush.bf16.msra.mxu0 %v935
    %1564 = vmatpush.bf16.msra.mxu0 %v927
    %1565 = vmatpush.bf16.msra.mxu0 %v919
    %1566 = vmatpush.bf16.msra.mxu0 %v911
    %1567 = vmatpush.bf16.msra.mxu0 %v903
    %1568 = vmatmul.bf16.gmra.mxu0 %v1506
    %v1569 = vpop.f32.mrf.mxu0
    %v1570 = vadd.f32 0.0, %v1569
    %v1571 = vpop.f32.mrf.mxu0
    %1572 = vdwg.mxu0
    %1573 = vmatpush.bf16.msra.mxu0 %v1023
    %1574 = vmatpush.bf16.msra.mxu0 %v1015
    %1575 = vmatpush.bf16.msra.mxu0 %v1007
    %1576 = vmatpush.bf16.msra.mxu0 %v999
    %1577 = vmatpush.bf16.msra.mxu0 %v991
    %1578 = vmatpush.bf16.msra.mxu0 %v983
    %1579 = vmatpush.bf16.msra.mxu0 %v975
    %1580 = vmatpush.bf16.msra.mxu0 %v967
    %1581 = vmatmul.bf16.gmra.mxu0 %v1507
    %v1582 = vpop.f32.mrf.mxu0
    %v1583 = vadd.f32 %v1570, %v1582
    %v1584 = vpop.f32.mrf.mxu0
    %1585 = vdwg.mxu0
    %1586 = vmatpush.bf16.msra.mxu0 %v960
    %1587 = vmatpush.bf16.msra.mxu0 %v952
    %1588 = vmatpush.bf16.msra.mxu0 %v944
    %1589 = vmatpush.bf16.msra.mxu0 %v936
    %1590 = vmatpush.bf16.msra.mxu0 %v928
    %1591 = vmatpush.bf16.msra.mxu0 %v920
    %1592 = vmatpush.bf16.msra.mxu0 %v912
    %1593 = vmatpush.bf16.msra.mxu0 %v904
    %1594 = vmatmul.bf16.gmra.mxu0 %v1506
    %v1595 = vpop.f32.mrf.mxu0
    %v1596 = vadd.f32 0.0, %v1595
    %v1597 = vpop.f32.mrf.mxu0
    %1598 = vdwg.mxu0
    %1599 = vmatpush.bf16.msra.mxu0 %v1024
    %1600 = vmatpush.bf16.msra.mxu0 %v1016
    %1601 = vmatpush.bf16.msra.mxu0 %v1008
    %1602 = vmatpush.bf16.msra.mxu0 %v1000
    %1603 = vmatpush.bf16.msra.mxu0 %v992
    %1604 = vmatpush.bf16.msra.mxu0 %v984
    %1605 = vmatpush.bf16.msra.mxu0 %v976
    %1606 = vmatpush.bf16.msra.mxu0 %v968
    %1607 = vmatmul.bf16.gmra.mxu0 %v1507
    %v1608 = vpop.f32.mrf.mxu0
    %v1609 = vadd.f32 %v1596, %v1608
    %v1610 = vpop.f32.mrf.mxu0
    %1611 = vdwg.mxu0
    %1612 = vmatpush.bf16.msra.mxu0 %v961
    %1613 = vmatpush.bf16.msra.mxu0 %v953
    %1614 = vmatpush.bf16.msra.mxu0 %v945
    %1615 = vmatpush.bf16.msra.mxu0 %v937
    %1616 = vmatpush.bf16.msra.mxu0 %v929
    %1617 = vmatpush.bf16.msra.mxu0 %v921
    %1618 = vmatpush.bf16.msra.mxu0 %v913
    %1619 = vmatpush.bf16.msra.mxu0 %v905
    %1620 = vmatmul.bf16.gmra.mxu0 %v1506
    %v1621 = vpop.f32.mrf.mxu0
    %v1622 = vadd.f32 0.0, %v1621
    %v1623 = vpop.f32.mrf.mxu0
    %1624 = vdwg.mxu0
    %1625 = vmatpush.bf16.msra.mxu0 %v1025
    %1626 = vmatpush.bf16.msra.mxu0 %v1017
    %1627 = vmatpush.bf16.msra.mxu0 %v1009
    %1628 = vmatpush.bf16.msra.mxu0 %v1001
    %1629 = vmatpush.bf16.msra.mxu0 %v993
    %1630 = vmatpush.bf16.msra.mxu0 %v985
    %1631 = vmatpush.bf16.msra.mxu0 %v977
    %1632 = vmatpush.bf16.msra.mxu0 %v969
    %1633 = vmatmul.bf16.gmra.mxu0 %v1507
    %v1634 = vpop.f32.mrf.mxu0
    %v1635 = vadd.f32 %v1622, %v1634
    %v1636 = vpop.f32.mrf.mxu0
    %1637 = vdwg.mxu0
    %1638 = vmatpush.bf16.msra.mxu0 %v962
    %1639 = vmatpush.bf16.msra.mxu0 %v954
    %1640 = vmatpush.bf16.msra.mxu0 %v946
    %1641 = vmatpush.bf16.msra.mxu0 %v938
    %1642 = vmatpush.bf16.msra.mxu0 %v930
    %1643 = vmatpush.bf16.msra.mxu0 %v922
    %1644 = vmatpush.bf16.msra.mxu0 %v914
    %1645 = vmatpush.bf16.msra.mxu0 %v906
    %1646 = vmatmul.bf16.gmra.mxu0 %v1506
    %v1647 = vpop.f32.mrf.mxu0
    %v1648 = vadd.f32 0.0, %v1647
    %v1649 = vpop.f32.mrf.mxu0
    %1650 = vdwg.mxu0
    %1651 = vmatpush.bf16.msra.mxu0 %v1026
    %1652 = vmatpush.bf16.msra.mxu0 %v1018
    %1653 = vmatpush.bf16.msra.mxu0 %v1010
    %1654 = vmatpush.bf16.msra.mxu0 %v1002
    %1655 = vmatpush.bf16.msra.mxu0 %v994
    %1656 = vmatpush.bf16.msra.mxu0 %v986
    %1657 = vmatpush.bf16.msra.mxu0 %v978
    %1658 = vmatpush.bf16.msra.mxu0 %v970
    %1659 = vmatmul.bf16.gmra.mxu0 %v1507
    %v1660 = vpop.f32.mrf.mxu0
    %v1661 = vadd.f32 %v1648, %v1660
    %v1662 = vpop.f32.mrf.mxu0
    %1663 = vdwg.mxu0
    %1664 = vmatpush.bf16.msra.mxu0 %v963
    %1665 = vmatpush.bf16.msra.mxu0 %v955
    %1666 = vmatpush.bf16.msra.mxu0 %v947
    %1667 = vmatpush.bf16.msra.mxu0 %v939
    %1668 = vmatpush.bf16.msra.mxu0 %v931
    %1669 = vmatpush.bf16.msra.mxu0 %v923
    %1670 = vmatpush.bf16.msra.mxu0 %v915
    %1671 = vmatpush.bf16.msra.mxu0 %v907
    %1672 = vmatmul.bf16.gmra.mxu0 %v1506
    %v1673 = vpop.f32.mrf.mxu0
    %v1674 = vadd.f32 0.0, %v1673
    %v1675 = vpop.f32.mrf.mxu0
    %1676 = vdwg.mxu0
    %1677 = vmatpush.bf16.msra.mxu0 %v1027
    %1678 = vmatpush.bf16.msra.mxu0 %v1019
    %1679 = vmatpush.bf16.msra.mxu0 %v1011
    %1680 = vmatpush.bf16.msra.mxu0 %v1003
    %1681 = vmatpush.bf16.msra.mxu0 %v995
    %1682 = vmatpush.bf16.msra.mxu0 %v987
    %1683 = vmatpush.bf16.msra.mxu0 %v979
    %1684 = vmatpush.bf16.msra.mxu0 %v971
    %1685 = vmatmul.bf16.gmra.mxu0 %v1507
    %v1686 = vpop.f32.mrf.mxu0
    %v1687 = vadd.f32 %v1674, %v1686
    %v1688 = vpop.f32.mrf.mxu0
    %1689 = vdwg.mxu0
    %1690 = vmatpush.bf16.msra.mxu0 %v964
    %1691 = vmatpush.bf16.msra.mxu0 %v956
    %1692 = vmatpush.bf16.msra.mxu0 %v948
    %1693 = vmatpush.bf16.msra.mxu0 %v940
    %1694 = vmatpush.bf16.msra.mxu0 %v932
    %1695 = vmatpush.bf16.msra.mxu0 %v924
    %1696 = vmatpush.bf16.msra.mxu0 %v916
    %1697 = vmatpush.bf16.msra.mxu0 %v908
    %1698 = vmatmul.bf16.gmra.mxu0 %v1506
    %v1699 = vpop.f32.mrf.mxu0
    %v1700 = vadd.f32 0.0, %v1699
    %v1701 = vpop.f32.mrf.mxu0
    %1702 = vdwg.mxu0
    %1703 = vmatpush.bf16.msra.mxu0 %v1028
    %1704 = vmatpush.bf16.msra.mxu0 %v1020
    %1705 = vmatpush.bf16.msra.mxu0 %v1012
    %1706 = vmatpush.bf16.msra.mxu0 %v1004
    %1707 = vmatpush.bf16.msra.mxu0 %v996
    %1708 = vmatpush.bf16.msra.mxu0 %v988
    %1709 = vmatpush.bf16.msra.mxu0 %v980
    %1710 = vmatpush.bf16.msra.mxu0 %v972
    %1711 = vmatmul.bf16.gmra.mxu0 %v1507
    %v1712 = vpop.f32.mrf.mxu0
    %v1713 = vadd.f32 %v1700, %v1712
    %v1714 = vpop.f32.mrf.mxu0
    %1715 = vdwg.mxu0
    %v1716 = vadd.f32 %v1635, %v306
    %v1717 = vadd.f32 %v1661, %v307
    %v1718 = vadd.f32 %v1687, %v308
    %v1719 = vadd.f32 %v1713, %v309
    %v1720 = vxor.u32 %v1716, 2147483648
    %v1721 = vmul.f32 %v1720, 1.442695
    %v1722 = vpow.pop %v1721
    %v1723 = vadd.f32 %v1722, 1.0
    %v1724 = vrcp.pop %v1723
    %v1725 = vmul.f32 %v1723, %v1724
    %v1726 = vsub.f32 1.0, %v1725
    %v1727 = vmul.f32 %v1724, %v1726
    %v1728 = vadd.f32 %v1724, %v1727
    %vm1729 = vweird.f32 %v1723
    %vm1730 = vweird.f32 %v1724
    %vm1731 = vmor %vm1729, %vm1730
    %v1732 = vsel %vm1731, %v1724, %v1728
    %v1733 = vand.u32 2147483647, %v1723
    %vm1734 = vcmp.eq.f32.partialorder %v1733, 8.507059e+37
    %v1735 = vand.u32 %v1723, 2147483648
    %v1736 = vor.u32 1.1754944e-38, %v1735
    %v1737 = vsel %vm1734, %v1736, %v1732
    %v1738 = vmul.f32 1.0, %v1737
    %v1739 = vxor.u32 %v1717, 2147483648
    %v1740 = vmul.f32 %v1739, 1.442695
    %v1741 = vpow.pop %v1740
    %v1742 = vadd.f32 %v1741, 1.0
    %v1743 = vrcp.pop %v1742
    %v1744 = vmul.f32 %v1742, %v1743
    %v1745 = vsub.f32 1.0, %v1744
    %v1746 = vmul.f32 %v1743, %v1745
    %v1747 = vadd.f32 %v1743, %v1746
    %vm1748 = vweird.f32 %v1742
    %vm1749 = vweird.f32 %v1743
    %vm1750 = vmor %vm1748, %vm1749
    %v1751 = vsel %vm1750, %v1743, %v1747
    %v1752 = vand.u32 2147483647, %v1742
    %vm1753 = vcmp.eq.f32.partialorder %v1752, 8.507059e+37
    %v1754 = vand.u32 %v1742, 2147483648
    %v1755 = vor.u32 1.1754944e-38, %v1754
    %v1756 = vsel %vm1753, %v1755, %v1751
    %v1757 = vmul.f32 1.0, %v1756
    %v1758 = vtanh.pop %v1718
    %v1759 = vxor.u32 %v1719, 2147483648
    %v1760 = vmul.f32 %v1759, 1.442695
    %v1761 = vpow.pop %v1760
    %v1762 = vadd.f32 %v1761, 1.0
    %v1763 = vrcp.pop %v1762
    %v1764 = vmul.f32 %v1762, %v1763
    %v1765 = vsub.f32 1.0, %v1764
    %v1766 = vmul.f32 %v1763, %v1765
    %v1767 = vadd.f32 %v1763, %v1766
    %vm1768 = vweird.f32 %v1762
    %vm1769 = vweird.f32 %v1763
    %vm1770 = vmor %vm1768, %vm1769
    %v1771 = vsel %vm1770, %v1763, %v1767
    %v1772 = vand.u32 2147483647, %v1762
    %vm1773 = vcmp.eq.f32.partialorder %v1772, 8.507059e+37
    %v1774 = vand.u32 %v1762, 2147483648
    %v1775 = vor.u32 1.1754944e-38, %v1774
    %v1776 = vsel %vm1773, %v1775, %v1771
    %v1777 = vmul.f32 1.0, %v1776
    %v1778 = vmul.f32 %v1757, %v1429
    %v1779 = vmul.f32 %v1738, %v1758
    %v1780 = vadd.f32 %v1778, %v1779
    %v1781 = vtanh.pop %v1780
    %v1782 = vmul.f32 %v1777, %v1781
    %s1783 = smul.u32 2, 4
    %s1784 = smul.addr %s1783, 8
    %s1785 = scalar_lea.vmem [#allocation2], %s1784
    %v1786 = vld [vmem:[%s1785] sm:$0xff]
    %v1787 = vld [vmem:[%s1785 + $0x8] sm:$0xff]
    %v1788 = vld [vmem:[%s1785 + $0x10] sm:$0xff]
    %v1789 = vld [vmem:[%s1785 + $0x18] sm:$0xff]
    %v1790 = vadd.f32 %v1786, %v1531
    %v1791 = vadd.f32 %v1787, %v1557
    %v1792 = vadd.f32 %v1788, %v1583
    %v1793 = vadd.f32 %v1789, %v1609
    %v1794 = vxor.u32 %v1790, 2147483648
    %v1795 = vmul.f32 %v1794, 1.442695
    %v1796 = vpow.pop %v1795
    %v1797 = vadd.f32 %v1796, 1.0
    %v1798 = vrcp.pop %v1797
    %v1799 = vmul.f32 %v1797, %v1798
    %v1800 = vsub.f32 1.0, %v1799
    %v1801 = vmul.f32 %v1798, %v1800
    %v1802 = vadd.f32 %v1798, %v1801
    %vm1803 = vweird.f32 %v1797
    %vm1804 = vweird.f32 %v1798
    %vm1805 = vmor %vm1803, %vm1804
    %v1806 = vsel %vm1805, %v1798, %v1802
    %v1807 = vand.u32 2147483647, %v1797
    %vm1808 = vcmp.eq.f32.partialorder %v1807, 8.507059e+37
    %v1809 = vand.u32 %v1797, 2147483648
    %v1810 = vor.u32 1.1754944e-38, %v1809
    %v1811 = vsel %vm1808, %v1810, %v1806
    %v1812 = vmul.f32 1.0, %v1811
    %v1813 = vxor.u32 %v1791, 2147483648
    %v1814 = vmul.f32 %v1813, 1.442695
    %v1815 = vpow.pop %v1814
    %v1816 = vadd.f32 %v1815, 1.0
    %v1817 = vrcp.pop %v1816
    %v1818 = vmul.f32 %v1816, %v1817
    %v1819 = vsub.f32 1.0, %v1818
    %v1820 = vmul.f32 %v1817, %v1819
    %v1821 = vadd.f32 %v1817, %v1820
    %vm1822 = vweird.f32 %v1816
    %vm1823 = vweird.f32 %v1817
    %vm1824 = vmor %vm1822, %vm1823
    %v1825 = vsel %vm1824, %v1817, %v1821
    %v1826 = vand.u32 2147483647, %v1816
    %vm1827 = vcmp.eq.f32.partialorder %v1826, 8.507059e+37
    %v1828 = vand.u32 %v1816, 2147483648
    %v1829 = vor.u32 1.1754944e-38, %v1828
    %v1830 = vsel %vm1827, %v1829, %v1825
    %v1831 = vmul.f32 1.0, %v1830
    %v1832 = vtanh.pop %v1792
    %v1833 = vxor.u32 %v1793, 2147483648
    %v1834 = vmul.f32 %v1833, 1.442695
    %v1835 = vpow.pop %v1834
    %v1836 = vadd.f32 %v1835, 1.0
    %v1837 = vrcp.pop %v1836
    %v1838 = vmul.f32 %v1836, %v1837
    %v1839 = vsub.f32 1.0, %v1838
    %v1840 = vmul.f32 %v1837, %v1839
    %v1841 = vadd.f32 %v1837, %v1840
    %vm1842 = vweird.f32 %v1836
    %vm1843 = vweird.f32 %v1837
    %vm1844 = vmor %vm1842, %vm1843
    %v1845 = vsel %vm1844, %v1837, %v1841
    %v1846 = vand.u32 2147483647, %v1836
    %vm1847 = vcmp.eq.f32.partialorder %v1846, 8.507059e+37
    %v1848 = vand.u32 %v1836, 2147483648
    %v1849 = vor.u32 1.1754944e-38, %v1848
    %v1850 = vsel %vm1847, %v1849, %v1845
    %v1851 = vmul.f32 1.0, %v1850
    %v1852 = vmul.f32 %v1831, %v1503
    %v1853 = vmul.f32 %v1812, %v1832
    %v1854 = vadd.f32 %v1852, %v1853
    %v1855 = vtanh.pop %v1854
    %v1856 = vmul.f32 %v1851, %v1855
    %v1857 = vpack.c.bf16 %v1856, %v1856
    %v1858 = vpack.c.bf16 %v1782, %v1782
    %1859 = vmatpush.bf16.msra.mxu0 %v957
    %1860 = vmatpush.bf16.msra.mxu0 %v949
    %1861 = vmatpush.bf16.msra.mxu0 %v941
    %1862 = vmatpush.bf16.msra.mxu0 %v933
    %1863 = vmatpush.bf16.msra.mxu0 %v925
    %1864 = vmatpush.bf16.msra.mxu0 %v917
    %1865 = vmatpush.bf16.msra.mxu0 %v909
    %1866 = vmatpush.bf16.msra.mxu0 %v901
    %1867 = vmatmul.bf16.gmra.mxu0 %v1857
    %v1868 = vpop.f32.mrf.mxu0
    %v1869 = vadd.f32 0.0, %v1868
    %v1870 = vpop.f32.mrf.mxu0
    %1871 = vdwg.mxu0
    %1872 = vmatpush.bf16.msra.mxu0 %v1021
    %1873 = vmatpush.bf16.msra.mxu0 %v1013
    %1874 = vmatpush.bf16.msra.mxu0 %v1005
    %1875 = vmatpush.bf16.msra.mxu0 %v997
    %1876 = vmatpush.bf16.msra.mxu0 %v989
    %1877 = vmatpush.bf16.msra.mxu0 %v981
    %1878 = vmatpush.bf16.msra.mxu0 %v973
    %1879 = vmatpush.bf16.msra.mxu0 %v965
    %1880 = vmatmul.bf16.gmra.mxu0 %v1858
    %v1881 = vpop.f32.mrf.mxu0
    %v1882 = vadd.f32 %v1869, %v1881
    %v1883 = vpop.f32.mrf.mxu0
    %1884 = vdwg.mxu0
    %1885 = vmatpush.bf16.msra.mxu0 %v958
    %1886 = vmatpush.bf16.msra.mxu0 %v950
    %1887 = vmatpush.bf16.msra.mxu0 %v942
    %1888 = vmatpush.bf16.msra.mxu0 %v934
    %1889 = vmatpush.bf16.msra.mxu0 %v926
    %1890 = vmatpush.bf16.msra.mxu0 %v918
    %1891 = vmatpush.bf16.msra.mxu0 %v910
    %1892 = vmatpush.bf16.msra.mxu0 %v902
    %1893 = vmatmul.bf16.gmra.mxu0 %v1857
    %v1894 = vpop.f32.mrf.mxu0
    %v1895 = vadd.f32 0.0, %v1894
    %v1896 = vpop.f32.mrf.mxu0
    %1897 = vdwg.mxu0
    %1898 = vmatpush.bf16.msra.mxu0 %v1022
    %1899 = vmatpush.bf16.msra.mxu0 %v1014
    %1900 = vmatpush.bf16.msra.mxu0 %v1006
    %1901 = vmatpush.bf16.msra.mxu0 %v998
    %1902 = vmatpush.bf16.msra.mxu0 %v990
    %1903 = vmatpush.bf16.msra.mxu0 %v982
    %1904 = vmatpush.bf16.msra.mxu0 %v974
    %1905 = vmatpush.bf16.msra.mxu0 %v966
    %1906 = vmatmul.bf16.gmra.mxu0 %v1858
    %v1907 = vpop.f32.mrf.mxu0
    %v1908 = vadd.f32 %v1895, %v1907
    %v1909 = vpop.f32.mrf.mxu0
    %1910 = vdwg.mxu0
    %1911 = vmatpush.bf16.msra.mxu0 %v959
    %1912 = vmatpush.bf16.msra.mxu0 %v951
    %1913 = vmatpush.bf16.msra.mxu0 %v943
    %1914 = vmatpush.bf16.msra.mxu0 %v935
    %1915 = vmatpush.bf16.msra.mxu0 %v927
    %1916 = vmatpush.bf16.msra.mxu0 %v919
    %1917 = vmatpush.bf16.msra.mxu0 %v911
    %1918 = vmatpush.bf16.msra.mxu0 %v903
    %1919 = vmatmul.bf16.gmra.mxu0 %v1857
    %v1920 = vpop.f32.mrf.mxu0
    %v1921 = vadd.f32 0.0, %v1920
    %v1922 = vpop.f32.mrf.mxu0
    %1923 = vdwg.mxu0
    %1924 = vmatpush.bf16.msra.mxu0 %v1023
    %1925 = vmatpush.bf16.msra.mxu0 %v1015
    %1926 = vmatpush.bf16.msra.mxu0 %v1007
    %1927 = vmatpush.bf16.msra.mxu0 %v999
    %1928 = vmatpush.bf16.msra.mxu0 %v991
    %1929 = vmatpush.bf16.msra.mxu0 %v983
    %1930 = vmatpush.bf16.msra.mxu0 %v975
    %1931 = vmatpush.bf16.msra.mxu0 %v967
    %1932 = vmatmul.bf16.gmra.mxu0 %v1858
    %v1933 = vpop.f32.mrf.mxu0
    %v1934 = vadd.f32 %v1921, %v1933
    %v1935 = vpop.f32.mrf.mxu0
    %1936 = vdwg.mxu0
    %1937 = vmatpush.bf16.msra.mxu0 %v960
    %1938 = vmatpush.bf16.msra.mxu0 %v952
    %1939 = vmatpush.bf16.msra.mxu0 %v944
    %1940 = vmatpush.bf16.msra.mxu0 %v936
    %1941 = vmatpush.bf16.msra.mxu0 %v928
    %1942 = vmatpush.bf16.msra.mxu0 %v920
    %1943 = vmatpush.bf16.msra.mxu0 %v912
    %1944 = vmatpush.bf16.msra.mxu0 %v904
    %1945 = vmatmul.bf16.gmra.mxu0 %v1857
    %v1946 = vpop.f32.mrf.mxu0
    %v1947 = vadd.f32 0.0, %v1946
    %v1948 = vpop.f32.mrf.mxu0
    %1949 = vdwg.mxu0
    %1950 = vmatpush.bf16.msra.mxu0 %v1024
    %1951 = vmatpush.bf16.msra.mxu0 %v1016
    %1952 = vmatpush.bf16.msra.mxu0 %v1008
    %1953 = vmatpush.bf16.msra.mxu0 %v1000
    %1954 = vmatpush.bf16.msra.mxu0 %v992
    %1955 = vmatpush.bf16.msra.mxu0 %v984
    %1956 = vmatpush.bf16.msra.mxu0 %v976
    %1957 = vmatpush.bf16.msra.mxu0 %v968
    %1958 = vmatmul.bf16.gmra.mxu0 %v1858
    %v1959 = vpop.f32.mrf.mxu0
    %v1960 = vadd.f32 %v1947, %v1959
    %v1961 = vpop.f32.mrf.mxu0
    %1962 = vdwg.mxu0
    %1963 = vmatpush.bf16.msra.mxu0 %v961
    %1964 = vmatpush.bf16.msra.mxu0 %v953
    %1965 = vmatpush.bf16.msra.mxu0 %v945
    %1966 = vmatpush.bf16.msra.mxu0 %v937
    %1967 = vmatpush.bf16.msra.mxu0 %v929
    %1968 = vmatpush.bf16.msra.mxu0 %v921
    %1969 = vmatpush.bf16.msra.mxu0 %v913
    %1970 = vmatpush.bf16.msra.mxu0 %v905
    %1971 = vmatmul.bf16.gmra.mxu0 %v1857
    %v1972 = vpop.f32.mrf.mxu0
    %v1973 = vadd.f32 0.0, %v1972
    %v1974 = vpop.f32.mrf.mxu0
    %1975 = vdwg.mxu0
    %1976 = vmatpush.bf16.msra.mxu0 %v1025
    %1977 = vmatpush.bf16.msra.mxu0 %v1017
    %1978 = vmatpush.bf16.msra.mxu0 %v1009
    %1979 = vmatpush.bf16.msra.mxu0 %v1001
    %1980 = vmatpush.bf16.msra.mxu0 %v993
    %1981 = vmatpush.bf16.msra.mxu0 %v985
    %1982 = vmatpush.bf16.msra.mxu0 %v977
    %1983 = vmatpush.bf16.msra.mxu0 %v969
    %1984 = vmatmul.bf16.gmra.mxu0 %v1858
    %v1985 = vpop.f32.mrf.mxu0
    %v1986 = vadd.f32 %v1973, %v1985
    %v1987 = vpop.f32.mrf.mxu0
    %1988 = vdwg.mxu0
    %1989 = vmatpush.bf16.msra.mxu0 %v962
    %1990 = vmatpush.bf16.msra.mxu0 %v954
    %1991 = vmatpush.bf16.msra.mxu0 %v946
    %1992 = vmatpush.bf16.msra.mxu0 %v938
    %1993 = vmatpush.bf16.msra.mxu0 %v930
    %1994 = vmatpush.bf16.msra.mxu0 %v922
    %1995 = vmatpush.bf16.msra.mxu0 %v914
    %1996 = vmatpush.bf16.msra.mxu0 %v906
    %1997 = vmatmul.bf16.gmra.mxu0 %v1857
    %v1998 = vpop.f32.mrf.mxu0
    %v1999 = vadd.f32 0.0, %v1998
    %v2000 = vpop.f32.mrf.mxu0
    %2001 = vdwg.mxu0
    %2002 = vmatpush.bf16.msra.mxu0 %v1026
    %2003 = vmatpush.bf16.msra.mxu0 %v1018
    %2004 = vmatpush.bf16.msra.mxu0 %v1010
    %2005 = vmatpush.bf16.msra.mxu0 %v1002
    %2006 = vmatpush.bf16.msra.mxu0 %v994
    %2007 = vmatpush.bf16.msra.mxu0 %v986
    %2008 = vmatpush.bf16.msra.mxu0 %v978
    %2009 = vmatpush.bf16.msra.mxu0 %v970
    %2010 = vmatmul.bf16.gmra.mxu0 %v1858
    %v2011 = vpop.f32.mrf.mxu0
    %v2012 = vadd.f32 %v1999, %v2011
    %v2013 = vpop.f32.mrf.mxu0
    %2014 = vdwg.mxu0
    %2015 = vmatpush.bf16.msra.mxu0 %v963
    %2016 = vmatpush.bf16.msra.mxu0 %v955
    %2017 = vmatpush.bf16.msra.mxu0 %v947
    %2018 = vmatpush.bf16.msra.mxu0 %v939
    %2019 = vmatpush.bf16.msra.mxu0 %v931
    %2020 = vmatpush.bf16.msra.mxu0 %v923
    %2021 = vmatpush.bf16.msra.mxu0 %v915
    %2022 = vmatpush.bf16.msra.mxu0 %v907
    %2023 = vmatmul.bf16.gmra.mxu0 %v1857
    %v2024 = vpop.f32.mrf.mxu0
    %v2025 = vadd.f32 0.0, %v2024
    %v2026 = vpop.f32.mrf.mxu0
    %2027 = vdwg.mxu0
    %2028 = vmatpush.bf16.msra.mxu0 %v1027
    %2029 = vmatpush.bf16.msra.mxu0 %v1019
    %2030 = vmatpush.bf16.msra.mxu0 %v1011
    %2031 = vmatpush.bf16.msra.mxu0 %v1003
    %2032 = vmatpush.bf16.msra.mxu0 %v995
    %2033 = vmatpush.bf16.msra.mxu0 %v987
    %2034 = vmatpush.bf16.msra.mxu0 %v979
    %2035 = vmatpush.bf16.msra.mxu0 %v971
    %2036 = vmatmul.bf16.gmra.mxu0 %v1858
    %v2037 = vpop.f32.mrf.mxu0
    %v2038 = vadd.f32 %v2025, %v2037
    %v2039 = vpop.f32.mrf.mxu0
    %2040 = vdwg.mxu0
    %2041 = vmatpush.bf16.msra.mxu0 %v964
    %2042 = vmatpush.bf16.msra.mxu0 %v956
    %2043 = vmatpush.bf16.msra.mxu0 %v948
    %2044 = vmatpush.bf16.msra.mxu0 %v940
    %2045 = vmatpush.bf16.msra.mxu0 %v932
    %2046 = vmatpush.bf16.msra.mxu0 %v924
    %2047 = vmatpush.bf16.msra.mxu0 %v916
    %2048 = vmatpush.bf16.msra.mxu0 %v908
    %2049 = vmatmul.bf16.gmra.mxu0 %v1857
    %v2050 = vpop.f32.mrf.mxu0
    %v2051 = vadd.f32 0.0, %v2050
    %v2052 = vpop.f32.mrf.mxu0
    %2053 = vdwg.mxu0
    %2054 = vmatpush.bf16.msra.mxu0 %v1028
    %2055 = vmatpush.bf16.msra.mxu0 %v1020
    %2056 = vmatpush.bf16.msra.mxu0 %v1012
    %2057 = vmatpush.bf16.msra.mxu0 %v1004
    %2058 = vmatpush.bf16.msra.mxu0 %v996
    %2059 = vmatpush.bf16.msra.mxu0 %v988
    %2060 = vmatpush.bf16.msra.mxu0 %v980
    %2061 = vmatpush.bf16.msra.mxu0 %v972
    %2062 = vmatmul.bf16.gmra.mxu0 %v1858
    %v2063 = vpop.f32.mrf.mxu0
    %v2064 = vadd.f32 %v2051, %v2063
    %v2065 = vpop.f32.mrf.mxu0
    %2066 = vdwg.mxu0
    %v2067 = vadd.f32 %v1986, %v306
    %v2068 = vadd.f32 %v2012, %v307
    %v2069 = vadd.f32 %v2038, %v308
    %v2070 = vadd.f32 %v2064, %v309
    %v2071 = vxor.u32 %v2067, 2147483648
    %v2072 = vmul.f32 %v2071, 1.442695
    %v2073 = vpow.pop %v2072
    %v2074 = vadd.f32 %v2073, 1.0
    %v2075 = vrcp.pop %v2074
    %v2076 = vmul.f32 %v2074, %v2075
    %v2077 = vsub.f32 1.0, %v2076
    %v2078 = vmul.f32 %v2075, %v2077
    %v2079 = vadd.f32 %v2075, %v2078
    %vm2080 = vweird.f32 %v2074
    %vm2081 = vweird.f32 %v2075
    %vm2082 = vmor %vm2080, %vm2081
    %v2083 = vsel %vm2082, %v2075, %v2079
    %v2084 = vand.u32 2147483647, %v2074
    %vm2085 = vcmp.eq.f32.partialorder %v2084, 8.507059e+37
    %v2086 = vand.u32 %v2074, 2147483648
    %v2087 = vor.u32 1.1754944e-38, %v2086
    %v2088 = vsel %vm2085, %v2087, %v2083
    %v2089 = vmul.f32 1.0, %v2088
    %v2090 = vxor.u32 %v2068, 2147483648
    %v2091 = vmul.f32 %v2090, 1.442695
    %v2092 = vpow.pop %v2091
    %v2093 = vadd.f32 %v2092, 1.0
    %v2094 = vrcp.pop %v2093
    %v2095 = vmul.f32 %v2093, %v2094
    %v2096 = vsub.f32 1.0, %v2095
    %v2097 = vmul.f32 %v2094, %v2096
    %v2098 = vadd.f32 %v2094, %v2097
    %vm2099 = vweird.f32 %v2093
    %vm2100 = vweird.f32 %v2094
    %vm2101 = vmor %vm2099, %vm2100
    %v2102 = vsel %vm2101, %v2094, %v2098
    %v2103 = vand.u32 2147483647, %v2093
    %vm2104 = vcmp.eq.f32.partialorder %v2103, 8.507059e+37
    %v2105 = vand.u32 %v2093, 2147483648
    %v2106 = vor.u32 1.1754944e-38, %v2105
    %v2107 = vsel %vm2104, %v2106, %v2102
    %v2108 = vmul.f32 1.0, %v2107
    %v2109 = vtanh.pop %v2069
    %v2110 = vxor.u32 %v2070, 2147483648
    %v2111 = vmul.f32 %v2110, 1.442695
    %v2112 = vpow.pop %v2111
    %v2113 = vadd.f32 %v2112, 1.0
    %v2114 = vrcp.pop %v2113
    %v2115 = vmul.f32 %v2113, %v2114
    %v2116 = vsub.f32 1.0, %v2115
    %v2117 = vmul.f32 %v2114, %v2116
    %v2118 = vadd.f32 %v2114, %v2117
    %vm2119 = vweird.f32 %v2113
    %vm2120 = vweird.f32 %v2114
    %vm2121 = vmor %vm2119, %vm2120
    %v2122 = vsel %vm2121, %v2114, %v2118
    %v2123 = vand.u32 2147483647, %v2113
    %vm2124 = vcmp.eq.f32.partialorder %v2123, 8.507059e+37
    %v2125 = vand.u32 %v2113, 2147483648
    %v2126 = vor.u32 1.1754944e-38, %v2125
    %v2127 = vsel %vm2124, %v2126, %v2122
    %v2128 = vmul.f32 1.0, %v2127
    %v2129 = vmul.f32 %v2108, %v1780
    %v2130 = vmul.f32 %v2089, %v2109
    %v2131 = vadd.f32 %v2129, %v2130
    %v2132 = vtanh.pop %v2131
    %v2133 = vmul.f32 %v2128, %v2132
    %s2134 = smul.u32 3, 4
    %s2135 = smul.addr %s2134, 8
    %s2136 = scalar_lea.vmem [#allocation2], %s2135
    %v2137 = vld [vmem:[%s2136] sm:$0xff]
    %v2138 = vld [vmem:[%s2136 + $0x8] sm:$0xff]
    %v2139 = vld [vmem:[%s2136 + $0x10] sm:$0xff]
    %v2140 = vld [vmem:[%s2136 + $0x18] sm:$0xff]
    %v2141 = vadd.f32 %v2137, %v1882
    %v2142 = vadd.f32 %v2138, %v1908
    %v2143 = vadd.f32 %v2139, %v1934
    %v2144 = vadd.f32 %v2140, %v1960
    %v2145 = vxor.u32 %v2141, 2147483648
    %v2146 = vmul.f32 %v2145, 1.442695
    %v2147 = vpow.pop %v2146
    %v2148 = vadd.f32 %v2147, 1.0
    %v2149 = vrcp.pop %v2148
    %v2150 = vmul.f32 %v2148, %v2149
    %v2151 = vsub.f32 1.0, %v2150
    %v2152 = vmul.f32 %v2149, %v2151
    %v2153 = vadd.f32 %v2149, %v2152
    %vm2154 = vweird.f32 %v2148
    %vm2155 = vweird.f32 %v2149
    %vm2156 = vmor %vm2154, %vm2155
    %v2157 = vsel %vm2156, %v2149, %v2153
    %v2158 = vand.u32 2147483647, %v2148
    %vm2159 = vcmp.eq.f32.partialorder %v2158, 8.507059e+37
    %v2160 = vand.u32 %v2148, 2147483648
    %v2161 = vor.u32 1.1754944e-38, %v2160
    %v2162 = vsel %vm2159, %v2161, %v2157
    %v2163 = vmul.f32 1.0, %v2162
    %v2164 = vxor.u32 %v2142, 2147483648
    %v2165 = vmul.f32 %v2164, 1.442695
    %v2166 = vpow.pop %v2165
    %v2167 = vadd.f32 %v2166, 1.0
    %v2168 = vrcp.pop %v2167
    %v2169 = vmul.f32 %v2167, %v2168
    %v2170 = vsub.f32 1.0, %v2169
    %v2171 = vmul.f32 %v2168, %v2170
    %v2172 = vadd.f32 %v2168, %v2171
    %vm2173 = vweird.f32 %v2167
    %vm2174 = vweird.f32 %v2168
    %vm2175 = vmor %vm2173, %vm2174
    %v2176 = vsel %vm2175, %v2168, %v2172
    %v2177 = vand.u32 2147483647, %v2167
    %vm2178 = vcmp.eq.f32.partialorder %v2177, 8.507059e+37
    %v2179 = vand.u32 %v2167, 2147483648
    %v2180 = vor.u32 1.1754944e-38, %v2179
    %v2181 = vsel %vm2178, %v2180, %v2176
    %v2182 = vmul.f32 1.0, %v2181
    %v2183 = vtanh.pop %v2143
    %v2184 = vxor.u32 %v2144, 2147483648
    %v2185 = vmul.f32 %v2184, 1.442695
    %v2186 = vpow.pop %v2185
    %v2187 = vadd.f32 %v2186, 1.0
    %v2188 = vrcp.pop %v2187
    %v2189 = vmul.f32 %v2187, %v2188
    %v2190 = vsub.f32 1.0, %v2189
    %v2191 = vmul.f32 %v2188, %v2190
    %v2192 = vadd.f32 %v2188, %v2191
    %vm2193 = vweird.f32 %v2187
    %vm2194 = vweird.f32 %v2188
    %vm2195 = vmor %vm2193, %vm2194
    %v2196 = vsel %vm2195, %v2188, %v2192
    %v2197 = vand.u32 2147483647, %v2187
    %vm2198 = vcmp.eq.f32.partialorder %v2197, 8.507059e+37
    %v2199 = vand.u32 %v2187, 2147483648
    %v2200 = vor.u32 1.1754944e-38, %v2199
    %v2201 = vsel %vm2198, %v2200, %v2196
    %v2202 = vmul.f32 1.0, %v2201
    %v2203 = vmul.f32 %v2182, %v1854
    %v2204 = vmul.f32 %v2163, %v2183
    %v2205 = vadd.f32 %v2203, %v2204
    %v2206 = vtanh.pop %v2205
    %v2207 = vmul.f32 %v2202, %v2206
    %v2208 = vpack.c.bf16 %v2207, %v2207
    %v2209 = vpack.c.bf16 %v2133, %v2133
    %2210 = vmatpush.bf16.msra.mxu0 %v957
    %2211 = vmatpush.bf16.msra.mxu0 %v949
    %2212 = vmatpush.bf16.msra.mxu0 %v941
    %2213 = vmatpush.bf16.msra.mxu0 %v933
    %2214 = vmatpush.bf16.msra.mxu0 %v925
    %2215 = vmatpush.bf16.msra.mxu0 %v917
    %2216 = vmatpush.bf16.msra.mxu0 %v909
    %2217 = vmatpush.bf16.msra.mxu0 %v901
    %2218 = vmatmul.bf16.gmra.mxu0 %v2208
    %v2219 = vpop.f32.mrf.mxu0
    %v2220 = vadd.f32 0.0, %v2219
    %v2221 = vpop.f32.mrf.mxu0
    %2222 = vdwg.mxu0
    %2223 = vmatpush.bf16.msra.mxu0 %v1021
    %2224 = vmatpush.bf16.msra.mxu0 %v1013
    %2225 = vmatpush.bf16.msra.mxu0 %v1005
    %2226 = vmatpush.bf16.msra.mxu0 %v997
    %2227 = vmatpush.bf16.msra.mxu0 %v989
    %2228 = vmatpush.bf16.msra.mxu0 %v981
    %2229 = vmatpush.bf16.msra.mxu0 %v973
    %2230 = vmatpush.bf16.msra.mxu0 %v965
    %2231 = vmatmul.bf16.gmra.mxu0 %v2209
    %v2232 = vpop.f32.mrf.mxu0
    %v2233 = vadd.f32 %v2220, %v2232
    %v2234 = vpop.f32.mrf.mxu0
    %2235 = vdwg.mxu0
    %2236 = vmatpush.bf16.msra.mxu0 %v958
    %2237 = vmatpush.bf16.msra.mxu0 %v950
    %2238 = vmatpush.bf16.msra.mxu0 %v942
    %2239 = vmatpush.bf16.msra.mxu0 %v934
    %2240 = vmatpush.bf16.msra.mxu0 %v926
    %2241 = vmatpush.bf16.msra.mxu0 %v918
    %2242 = vmatpush.bf16.msra.mxu0 %v910
    %2243 = vmatpush.bf16.msra.mxu0 %v902
    %2244 = vmatmul.bf16.gmra.mxu0 %v2208
    %v2245 = vpop.f32.mrf.mxu0
    %v2246 = vadd.f32 0.0, %v2245
    %v2247 = vpop.f32.mrf.mxu0
    %2248 = vdwg.mxu0
    %2249 = vmatpush.bf16.msra.mxu0 %v1022
    %2250 = vmatpush.bf16.msra.mxu0 %v1014
    %2251 = vmatpush.bf16.msra.mxu0 %v1006
    %2252 = vmatpush.bf16.msra.mxu0 %v998
    %2253 = vmatpush.bf16.msra.mxu0 %v990
    %2254 = vmatpush.bf16.msra.mxu0 %v982
    %2255 = vmatpush.bf16.msra.mxu0 %v974
    %2256 = vmatpush.bf16.msra.mxu0 %v966
    %2257 = vmatmul.bf16.gmra.mxu0 %v2209
    %v2258 = vpop.f32.mrf.mxu0
    %v2259 = vadd.f32 %v2246, %v2258
    %v2260 = vpop.f32.mrf.mxu0
    %2261 = vdwg.mxu0
    %2262 = vmatpush.bf16.msra.mxu0 %v959
    %2263 = vmatpush.bf16.msra.mxu0 %v951
    %2264 = vmatpush.bf16.msra.mxu0 %v943
    %2265 = vmatpush.bf16.msra.mxu0 %v935
    %2266 = vmatpush.bf16.msra.mxu0 %v927
    %2267 = vmatpush.bf16.msra.mxu0 %v919
    %2268 = vmatpush.bf16.msra.mxu0 %v911
    %2269 = vmatpush.bf16.msra.mxu0 %v903
    %2270 = vmatmul.bf16.gmra.mxu0 %v2208
    %v2271 = vpop.f32.mrf.mxu0
    %v2272 = vadd.f32 0.0, %v2271
    %v2273 = vpop.f32.mrf.mxu0
    %2274 = vdwg.mxu0
    %2275 = vmatpush.bf16.msra.mxu0 %v1023
    %2276 = vmatpush.bf16.msra.mxu0 %v1015
    %2277 = vmatpush.bf16.msra.mxu0 %v1007
    %2278 = vmatpush.bf16.msra.mxu0 %v999
    %2279 = vmatpush.bf16.msra.mxu0 %v991
    %2280 = vmatpush.bf16.msra.mxu0 %v983
    %2281 = vmatpush.bf16.msra.mxu0 %v975
    %2282 = vmatpush.bf16.msra.mxu0 %v967
    %2283 = vmatmul.bf16.gmra.mxu0 %v2209
    %v2284 = vpop.f32.mrf.mxu0
    %v2285 = vadd.f32 %v2272, %v2284
    %v2286 = vpop.f32.mrf.mxu0
    %2287 = vdwg.mxu0
    %2288 = vmatpush.bf16.msra.mxu0 %v960
    %2289 = vmatpush.bf16.msra.mxu0 %v952
    %2290 = vmatpush.bf16.msra.mxu0 %v944
    %2291 = vmatpush.bf16.msra.mxu0 %v936
    %2292 = vmatpush.bf16.msra.mxu0 %v928
    %2293 = vmatpush.bf16.msra.mxu0 %v920
    %2294 = vmatpush.bf16.msra.mxu0 %v912
    %2295 = vmatpush.bf16.msra.mxu0 %v904
    %2296 = vmatmul.bf16.gmra.mxu0 %v2208
    %v2297 = vpop.f32.mrf.mxu0
    %v2298 = vadd.f32 0.0, %v2297
    %v2299 = vpop.f32.mrf.mxu0
    %2300 = vdwg.mxu0
    %2301 = vmatpush.bf16.msra.mxu0 %v1024
    %2302 = vmatpush.bf16.msra.mxu0 %v1016
    %2303 = vmatpush.bf16.msra.mxu0 %v1008
    %2304 = vmatpush.bf16.msra.mxu0 %v1000
    %2305 = vmatpush.bf16.msra.mxu0 %v992
    %2306 = vmatpush.bf16.msra.mxu0 %v984
    %2307 = vmatpush.bf16.msra.mxu0 %v976
    %2308 = vmatpush.bf16.msra.mxu0 %v968
    %2309 = vmatmul.bf16.gmra.mxu0 %v2209
    %v2310 = vpop.f32.mrf.mxu0
    %v2311 = vadd.f32 %v2298, %v2310
    %v2312 = vpop.f32.mrf.mxu0
    %2313 = vdwg.mxu0
    %2314 = vmatpush.bf16.msra.mxu0 %v961
    %2315 = vmatpush.bf16.msra.mxu0 %v953
    %2316 = vmatpush.bf16.msra.mxu0 %v945
    %2317 = vmatpush.bf16.msra.mxu0 %v937
    %2318 = vmatpush.bf16.msra.mxu0 %v929
    %2319 = vmatpush.bf16.msra.mxu0 %v921
    %2320 = vmatpush.bf16.msra.mxu0 %v913
    %2321 = vmatpush.bf16.msra.mxu0 %v905
    %2322 = vmatmul.bf16.gmra.mxu0 %v2208
    %v2323 = vpop.f32.mrf.mxu0
    %v2324 = vadd.f32 0.0, %v2323
    %v2325 = vpop.f32.mrf.mxu0
    %2326 = vdwg.mxu0
    %2327 = vmatpush.bf16.msra.mxu0 %v1025
    %2328 = vmatpush.bf16.msra.mxu0 %v1017
    %2329 = vmatpush.bf16.msra.mxu0 %v1009
    %2330 = vmatpush.bf16.msra.mxu0 %v1001
    %2331 = vmatpush.bf16.msra.mxu0 %v993
    %2332 = vmatpush.bf16.msra.mxu0 %v985
    %2333 = vmatpush.bf16.msra.mxu0 %v977
    %2334 = vmatpush.bf16.msra.mxu0 %v969
    %2335 = vmatmul.bf16.gmra.mxu0 %v2209
    %v2336 = vpop.f32.mrf.mxu0
    %v2337 = vadd.f32 %v2324, %v2336
    %v2338 = vpop.f32.mrf.mxu0
    %2339 = vdwg.mxu0
    %2340 = vmatpush.bf16.msra.mxu0 %v962
    %2341 = vmatpush.bf16.msra.mxu0 %v954
    %2342 = vmatpush.bf16.msra.mxu0 %v946
    %2343 = vmatpush.bf16.msra.mxu0 %v938
    %2344 = vmatpush.bf16.msra.mxu0 %v930
    %2345 = vmatpush.bf16.msra.mxu0 %v922
    %2346 = vmatpush.bf16.msra.mxu0 %v914
    %2347 = vmatpush.bf16.msra.mxu0 %v906
    %2348 = vmatmul.bf16.gmra.mxu0 %v2208
    %v2349 = vpop.f32.mrf.mxu0
    %v2350 = vadd.f32 0.0, %v2349
    %v2351 = vpop.f32.mrf.mxu0
    %2352 = vdwg.mxu0
    %2353 = vmatpush.bf16.msra.mxu0 %v1026
    %2354 = vmatpush.bf16.msra.mxu0 %v1018
    %2355 = vmatpush.bf16.msra.mxu0 %v1010
    %2356 = vmatpush.bf16.msra.mxu0 %v1002
    %2357 = vmatpush.bf16.msra.mxu0 %v994
    %2358 = vmatpush.bf16.msra.mxu0 %v986
    %2359 = vmatpush.bf16.msra.mxu0 %v978
    %2360 = vmatpush.bf16.msra.mxu0 %v970
    %2361 = vmatmul.bf16.gmra.mxu0 %v2209
    %v2362 = vpop.f32.mrf.mxu0
    %v2363 = vadd.f32 %v2350, %v2362
    %v2364 = vpop.f32.mrf.mxu0
    %2365 = vdwg.mxu0
    %2366 = vmatpush.bf16.msra.mxu0 %v963
    %2367 = vmatpush.bf16.msra.mxu0 %v955
    %2368 = vmatpush.bf16.msra.mxu0 %v947
    %2369 = vmatpush.bf16.msra.mxu0 %v939
    %2370 = vmatpush.bf16.msra.mxu0 %v931
    %2371 = vmatpush.bf16.msra.mxu0 %v923
    %2372 = vmatpush.bf16.msra.mxu0 %v915
    %2373 = vmatpush.bf16.msra.mxu0 %v907
    %2374 = vmatmul.bf16.gmra.mxu0 %v2208
    %v2375 = vpop.f32.mrf.mxu0
    %v2376 = vadd.f32 0.0, %v2375
    %v2377 = vpop.f32.mrf.mxu0
    %2378 = vdwg.mxu0
    %2379 = vmatpush.bf16.msra.mxu0 %v1027
    %2380 = vmatpush.bf16.msra.mxu0 %v1019
    %2381 = vmatpush.bf16.msra.mxu0 %v1011
    %2382 = vmatpush.bf16.msra.mxu0 %v1003
    %2383 = vmatpush.bf16.msra.mxu0 %v995
    %2384 = vmatpush.bf16.msra.mxu0 %v987
    %2385 = vmatpush.bf16.msra.mxu0 %v979
    %2386 = vmatpush.bf16.msra.mxu0 %v971
    %2387 = vmatmul.bf16.gmra.mxu0 %v2209
    %v2388 = vpop.f32.mrf.mxu0
    %v2389 = vadd.f32 %v2376, %v2388
    %v2390 = vpop.f32.mrf.mxu0
    %2391 = vdwg.mxu0
    %2392 = vmatpush.bf16.msra.mxu0 %v964
    %2393 = vmatpush.bf16.msra.mxu0 %v956
    %2394 = vmatpush.bf16.msra.mxu0 %v948
    %2395 = vmatpush.bf16.msra.mxu0 %v940
    %2396 = vmatpush.bf16.msra.mxu0 %v932
    %2397 = vmatpush.bf16.msra.mxu0 %v924
    %2398 = vmatpush.bf16.msra.mxu0 %v916
    %2399 = vmatpush.bf16.msra.mxu0 %v908
    %2400 = vmatmul.bf16.gmra.mxu0 %v2208
    %v2401 = vpop.f32.mrf.mxu0
    %v2402 = vadd.f32 0.0, %v2401
    %v2403 = vpop.f32.mrf.mxu0
    %2404 = vdwg.mxu0
    %2405 = vmatpush.bf16.msra.mxu0 %v1028
    %2406 = vmatpush.bf16.msra.mxu0 %v1020
    %2407 = vmatpush.bf16.msra.mxu0 %v1012
    %2408 = vmatpush.bf16.msra.mxu0 %v1004
    %2409 = vmatpush.bf16.msra.mxu0 %v996
    %2410 = vmatpush.bf16.msra.mxu0 %v988
    %2411 = vmatpush.bf16.msra.mxu0 %v980
    %2412 = vmatpush.bf16.msra.mxu0 %v972
    %2413 = vmatmul.bf16.gmra.mxu0 %v2209
    %v2414 = vpop.f32.mrf.mxu0
    %v2415 = vadd.f32 %v2402, %v2414
    %v2416 = vpop.f32.mrf.mxu0
    %2417 = vdwg.mxu0
    %v2418 = vadd.f32 %v2337, %v306
    %v2419 = vadd.f32 %v2363, %v307
    %v2420 = vadd.f32 %v2389, %v308
    %v2421 = vadd.f32 %v2415, %v309
    %v2422 = vxor.u32 %v2418, 2147483648
    %v2423 = vmul.f32 %v2422, 1.442695
    %v2424 = vpow.pop %v2423
    %v2425 = vadd.f32 %v2424, 1.0
    %v2426 = vrcp.pop %v2425
    %v2427 = vmul.f32 %v2425, %v2426
    %v2428 = vsub.f32 1.0, %v2427
    %v2429 = vmul.f32 %v2426, %v2428
    %v2430 = vadd.f32 %v2426, %v2429
    %vm2431 = vweird.f32 %v2425
    %vm2432 = vweird.f32 %v2426
    %vm2433 = vmor %vm2431, %vm2432
    %v2434 = vsel %vm2433, %v2426, %v2430
    %v2435 = vand.u32 2147483647, %v2425
    %vm2436 = vcmp.eq.f32.partialorder %v2435, 8.507059e+37
    %v2437 = vand.u32 %v2425, 2147483648
    %v2438 = vor.u32 1.1754944e-38, %v2437
    %v2439 = vsel %vm2436, %v2438, %v2434
    %v2440 = vmul.f32 1.0, %v2439
    %v2441 = vxor.u32 %v2419, 2147483648
    %v2442 = vmul.f32 %v2441, 1.442695
    %v2443 = vpow.pop %v2442
    %v2444 = vadd.f32 %v2443, 1.0
    %v2445 = vrcp.pop %v2444
    %v2446 = vmul.f32 %v2444, %v2445
    %v2447 = vsub.f32 1.0, %v2446
    %v2448 = vmul.f32 %v2445, %v2447
    %v2449 = vadd.f32 %v2445, %v2448
    %vm2450 = vweird.f32 %v2444
    %vm2451 = vweird.f32 %v2445
    %vm2452 = vmor %vm2450, %vm2451
    %v2453 = vsel %vm2452, %v2445, %v2449
    %v2454 = vand.u32 2147483647, %v2444
    %vm2455 = vcmp.eq.f32.partialorder %v2454, 8.507059e+37
    %v2456 = vand.u32 %v2444, 2147483648
    %v2457 = vor.u32 1.1754944e-38, %v2456
    %v2458 = vsel %vm2455, %v2457, %v2453
    %v2459 = vmul.f32 1.0, %v2458
    %v2460 = vtanh.pop %v2420
    %v2461 = vxor.u32 %v2421, 2147483648
    %v2462 = vmul.f32 %v2461, 1.442695
    %v2463 = vpow.pop %v2462
    %v2464 = vadd.f32 %v2463, 1.0
    %v2465 = vrcp.pop %v2464
    %v2466 = vmul.f32 %v2464, %v2465
    %v2467 = vsub.f32 1.0, %v2466
    %v2468 = vmul.f32 %v2465, %v2467
    %v2469 = vadd.f32 %v2465, %v2468
    %vm2470 = vweird.f32 %v2464
    %vm2471 = vweird.f32 %v2465
    %vm2472 = vmor %vm2470, %vm2471
    %v2473 = vsel %vm2472, %v2465, %v2469
    %v2474 = vand.u32 2147483647, %v2464
    %vm2475 = vcmp.eq.f32.partialorder %v2474, 8.507059e+37
    %v2476 = vand.u32 %v2464, 2147483648
    %v2477 = vor.u32 1.1754944e-38, %v2476
    %v2478 = vsel %vm2475, %v2477, %v2473
    %v2479 = vmul.f32 1.0, %v2478
    %v2480 = vmul.f32 %v2459, %v2131
    %v2481 = vmul.f32 %v2440, %v2460
    %v2482 = vadd.f32 %v2480, %v2481
    %v2483 = vtanh.pop %v2482
    %v2484 = vmul.f32 %v2479, %v2483
    %s2485 = smul.u32 4, 4
    %s2486 = smul.addr %s2485, 8
    %s2487 = scalar_lea.vmem [#allocation2], %s2486
    %v2488 = vld [vmem:[%s2487] sm:$0xff]
    %v2489 = vld [vmem:[%s2487 + $0x8] sm:$0xff]
    %v2490 = vld [vmem:[%s2487 + $0x10] sm:$0xff]
    %v2491 = vld [vmem:[%s2487 + $0x18] sm:$0xff]
    %v2492 = vadd.f32 %v2488, %v2233
    %v2493 = vadd.f32 %v2489, %v2259
    %v2494 = vadd.f32 %v2490, %v2285
    %v2495 = vadd.f32 %v2491, %v2311
    %v2496 = vxor.u32 %v2492, 2147483648
    %v2497 = vmul.f32 %v2496, 1.442695
    %v2498 = vpow.pop %v2497
    %v2499 = vadd.f32 %v2498, 1.0
    %v2500 = vrcp.pop %v2499
    %v2501 = vmul.f32 %v2499, %v2500
    %v2502 = vsub.f32 1.0, %v2501
    %v2503 = vmul.f32 %v2500, %v2502
    %v2504 = vadd.f32 %v2500, %v2503
    %vm2505 = vweird.f32 %v2499
    %vm2506 = vweird.f32 %v2500
    %vm2507 = vmor %vm2505, %vm2506
    %v2508 = vsel %vm2507, %v2500, %v2504
    %v2509 = vand.u32 2147483647, %v2499
    %vm2510 = vcmp.eq.f32.partialorder %v2509, 8.507059e+37
    %v2511 = vand.u32 %v2499, 2147483648
    %v2512 = vor.u32 1.1754944e-38, %v2511
    %v2513 = vsel %vm2510, %v2512, %v2508
    %v2514 = vmul.f32 1.0, %v2513
    %v2515 = vxor.u32 %v2493, 2147483648
    %v2516 = vmul.f32 %v2515, 1.442695
    %v2517 = vpow.pop %v2516
    %v2518 = vadd.f32 %v2517, 1.0
    %v2519 = vrcp.pop %v2518
    %v2520 = vmul.f32 %v2518, %v2519
    %v2521 = vsub.f32 1.0, %v2520
    %v2522 = vmul.f32 %v2519, %v2521
    %v2523 = vadd.f32 %v2519, %v2522
    %vm2524 = vweird.f32 %v2518
    %vm2525 = vweird.f32 %v2519
    %vm2526 = vmor %vm2524, %vm2525
    %v2527 = vsel %vm2526, %v2519, %v2523
    %v2528 = vand.u32 2147483647, %v2518
    %vm2529 = vcmp.eq.f32.partialorder %v2528, 8.507059e+37
    %v2530 = vand.u32 %v2518, 2147483648
    %v2531 = vor.u32 1.1754944e-38, %v2530
    %v2532 = vsel %vm2529, %v2531, %v2527
    %v2533 = vmul.f32 1.0, %v2532
    %v2534 = vtanh.pop %v2494
    %v2535 = vxor.u32 %v2495, 2147483648
    %v2536 = vmul.f32 %v2535, 1.442695
    %v2537 = vpow.pop %v2536
    %v2538 = vadd.f32 %v2537, 1.0
    %v2539 = vrcp.pop %v2538
    %v2540 = vmul.f32 %v2538, %v2539
    %v2541 = vsub.f32 1.0, %v2540
    %v2542 = vmul.f32 %v2539, %v2541
    %v2543 = vadd.f32 %v2539, %v2542
    %vm2544 = vweird.f32 %v2538
    %vm2545 = vweird.f32 %v2539
    %vm2546 = vmor %vm2544, %vm2545
    %v2547 = vsel %vm2546, %v2539, %v2543
    %v2548 = vand.u32 2147483647, %v2538
    %vm2549 = vcmp.eq.f32.partialorder %v2548, 8.507059e+37
    %v2550 = vand.u32 %v2538, 2147483648
    %v2551 = vor.u32 1.1754944e-38, %v2550
    %v2552 = vsel %vm2549, %v2551, %v2547
    %v2553 = vmul.f32 1.0, %v2552
    %v2554 = vmul.f32 %v2533, %v2205
    %v2555 = vmul.f32 %v2514, %v2534
    %v2556 = vadd.f32 %v2554, %v2555
    %v2557 = vtanh.pop %v2556
    %v2558 = vmul.f32 %v2553, %v2557
    %v2559 = vpack.c.bf16 %v2558, %v2558
    %v2560 = vpack.c.bf16 %v2484, %v2484
    %2561 = vmatpush.bf16.msra.mxu0 %v957
    %2562 = vmatpush.bf16.msra.mxu0 %v949
    %2563 = vmatpush.bf16.msra.mxu0 %v941
    %2564 = vmatpush.bf16.msra.mxu0 %v933
    %2565 = vmatpush.bf16.msra.mxu0 %v925
    %2566 = vmatpush.bf16.msra.mxu0 %v917
    %2567 = vmatpush.bf16.msra.mxu0 %v909
    %2568 = vmatpush.bf16.msra.mxu0 %v901
    %2569 = vmatmul.bf16.gmra.mxu0 %v2559
    %v2570 = vpop.f32.mrf.mxu0
    %v2571 = vadd.f32 0.0, %v2570
    %v2572 = vpop.f32.mrf.mxu0
    %2573 = vdwg.mxu0
    %2574 = vmatpush.bf16.msra.mxu0 %v1021
    %2575 = vmatpush.bf16.msra.mxu0 %v1013
    %2576 = vmatpush.bf16.msra.mxu0 %v1005
    %2577 = vmatpush.bf16.msra.mxu0 %v997
    %2578 = vmatpush.bf16.msra.mxu0 %v989
    %2579 = vmatpush.bf16.msra.mxu0 %v981
    %2580 = vmatpush.bf16.msra.mxu0 %v973
    %2581 = vmatpush.bf16.msra.mxu0 %v965
    %2582 = vmatmul.bf16.gmra.mxu0 %v2560
    %v2583 = vpop.f32.mrf.mxu0
    %v2584 = vadd.f32 %v2571, %v2583
    %v2585 = vpop.f32.mrf.mxu0
    %2586 = vdwg.mxu0
    %2587 = vmatpush.bf16.msra.mxu0 %v958
    %2588 = vmatpush.bf16.msra.mxu0 %v950
    %2589 = vmatpush.bf16.msra.mxu0 %v942
    %2590 = vmatpush.bf16.msra.mxu0 %v934
    %2591 = vmatpush.bf16.msra.mxu0 %v926
    %2592 = vmatpush.bf16.msra.mxu0 %v918
    %2593 = vmatpush.bf16.msra.mxu0 %v910
    %2594 = vmatpush.bf16.msra.mxu0 %v902
    %2595 = vmatmul.bf16.gmra.mxu0 %v2559
    %v2596 = vpop.f32.mrf.mxu0
    %v2597 = vadd.f32 0.0, %v2596
    %v2598 = vpop.f32.mrf.mxu0
    %2599 = vdwg.mxu0
    %2600 = vmatpush.bf16.msra.mxu0 %v1022
    %2601 = vmatpush.bf16.msra.mxu0 %v1014
    %2602 = vmatpush.bf16.msra.mxu0 %v1006
    %2603 = vmatpush.bf16.msra.mxu0 %v998
    %2604 = vmatpush.bf16.msra.mxu0 %v990
    %2605 = vmatpush.bf16.msra.mxu0 %v982
    %2606 = vmatpush.bf16.msra.mxu0 %v974
    %2607 = vmatpush.bf16.msra.mxu0 %v966
    %2608 = vmatmul.bf16.gmra.mxu0 %v2560
    %v2609 = vpop.f32.mrf.mxu0
    %v2610 = vadd.f32 %v2597, %v2609
    %v2611 = vpop.f32.mrf.mxu0
    %2612 = vdwg.mxu0
    %2613 = vmatpush.bf16.msra.mxu0 %v959
    %2614 = vmatpush.bf16.msra.mxu0 %v951
    %2615 = vmatpush.bf16.msra.mxu0 %v943
    %2616 = vmatpush.bf16.msra.mxu0 %v935
    %2617 = vmatpush.bf16.msra.mxu0 %v927
    %2618 = vmatpush.bf16.msra.mxu0 %v919
    %2619 = vmatpush.bf16.msra.mxu0 %v911
    %2620 = vmatpush.bf16.msra.mxu0 %v903
    %2621 = vmatmul.bf16.gmra.mxu0 %v2559
    %v2622 = vpop.f32.mrf.mxu0
    %v2623 = vadd.f32 0.0, %v2622
    %v2624 = vpop.f32.mrf.mxu0
    %2625 = vdwg.mxu0
    %2626 = vmatpush.bf16.msra.mxu0 %v1023
    %2627 = vmatpush.bf16.msra.mxu0 %v1015
    %2628 = vmatpush.bf16.msra.mxu0 %v1007
    %2629 = vmatpush.bf16.msra.mxu0 %v999
    %2630 = vmatpush.bf16.msra.mxu0 %v991
    %2631 = vmatpush.bf16.msra.mxu0 %v983
    %2632 = vmatpush.bf16.msra.mxu0 %v975
    %2633 = vmatpush.bf16.msra.mxu0 %v967
    %2634 = vmatmul.bf16.gmra.mxu0 %v2560
    %v2635 = vpop.f32.mrf.mxu0
    %v2636 = vadd.f32 %v2623, %v2635
    %v2637 = vpop.f32.mrf.mxu0
    %2638 = vdwg.mxu0
    %2639 = vmatpush.bf16.msra.mxu0 %v960
    %2640 = vmatpush.bf16.msra.mxu0 %v952
    %2641 = vmatpush.bf16.msra.mxu0 %v944
    %2642 = vmatpush.bf16.msra.mxu0 %v936
    %2643 = vmatpush.bf16.msra.mxu0 %v928
    %2644 = vmatpush.bf16.msra.mxu0 %v920
    %2645 = vmatpush.bf16.msra.mxu0 %v912
    %2646 = vmatpush.bf16.msra.mxu0 %v904
    %2647 = vmatmul.bf16.gmra.mxu0 %v2559
    %v2648 = vpop.f32.mrf.mxu0
    %v2649 = vadd.f32 0.0, %v2648
    %v2650 = vpop.f32.mrf.mxu0
    %2651 = vdwg.mxu0
    %2652 = vmatpush.bf16.msra.mxu0 %v1024
    %2653 = vmatpush.bf16.msra.mxu0 %v1016
    %2654 = vmatpush.bf16.msra.mxu0 %v1008
    %2655 = vmatpush.bf16.msra.mxu0 %v1000
    %2656 = vmatpush.bf16.msra.mxu0 %v992
    %2657 = vmatpush.bf16.msra.mxu0 %v984
    %2658 = vmatpush.bf16.msra.mxu0 %v976
    %2659 = vmatpush.bf16.msra.mxu0 %v968
    %2660 = vmatmul.bf16.gmra.mxu0 %v2560
    %v2661 = vpop.f32.mrf.mxu0
    %v2662 = vadd.f32 %v2649, %v2661
    %v2663 = vpop.f32.mrf.mxu0
    %2664 = vdwg.mxu0
    %2665 = vmatpush.bf16.msra.mxu0 %v961
    %2666 = vmatpush.bf16.msra.mxu0 %v953
    %2667 = vmatpush.bf16.msra.mxu0 %v945
    %2668 = vmatpush.bf16.msra.mxu0 %v937
    %2669 = vmatpush.bf16.msra.mxu0 %v929
    %2670 = vmatpush.bf16.msra.mxu0 %v921
    %2671 = vmatpush.bf16.msra.mxu0 %v913
    %2672 = vmatpush.bf16.msra.mxu0 %v905
    %2673 = vmatmul.bf16.gmra.mxu0 %v2559
    %v2674 = vpop.f32.mrf.mxu0
    %v2675 = vadd.f32 0.0, %v2674
    %v2676 = vpop.f32.mrf.mxu0
    %2677 = vdwg.mxu0
    %2678 = vmatpush.bf16.msra.mxu0 %v1025
    %2679 = vmatpush.bf16.msra.mxu0 %v1017
    %2680 = vmatpush.bf16.msra.mxu0 %v1009
    %2681 = vmatpush.bf16.msra.mxu0 %v1001
    %2682 = vmatpush.bf16.msra.mxu0 %v993
    %2683 = vmatpush.bf16.msra.mxu0 %v985
    %2684 = vmatpush.bf16.msra.mxu0 %v977
    %2685 = vmatpush.bf16.msra.mxu0 %v969
    %2686 = vmatmul.bf16.gmra.mxu0 %v2560
    %v2687 = vpop.f32.mrf.mxu0
    %v2688 = vadd.f32 %v2675, %v2687
    %v2689 = vpop.f32.mrf.mxu0
    %2690 = vdwg.mxu0
    %2691 = vmatpush.bf16.msra.mxu0 %v962
    %2692 = vmatpush.bf16.msra.mxu0 %v954
    %2693 = vmatpush.bf16.msra.mxu0 %v946
    %2694 = vmatpush.bf16.msra.mxu0 %v938
    %2695 = vmatpush.bf16.msra.mxu0 %v930
    %2696 = vmatpush.bf16.msra.mxu0 %v922
    %2697 = vmatpush.bf16.msra.mxu0 %v914
    %2698 = vmatpush.bf16.msra.mxu0 %v906
    %2699 = vmatmul.bf16.gmra.mxu0 %v2559
    %v2700 = vpop.f32.mrf.mxu0
    %v2701 = vadd.f32 0.0, %v2700
    %v2702 = vpop.f32.mrf.mxu0
    %2703 = vdwg.mxu0
    %2704 = vmatpush.bf16.msra.mxu0 %v1026
    %2705 = vmatpush.bf16.msra.mxu0 %v1018
    %2706 = vmatpush.bf16.msra.mxu0 %v1010
    %2707 = vmatpush.bf16.msra.mxu0 %v1002
    %2708 = vmatpush.bf16.msra.mxu0 %v994
    %2709 = vmatpush.bf16.msra.mxu0 %v986
    %2710 = vmatpush.bf16.msra.mxu0 %v978
    %2711 = vmatpush.bf16.msra.mxu0 %v970
    %2712 = vmatmul.bf16.gmra.mxu0 %v2560
    %v2713 = vpop.f32.mrf.mxu0
    %v2714 = vadd.f32 %v2701, %v2713
    %v2715 = vpop.f32.mrf.mxu0
    %2716 = vdwg.mxu0
    %2717 = vmatpush.bf16.msra.mxu0 %v963
    %2718 = vmatpush.bf16.msra.mxu0 %v955
    %2719 = vmatpush.bf16.msra.mxu0 %v947
    %2720 = vmatpush.bf16.msra.mxu0 %v939
    %2721 = vmatpush.bf16.msra.mxu0 %v931
    %2722 = vmatpush.bf16.msra.mxu0 %v923
    %2723 = vmatpush.bf16.msra.mxu0 %v915
    %2724 = vmatpush.bf16.msra.mxu0 %v907
    %2725 = vmatmul.bf16.gmra.mxu0 %v2559
    %v2726 = vpop.f32.mrf.mxu0
    %v2727 = vadd.f32 0.0, %v2726
    %v2728 = vpop.f32.mrf.mxu0
    %2729 = vdwg.mxu0
    %2730 = vmatpush.bf16.msra.mxu0 %v1027
    %2731 = vmatpush.bf16.msra.mxu0 %v1019
    %2732 = vmatpush.bf16.msra.mxu0 %v1011
    %2733 = vmatpush.bf16.msra.mxu0 %v1003
    %2734 = vmatpush.bf16.msra.mxu0 %v995
    %2735 = vmatpush.bf16.msra.mxu0 %v987
    %2736 = vmatpush.bf16.msra.mxu0 %v979
    %2737 = vmatpush.bf16.msra.mxu0 %v971
    %2738 = vmatmul.bf16.gmra.mxu0 %v2560
    %v2739 = vpop.f32.mrf.mxu0
    %v2740 = vadd.f32 %v2727, %v2739
    %v2741 = vpop.f32.mrf.mxu0
    %2742 = vdwg.mxu0
    %2743 = vmatpush.bf16.msra.mxu0 %v964
    %2744 = vmatpush.bf16.msra.mxu0 %v956
    %2745 = vmatpush.bf16.msra.mxu0 %v948
    %2746 = vmatpush.bf16.msra.mxu0 %v940
    %2747 = vmatpush.bf16.msra.mxu0 %v932
    %2748 = vmatpush.bf16.msra.mxu0 %v924
    %2749 = vmatpush.bf16.msra.mxu0 %v916
    %2750 = vmatpush.bf16.msra.mxu0 %v908
    %2751 = vmatmul.bf16.gmra.mxu0 %v2559
    %v2752 = vpop.f32.mrf.mxu0
    %v2753 = vadd.f32 0.0, %v2752
    %v2754 = vpop.f32.mrf.mxu0
    %2755 = vdwg.mxu0
    %2756 = vmatpush.bf16.msra.mxu0 %v1028
    %2757 = vmatpush.bf16.msra.mxu0 %v1020
    %2758 = vmatpush.bf16.msra.mxu0 %v1012
    %2759 = vmatpush.bf16.msra.mxu0 %v1004
    %2760 = vmatpush.bf16.msra.mxu0 %v996
    %2761 = vmatpush.bf16.msra.mxu0 %v988
    %2762 = vmatpush.bf16.msra.mxu0 %v980
    %2763 = vmatpush.bf16.msra.mxu0 %v972
    %2764 = vmatmul.bf16.gmra.mxu0 %v2560
    %v2765 = vpop.f32.mrf.mxu0
    %v2766 = vadd.f32 %v2753, %v2765
    %v2767 = vpop.f32.mrf.mxu0
    %2768 = vdwg.mxu0
    %v2769 = vadd.f32 %v2688, %v306
    %v2770 = vadd.f32 %v2714, %v307
    %v2771 = vadd.f32 %v2740, %v308
    %v2772 = vadd.f32 %v2766, %v309
    %v2773 = vxor.u32 %v2769, 2147483648
    %v2774 = vmul.f32 %v2773, 1.442695
    %v2775 = vpow.pop %v2774
    %v2776 = vadd.f32 %v2775, 1.0
    %v2777 = vrcp.pop %v2776
    %v2778 = vmul.f32 %v2776, %v2777
    %v2779 = vsub.f32 1.0, %v2778
    %v2780 = vmul.f32 %v2777, %v2779
    %v2781 = vadd.f32 %v2777, %v2780
    %vm2782 = vweird.f32 %v2776
    %vm2783 = vweird.f32 %v2777
    %vm2784 = vmor %vm2782, %vm2783
    %v2785 = vsel %vm2784, %v2777, %v2781
    %v2786 = vand.u32 2147483647, %v2776
    %vm2787 = vcmp.eq.f32.partialorder %v2786, 8.507059e+37
    %v2788 = vand.u32 %v2776, 2147483648
    %v2789 = vor.u32 1.1754944e-38, %v2788
    %v2790 = vsel %vm2787, %v2789, %v2785
    %v2791 = vmul.f32 1.0, %v2790
    %v2792 = vxor.u32 %v2770, 2147483648
    %v2793 = vmul.f32 %v2792, 1.442695
    %v2794 = vpow.pop %v2793
    %v2795 = vadd.f32 %v2794, 1.0
    %v2796 = vrcp.pop %v2795
    %v2797 = vmul.f32 %v2795, %v2796
    %v2798 = vsub.f32 1.0, %v2797
    %v2799 = vmul.f32 %v2796, %v2798
    %v2800 = vadd.f32 %v2796, %v2799
    %vm2801 = vweird.f32 %v2795
    %vm2802 = vweird.f32 %v2796
    %vm2803 = vmor %vm2801, %vm2802
    %v2804 = vsel %vm2803, %v2796, %v2800
    %v2805 = vand.u32 2147483647, %v2795
    %vm2806 = vcmp.eq.f32.partialorder %v2805, 8.507059e+37
    %v2807 = vand.u32 %v2795, 2147483648
    %v2808 = vor.u32 1.1754944e-38, %v2807
    %v2809 = vsel %vm2806, %v2808, %v2804
    %v2810 = vmul.f32 1.0, %v2809
    %v2811 = vtanh.pop %v2771
    %v2812 = vxor.u32 %v2772, 2147483648
    %v2813 = vmul.f32 %v2812, 1.442695
    %v2814 = vpow.pop %v2813
    %v2815 = vadd.f32 %v2814, 1.0
    %v2816 = vrcp.pop %v2815
    %v2817 = vmul.f32 %v2815, %v2816
    %v2818 = vsub.f32 1.0, %v2817
    %v2819 = vmul.f32 %v2816, %v2818
    %v2820 = vadd.f32 %v2816, %v2819
    %vm2821 = vweird.f32 %v2815
    %vm2822 = vweird.f32 %v2816
    %vm2823 = vmor %vm2821, %vm2822
    %v2824 = vsel %vm2823, %v2816, %v2820
    %v2825 = vand.u32 2147483647, %v2815
    %vm2826 = vcmp.eq.f32.partialorder %v2825, 8.507059e+37
    %v2827 = vand.u32 %v2815, 2147483648
    %v2828 = vor.u32 1.1754944e-38, %v2827
    %v2829 = vsel %vm2826, %v2828, %v2824
    %v2830 = vmul.f32 1.0, %v2829
    %v2831 = vmul.f32 %v2810, %v2482
    %v2832 = vmul.f32 %v2791, %v2811
    %v2833 = vadd.f32 %v2831, %v2832
    %v2834 = vtanh.pop %v2833
    %v2835 = vmul.f32 %v2830, %v2834
    %s2836 = smul.u32 5, 4
    %s2837 = smul.addr %s2836, 8
    %s2838 = scalar_lea.vmem [#allocation2], %s2837
    %v2839 = vld [vmem:[%s2838] sm:$0xff]
    %v2840 = vld [vmem:[%s2838 + $0x8] sm:$0xff]
    %v2841 = vld [vmem:[%s2838 + $0x10] sm:$0xff]
    %v2842 = vld [vmem:[%s2838 + $0x18] sm:$0xff]
    %v2843 = vadd.f32 %v2839, %v2584
    %v2844 = vadd.f32 %v2840, %v2610
    %v2845 = vadd.f32 %v2841, %v2636
    %v2846 = vadd.f32 %v2842, %v2662
    %v2847 = vxor.u32 %v2843, 2147483648
    %v2848 = vmul.f32 %v2847, 1.442695
    %v2849 = vpow.pop %v2848
    %v2850 = vadd.f32 %v2849, 1.0
    %v2851 = vrcp.pop %v2850
    %v2852 = vmul.f32 %v2850, %v2851
    %v2853 = vsub.f32 1.0, %v2852
    %v2854 = vmul.f32 %v2851, %v2853
    %v2855 = vadd.f32 %v2851, %v2854
    %vm2856 = vweird.f32 %v2850
    %vm2857 = vweird.f32 %v2851
    %vm2858 = vmor %vm2856, %vm2857
    %v2859 = vsel %vm2858, %v2851, %v2855
    %v2860 = vand.u32 2147483647, %v2850
    %vm2861 = vcmp.eq.f32.partialorder %v2860, 8.507059e+37
    %v2862 = vand.u32 %v2850, 2147483648
    %v2863 = vor.u32 1.1754944e-38, %v2862
    %v2864 = vsel %vm2861, %v2863, %v2859
    %v2865 = vmul.f32 1.0, %v2864
    %v2866 = vxor.u32 %v2844, 2147483648
    %v2867 = vmul.f32 %v2866, 1.442695
    %v2868 = vpow.pop %v2867
    %v2869 = vadd.f32 %v2868, 1.0
    %v2870 = vrcp.pop %v2869
    %v2871 = vmul.f32 %v2869, %v2870
    %v2872 = vsub.f32 1.0, %v2871
    %v2873 = vmul.f32 %v2870, %v2872
    %v2874 = vadd.f32 %v2870, %v2873
    %vm2875 = vweird.f32 %v2869
    %vm2876 = vweird.f32 %v2870
    %vm2877 = vmor %vm2875, %vm2876
    %v2878 = vsel %vm2877, %v2870, %v2874
    %v2879 = vand.u32 2147483647, %v2869
    %vm2880 = vcmp.eq.f32.partialorder %v2879, 8.507059e+37
    %v2881 = vand.u32 %v2869, 2147483648
    %v2882 = vor.u32 1.1754944e-38, %v2881
    %v2883 = vsel %vm2880, %v2882, %v2878
    %v2884 = vmul.f32 1.0, %v2883
    %v2885 = vtanh.pop %v2845
    %v2886 = vxor.u32 %v2846, 2147483648
    %v2887 = vmul.f32 %v2886, 1.442695
    %v2888 = vpow.pop %v2887
    %v2889 = vadd.f32 %v2888, 1.0
    %v2890 = vrcp.pop %v2889
    %v2891 = vmul.f32 %v2889, %v2890
    %v2892 = vsub.f32 1.0, %v2891
    %v2893 = vmul.f32 %v2890, %v2892
    %v2894 = vadd.f32 %v2890, %v2893
    %vm2895 = vweird.f32 %v2889
    %vm2896 = vweird.f32 %v2890
    %vm2897 = vmor %vm2895, %vm2896
    %v2898 = vsel %vm2897, %v2890, %v2894
    %v2899 = vand.u32 2147483647, %v2889
    %vm2900 = vcmp.eq.f32.partialorder %v2899, 8.507059e+37
    %v2901 = vand.u32 %v2889, 2147483648
    %v2902 = vor.u32 1.1754944e-38, %v2901
    %v2903 = vsel %vm2900, %v2902, %v2898
    %v2904 = vmul.f32 1.0, %v2903
    %v2905 = vmul.f32 %v2884, %v2556
    %v2906 = vmul.f32 %v2865, %v2885
    %v2907 = vadd.f32 %v2905, %v2906
    %v2908 = vtanh.pop %v2907
    %v2909 = vmul.f32 %v2904, %v2908
    %v2910 = vpack.c.bf16 %v2909, %v2909
    %v2911 = vpack.c.bf16 %v2835, %v2835
    %2912 = vmatpush.bf16.msra.mxu0 %v957
    %2913 = vmatpush.bf16.msra.mxu0 %v949
    %2914 = vmatpush.bf16.msra.mxu0 %v941
    %2915 = vmatpush.bf16.msra.mxu0 %v933
    %2916 = vmatpush.bf16.msra.mxu0 %v925
    %2917 = vmatpush.bf16.msra.mxu0 %v917
    %2918 = vmatpush.bf16.msra.mxu0 %v909
    %2919 = vmatpush.bf16.msra.mxu0 %v901
    %2920 = vmatmul.bf16.gmra.mxu0 %v2910
    %v2921 = vpop.f32.mrf.mxu0
    %v2922 = vadd.f32 0.0, %v2921
    %v2923 = vpop.f32.mrf.mxu0
    %2924 = vdwg.mxu0
    %2925 = vmatpush.bf16.msra.mxu0 %v1021
    %2926 = vmatpush.bf16.msra.mxu0 %v1013
    %2927 = vmatpush.bf16.msra.mxu0 %v1005
    %2928 = vmatpush.bf16.msra.mxu0 %v997
    %2929 = vmatpush.bf16.msra.mxu0 %v989
    %2930 = vmatpush.bf16.msra.mxu0 %v981
    %2931 = vmatpush.bf16.msra.mxu0 %v973
    %2932 = vmatpush.bf16.msra.mxu0 %v965
    %2933 = vmatmul.bf16.gmra.mxu0 %v2911
    %v2934 = vpop.f32.mrf.mxu0
    %v2935 = vadd.f32 %v2922, %v2934
    %v2936 = vpop.f32.mrf.mxu0
    %2937 = vdwg.mxu0
    %2938 = vmatpush.bf16.msra.mxu0 %v958
    %2939 = vmatpush.bf16.msra.mxu0 %v950
    %2940 = vmatpush.bf16.msra.mxu0 %v942
    %2941 = vmatpush.bf16.msra.mxu0 %v934
    %2942 = vmatpush.bf16.msra.mxu0 %v926
    %2943 = vmatpush.bf16.msra.mxu0 %v918
    %2944 = vmatpush.bf16.msra.mxu0 %v910
    %2945 = vmatpush.bf16.msra.mxu0 %v902
    %2946 = vmatmul.bf16.gmra.mxu0 %v2910
    %v2947 = vpop.f32.mrf.mxu0
    %v2948 = vadd.f32 0.0, %v2947
    %v2949 = vpop.f32.mrf.mxu0
    %2950 = vdwg.mxu0
    %2951 = vmatpush.bf16.msra.mxu0 %v1022
    %2952 = vmatpush.bf16.msra.mxu0 %v1014
    %2953 = vmatpush.bf16.msra.mxu0 %v1006
    %2954 = vmatpush.bf16.msra.mxu0 %v998
    %2955 = vmatpush.bf16.msra.mxu0 %v990
    %2956 = vmatpush.bf16.msra.mxu0 %v982
    %2957 = vmatpush.bf16.msra.mxu0 %v974
    %2958 = vmatpush.bf16.msra.mxu0 %v966
    %2959 = vmatmul.bf16.gmra.mxu0 %v2911
    %v2960 = vpop.f32.mrf.mxu0
    %v2961 = vadd.f32 %v2948, %v2960
    %v2962 = vpop.f32.mrf.mxu0
    %2963 = vdwg.mxu0
    %2964 = vmatpush.bf16.msra.mxu0 %v959
    %2965 = vmatpush.bf16.msra.mxu0 %v951
    %2966 = vmatpush.bf16.msra.mxu0 %v943
    %2967 = vmatpush.bf16.msra.mxu0 %v935
    %2968 = vmatpush.bf16.msra.mxu0 %v927
    %2969 = vmatpush.bf16.msra.mxu0 %v919
    %2970 = vmatpush.bf16.msra.mxu0 %v911
    %2971 = vmatpush.bf16.msra.mxu0 %v903
    %2972 = vmatmul.bf16.gmra.mxu0 %v2910
    %v2973 = vpop.f32.mrf.mxu0
    %v2974 = vadd.f32 0.0, %v2973
    %v2975 = vpop.f32.mrf.mxu0
    %2976 = vdwg.mxu0
    %2977 = vmatpush.bf16.msra.mxu0 %v1023
    %2978 = vmatpush.bf16.msra.mxu0 %v1015
    %2979 = vmatpush.bf16.msra.mxu0 %v1007
    %2980 = vmatpush.bf16.msra.mxu0 %v999
    %2981 = vmatpush.bf16.msra.mxu0 %v991
    %2982 = vmatpush.bf16.msra.mxu0 %v983
    %2983 = vmatpush.bf16.msra.mxu0 %v975
    %2984 = vmatpush.bf16.msra.mxu0 %v967
    %2985 = vmatmul.bf16.gmra.mxu0 %v2911
    %v2986 = vpop.f32.mrf.mxu0
    %v2987 = vadd.f32 %v2974, %v2986
    %v2988 = vpop.f32.mrf.mxu0
    %2989 = vdwg.mxu0
    %2990 = vmatpush.bf16.msra.mxu0 %v960
    %2991 = vmatpush.bf16.msra.mxu0 %v952
    %2992 = vmatpush.bf16.msra.mxu0 %v944
    %2993 = vmatpush.bf16.msra.mxu0 %v936
    %2994 = vmatpush.bf16.msra.mxu0 %v928
    %2995 = vmatpush.bf16.msra.mxu0 %v920
    %2996 = vmatpush.bf16.msra.mxu0 %v912
    %2997 = vmatpush.bf16.msra.mxu0 %v904
    %2998 = vmatmul.bf16.gmra.mxu0 %v2910
    %v2999 = vpop.f32.mrf.mxu0
    %v3000 = vadd.f32 0.0, %v2999
    %v3001 = vpop.f32.mrf.mxu0
    %3002 = vdwg.mxu0
    %3003 = vmatpush.bf16.msra.mxu0 %v1024
    %3004 = vmatpush.bf16.msra.mxu0 %v1016
    %3005 = vmatpush.bf16.msra.mxu0 %v1008
    %3006 = vmatpush.bf16.msra.mxu0 %v1000
    %3007 = vmatpush.bf16.msra.mxu0 %v992
    %3008 = vmatpush.bf16.msra.mxu0 %v984
    %3009 = vmatpush.bf16.msra.mxu0 %v976
    %3010 = vmatpush.bf16.msra.mxu0 %v968
    %3011 = vmatmul.bf16.gmra.mxu0 %v2911
    %v3012 = vpop.f32.mrf.mxu0
    %v3013 = vadd.f32 %v3000, %v3012
    %v3014 = vpop.f32.mrf.mxu0
    %3015 = vdwg.mxu0
    %3016 = vmatpush.bf16.msra.mxu0 %v961
    %3017 = vmatpush.bf16.msra.mxu0 %v953
    %3018 = vmatpush.bf16.msra.mxu0 %v945
    %3019 = vmatpush.bf16.msra.mxu0 %v937
    %3020 = vmatpush.bf16.msra.mxu0 %v929
    %3021 = vmatpush.bf16.msra.mxu0 %v921
    %3022 = vmatpush.bf16.msra.mxu0 %v913
    %3023 = vmatpush.bf16.msra.mxu0 %v905
    %3024 = vmatmul.bf16.gmra.mxu0 %v2910
    %v3025 = vpop.f32.mrf.mxu0
    %v3026 = vadd.f32 0.0, %v3025
    %v3027 = vpop.f32.mrf.mxu0
    %3028 = vdwg.mxu0
    %3029 = vmatpush.bf16.msra.mxu0 %v1025
    %3030 = vmatpush.bf16.msra.mxu0 %v1017
    %3031 = vmatpush.bf16.msra.mxu0 %v1009
    %3032 = vmatpush.bf16.msra.mxu0 %v1001
    %3033 = vmatpush.bf16.msra.mxu0 %v993
    %3034 = vmatpush.bf16.msra.mxu0 %v985
    %3035 = vmatpush.bf16.msra.mxu0 %v977
    %3036 = vmatpush.bf16.msra.mxu0 %v969
    %3037 = vmatmul.bf16.gmra.mxu0 %v2911
    %v3038 = vpop.f32.mrf.mxu0
    %v3039 = vadd.f32 %v3026, %v3038
    %v3040 = vpop.f32.mrf.mxu0
    %3041 = vdwg.mxu0
    %3042 = vmatpush.bf16.msra.mxu0 %v962
    %3043 = vmatpush.bf16.msra.mxu0 %v954
    %3044 = vmatpush.bf16.msra.mxu0 %v946
    %3045 = vmatpush.bf16.msra.mxu0 %v938
    %3046 = vmatpush.bf16.msra.mxu0 %v930
    %3047 = vmatpush.bf16.msra.mxu0 %v922
    %3048 = vmatpush.bf16.msra.mxu0 %v914
    %3049 = vmatpush.bf16.msra.mxu0 %v906
    %3050 = vmatmul.bf16.gmra.mxu0 %v2910
    %v3051 = vpop.f32.mrf.mxu0
    %v3052 = vadd.f32 0.0, %v3051
    %v3053 = vpop.f32.mrf.mxu0
    %3054 = vdwg.mxu0
    %3055 = vmatpush.bf16.msra.mxu0 %v1026
    %3056 = vmatpush.bf16.msra.mxu0 %v1018
    %3057 = vmatpush.bf16.msra.mxu0 %v1010
    %3058 = vmatpush.bf16.msra.mxu0 %v1002
    %3059 = vmatpush.bf16.msra.mxu0 %v994
    %3060 = vmatpush.bf16.msra.mxu0 %v986
    %3061 = vmatpush.bf16.msra.mxu0 %v978
    %3062 = vmatpush.bf16.msra.mxu0 %v970
    %3063 = vmatmul.bf16.gmra.mxu0 %v2911
    %v3064 = vpop.f32.mrf.mxu0
    %v3065 = vadd.f32 %v3052, %v3064
    %v3066 = vpop.f32.mrf.mxu0
    %3067 = vdwg.mxu0
    %3068 = vmatpush.bf16.msra.mxu0 %v963
    %3069 = vmatpush.bf16.msra.mxu0 %v955
    %3070 = vmatpush.bf16.msra.mxu0 %v947
    %3071 = vmatpush.bf16.msra.mxu0 %v939
    %3072 = vmatpush.bf16.msra.mxu0 %v931
    %3073 = vmatpush.bf16.msra.mxu0 %v923
    %3074 = vmatpush.bf16.msra.mxu0 %v915
    %3075 = vmatpush.bf16.msra.mxu0 %v907
    %3076 = vmatmul.bf16.gmra.mxu0 %v2910
    %v3077 = vpop.f32.mrf.mxu0
    %v3078 = vadd.f32 0.0, %v3077
    %v3079 = vpop.f32.mrf.mxu0
    %3080 = vdwg.mxu0
    %3081 = vmatpush.bf16.msra.mxu0 %v1027
    %3082 = vmatpush.bf16.msra.mxu0 %v1019
    %3083 = vmatpush.bf16.msra.mxu0 %v1011
    %3084 = vmatpush.bf16.msra.mxu0 %v1003
    %3085 = vmatpush.bf16.msra.mxu0 %v995
    %3086 = vmatpush.bf16.msra.mxu0 %v987
    %3087 = vmatpush.bf16.msra.mxu0 %v979
    %3088 = vmatpush.bf16.msra.mxu0 %v971
    %3089 = vmatmul.bf16.gmra.mxu0 %v2911
    %v3090 = vpop.f32.mrf.mxu0
    %v3091 = vadd.f32 %v3078, %v3090
    %v3092 = vpop.f32.mrf.mxu0
    %3093 = vdwg.mxu0
    %3094 = vmatpush.bf16.msra.mxu0 %v964
    %3095 = vmatpush.bf16.msra.mxu0 %v956
    %3096 = vmatpush.bf16.msra.mxu0 %v948
    %3097 = vmatpush.bf16.msra.mxu0 %v940
    %3098 = vmatpush.bf16.msra.mxu0 %v932
    %3099 = vmatpush.bf16.msra.mxu0 %v924
    %3100 = vmatpush.bf16.msra.mxu0 %v916
    %3101 = vmatpush.bf16.msra.mxu0 %v908
    %3102 = vmatmul.bf16.gmra.mxu0 %v2910
    %v3103 = vpop.f32.mrf.mxu0
    %v3104 = vadd.f32 0.0, %v3103
    %v3105 = vpop.f32.mrf.mxu0
    %3106 = vdwg.mxu0
    %3107 = vmatpush.bf16.msra.mxu0 %v1028
    %3108 = vmatpush.bf16.msra.mxu0 %v1020
    %3109 = vmatpush.bf16.msra.mxu0 %v1012
    %3110 = vmatpush.bf16.msra.mxu0 %v1004
    %3111 = vmatpush.bf16.msra.mxu0 %v996
    %3112 = vmatpush.bf16.msra.mxu0 %v988
    %3113 = vmatpush.bf16.msra.mxu0 %v980
    %3114 = vmatpush.bf16.msra.mxu0 %v972
    %3115 = vmatmul.bf16.gmra.mxu0 %v2911
    %v3116 = vpop.f32.mrf.mxu0
    %v3117 = vadd.f32 %v3104, %v3116
    %v3118 = vpop.f32.mrf.mxu0
    %3119 = vdwg.mxu0
    %v3120 = vadd.f32 %v3039, %v306
    %v3121 = vadd.f32 %v3065, %v307
    %v3122 = vadd.f32 %v3091, %v308
    %v3123 = vadd.f32 %v3117, %v309
    %v3124 = vxor.u32 %v3120, 2147483648
    %v3125 = vmul.f32 %v3124, 1.442695
    %v3126 = vpow.pop %v3125
    %v3127 = vadd.f32 %v3126, 1.0
    %v3128 = vrcp.pop %v3127
    %v3129 = vmul.f32 %v3127, %v3128
    %v3130 = vsub.f32 1.0, %v3129
    %v3131 = vmul.f32 %v3128, %v3130
    %v3132 = vadd.f32 %v3128, %v3131
    %vm3133 = vweird.f32 %v3127
    %vm3134 = vweird.f32 %v3128
    %vm3135 = vmor %vm3133, %vm3134
    %v3136 = vsel %vm3135, %v3128, %v3132
    %v3137 = vand.u32 2147483647, %v3127
    %vm3138 = vcmp.eq.f32.partialorder %v3137, 8.507059e+37
    %v3139 = vand.u32 %v3127, 2147483648
    %v3140 = vor.u32 1.1754944e-38, %v3139
    %v3141 = vsel %vm3138, %v3140, %v3136
    %v3142 = vmul.f32 1.0, %v3141
    %v3143 = vxor.u32 %v3121, 2147483648
    %v3144 = vmul.f32 %v3143, 1.442695
    %v3145 = vpow.pop %v3144
    %v3146 = vadd.f32 %v3145, 1.0
    %v3147 = vrcp.pop %v3146
    %v3148 = vmul.f32 %v3146, %v3147
    %v3149 = vsub.f32 1.0, %v3148
    %v3150 = vmul.f32 %v3147, %v3149
    %v3151 = vadd.f32 %v3147, %v3150
    %vm3152 = vweird.f32 %v3146
    %vm3153 = vweird.f32 %v3147
    %vm3154 = vmor %vm3152, %vm3153
    %v3155 = vsel %vm3154, %v3147, %v3151
    %v3156 = vand.u32 2147483647, %v3146
    %vm3157 = vcmp.eq.f32.partialorder %v3156, 8.507059e+37
    %v3158 = vand.u32 %v3146, 2147483648
    %v3159 = vor.u32 1.1754944e-38, %v3158
    %v3160 = vsel %vm3157, %v3159, %v3155
    %v3161 = vmul.f32 1.0, %v3160
    %v3162 = vtanh.pop %v3122
    %v3163 = vxor.u32 %v3123, 2147483648
    %v3164 = vmul.f32 %v3163, 1.442695
    %v3165 = vpow.pop %v3164
    %v3166 = vadd.f32 %v3165, 1.0
    %v3167 = vrcp.pop %v3166
    %v3168 = vmul.f32 %v3166, %v3167
    %v3169 = vsub.f32 1.0, %v3168
    %v3170 = vmul.f32 %v3167, %v3169
    %v3171 = vadd.f32 %v3167, %v3170
    %vm3172 = vweird.f32 %v3166
    %vm3173 = vweird.f32 %v3167
    %vm3174 = vmor %vm3172, %vm3173
    %v3175 = vsel %vm3174, %v3167, %v3171
    %v3176 = vand.u32 2147483647, %v3166
    %vm3177 = vcmp.eq.f32.partialorder %v3176, 8.507059e+37
    %v3178 = vand.u32 %v3166, 2147483648
    %v3179 = vor.u32 1.1754944e-38, %v3178
    %v3180 = vsel %vm3177, %v3179, %v3175
    %v3181 = vmul.f32 1.0, %v3180
    %v3182 = vmul.f32 %v3161, %v2833
    %v3183 = vmul.f32 %v3142, %v3162
    %v3184 = vadd.f32 %v3182, %v3183
    %v3185 = vtanh.pop %v3184
    %v3186 = vmul.f32 %v3181, %v3185
    %s3187 = smul.u32 6, 4
    %s3188 = smul.addr %s3187, 8
    %s3189 = scalar_lea.vmem [#allocation2], %s3188
    %v3190 = vld [vmem:[%s3189] sm:$0xff]
    %v3191 = vld [vmem:[%s3189 + $0x8] sm:$0xff]
    %v3192 = vld [vmem:[%s3189 + $0x10] sm:$0xff]
    %v3193 = vld [vmem:[%s3189 + $0x18] sm:$0xff]
    %v3194 = vadd.f32 %v3190, %v2935
    %v3195 = vadd.f32 %v3191, %v2961
    %v3196 = vadd.f32 %v3192, %v2987
    %v3197 = vadd.f32 %v3193, %v3013
    %v3198 = vxor.u32 %v3194, 2147483648
    %v3199 = vmul.f32 %v3198, 1.442695
    %v3200 = vpow.pop %v3199
    %v3201 = vadd.f32 %v3200, 1.0
    %v3202 = vrcp.pop %v3201
    %v3203 = vmul.f32 %v3201, %v3202
    %v3204 = vsub.f32 1.0, %v3203
    %v3205 = vmul.f32 %v3202, %v3204
    %v3206 = vadd.f32 %v3202, %v3205
    %vm3207 = vweird.f32 %v3201
    %vm3208 = vweird.f32 %v3202
    %vm3209 = vmor %vm3207, %vm3208
    %v3210 = vsel %vm3209, %v3202, %v3206
    %v3211 = vand.u32 2147483647, %v3201
    %vm3212 = vcmp.eq.f32.partialorder %v3211, 8.507059e+37
    %v3213 = vand.u32 %v3201, 2147483648
    %v3214 = vor.u32 1.1754944e-38, %v3213
    %v3215 = vsel %vm3212, %v3214, %v3210
    %v3216 = vmul.f32 1.0, %v3215
    %v3217 = vxor.u32 %v3195, 2147483648
    %v3218 = vmul.f32 %v3217, 1.442695
    %v3219 = vpow.pop %v3218
    %v3220 = vadd.f32 %v3219, 1.0
    %v3221 = vrcp.pop %v3220
    %v3222 = vmul.f32 %v3220, %v3221
    %v3223 = vsub.f32 1.0, %v3222
    %v3224 = vmul.f32 %v3221, %v3223
    %v3225 = vadd.f32 %v3221, %v3224
    %vm3226 = vweird.f32 %v3220
    %vm3227 = vweird.f32 %v3221
    %vm3228 = vmor %vm3226, %vm3227
    %v3229 = vsel %vm3228, %v3221, %v3225
    %v3230 = vand.u32 2147483647, %v3220
    %vm3231 = vcmp.eq.f32.partialorder %v3230, 8.507059e+37
    %v3232 = vand.u32 %v3220, 2147483648
    %v3233 = vor.u32 1.1754944e-38, %v3232
    %v3234 = vsel %vm3231, %v3233, %v3229
    %v3235 = vmul.f32 1.0, %v3234
    %v3236 = vtanh.pop %v3196
    %v3237 = vxor.u32 %v3197, 2147483648
    %v3238 = vmul.f32 %v3237, 1.442695
    %v3239 = vpow.pop %v3238
    %v3240 = vadd.f32 %v3239, 1.0
    %v3241 = vrcp.pop %v3240
    %v3242 = vmul.f32 %v3240, %v3241
    %v3243 = vsub.f32 1.0, %v3242
    %v3244 = vmul.f32 %v3241, %v3243
    %v3245 = vadd.f32 %v3241, %v3244
    %vm3246 = vweird.f32 %v3240
    %vm3247 = vweird.f32 %v3241
    %vm3248 = vmor %vm3246, %vm3247
    %v3249 = vsel %vm3248, %v3241, %v3245
    %v3250 = vand.u32 2147483647, %v3240
    %vm3251 = vcmp.eq.f32.partialorder %v3250, 8.507059e+37
    %v3252 = vand.u32 %v3240, 2147483648
    %v3253 = vor.u32 1.1754944e-38, %v3252
    %v3254 = vsel %vm3251, %v3253, %v3249
    %v3255 = vmul.f32 1.0, %v3254
    %v3256 = vmul.f32 %v3235, %v2907
    %v3257 = vmul.f32 %v3216, %v3236
    %v3258 = vadd.f32 %v3256, %v3257
    %v3259 = vtanh.pop %v3258
    %v3260 = vmul.f32 %v3255, %v3259
    %v3261 = vpack.c.bf16 %v3260, %v3260
    %v3262 = vpack.c.bf16 %v3186, %v3186
    %3263 = vmatpush.bf16.msra.mxu0 %v957
    %3264 = vmatpush.bf16.msra.mxu0 %v949
    %3265 = vmatpush.bf16.msra.mxu0 %v941
    %3266 = vmatpush.bf16.msra.mxu0 %v933
    %3267 = vmatpush.bf16.msra.mxu0 %v925
    %3268 = vmatpush.bf16.msra.mxu0 %v917
    %3269 = vmatpush.bf16.msra.mxu0 %v909
    %3270 = vmatpush.bf16.msra.mxu0 %v901
    %3271 = vmatmul.bf16.gmra.mxu0 %v3261
    %v3272 = vpop.f32.mrf.mxu0
    %v3273 = vadd.f32 0.0, %v3272
    %v3274 = vpop.f32.mrf.mxu0
    %3275 = vdwg.mxu0
    %3276 = vmatpush.bf16.msra.mxu0 %v1021
    %3277 = vmatpush.bf16.msra.mxu0 %v1013
    %3278 = vmatpush.bf16.msra.mxu0 %v1005
    %3279 = vmatpush.bf16.msra.mxu0 %v997
    %3280 = vmatpush.bf16.msra.mxu0 %v989
    %3281 = vmatpush.bf16.msra.mxu0 %v981
    %3282 = vmatpush.bf16.msra.mxu0 %v973
    %3283 = vmatpush.bf16.msra.mxu0 %v965
    %3284 = vmatmul.bf16.gmra.mxu0 %v3262
    %v3285 = vpop.f32.mrf.mxu0
    %v3286 = vadd.f32 %v3273, %v3285
    %v3287 = vpop.f32.mrf.mxu0
    %3288 = vdwg.mxu0
    %3289 = vmatpush.bf16.msra.mxu0 %v958
    %3290 = vmatpush.bf16.msra.mxu0 %v950
    %3291 = vmatpush.bf16.msra.mxu0 %v942
    %3292 = vmatpush.bf16.msra.mxu0 %v934
    %3293 = vmatpush.bf16.msra.mxu0 %v926
    %3294 = vmatpush.bf16.msra.mxu0 %v918
    %3295 = vmatpush.bf16.msra.mxu0 %v910
    %3296 = vmatpush.bf16.msra.mxu0 %v902
    %3297 = vmatmul.bf16.gmra.mxu0 %v3261
    %v3298 = vpop.f32.mrf.mxu0
    %v3299 = vadd.f32 0.0, %v3298
    %v3300 = vpop.f32.mrf.mxu0
    %3301 = vdwg.mxu0
    %3302 = vmatpush.bf16.msra.mxu0 %v1022
    %3303 = vmatpush.bf16.msra.mxu0 %v1014
    %3304 = vmatpush.bf16.msra.mxu0 %v1006
    %3305 = vmatpush.bf16.msra.mxu0 %v998
    %3306 = vmatpush.bf16.msra.mxu0 %v990
    %3307 = vmatpush.bf16.msra.mxu0 %v982
    %3308 = vmatpush.bf16.msra.mxu0 %v974
    %3309 = vmatpush.bf16.msra.mxu0 %v966
    %3310 = vmatmul.bf16.gmra.mxu0 %v3262
    %v3311 = vpop.f32.mrf.mxu0
    %v3312 = vadd.f32 %v3299, %v3311
    %v3313 = vpop.f32.mrf.mxu0
    %3314 = vdwg.mxu0
    %3315 = vmatpush.bf16.msra.mxu0 %v959
    %3316 = vmatpush.bf16.msra.mxu0 %v951
    %3317 = vmatpush.bf16.msra.mxu0 %v943
    %3318 = vmatpush.bf16.msra.mxu0 %v935
    %3319 = vmatpush.bf16.msra.mxu0 %v927
    %3320 = vmatpush.bf16.msra.mxu0 %v919
    %3321 = vmatpush.bf16.msra.mxu0 %v911
    %3322 = vmatpush.bf16.msra.mxu0 %v903
    %3323 = vmatmul.bf16.gmra.mxu0 %v3261
    %v3324 = vpop.f32.mrf.mxu0
    %v3325 = vadd.f32 0.0, %v3324
    %v3326 = vpop.f32.mrf.mxu0
    %3327 = vdwg.mxu0
    %3328 = vmatpush.bf16.msra.mxu0 %v1023
    %3329 = vmatpush.bf16.msra.mxu0 %v1015
    %3330 = vmatpush.bf16.msra.mxu0 %v1007
    %3331 = vmatpush.bf16.msra.mxu0 %v999
    %3332 = vmatpush.bf16.msra.mxu0 %v991
    %3333 = vmatpush.bf16.msra.mxu0 %v983
    %3334 = vmatpush.bf16.msra.mxu0 %v975
    %3335 = vmatpush.bf16.msra.mxu0 %v967
    %3336 = vmatmul.bf16.gmra.mxu0 %v3262
    %v3337 = vpop.f32.mrf.mxu0
    %v3338 = vadd.f32 %v3325, %v3337
    %v3339 = vpop.f32.mrf.mxu0
    %3340 = vdwg.mxu0
    %3341 = vmatpush.bf16.msra.mxu0 %v960
    %3342 = vmatpush.bf16.msra.mxu0 %v952
    %3343 = vmatpush.bf16.msra.mxu0 %v944
    %3344 = vmatpush.bf16.msra.mxu0 %v936
    %3345 = vmatpush.bf16.msra.mxu0 %v928
    %3346 = vmatpush.bf16.msra.mxu0 %v920
    %3347 = vmatpush.bf16.msra.mxu0 %v912
    %3348 = vmatpush.bf16.msra.mxu0 %v904
    %3349 = vmatmul.bf16.gmra.mxu0 %v3261
    %v3350 = vpop.f32.mrf.mxu0
    %v3351 = vadd.f32 0.0, %v3350
    %v3352 = vpop.f32.mrf.mxu0
    %3353 = vdwg.mxu0
    %3354 = vmatpush.bf16.msra.mxu0 %v1024
    %3355 = vmatpush.bf16.msra.mxu0 %v1016
    %3356 = vmatpush.bf16.msra.mxu0 %v1008
    %3357 = vmatpush.bf16.msra.mxu0 %v1000
    %3358 = vmatpush.bf16.msra.mxu0 %v992
    %3359 = vmatpush.bf16.msra.mxu0 %v984
    %3360 = vmatpush.bf16.msra.mxu0 %v976
    %3361 = vmatpush.bf16.msra.mxu0 %v968
    %3362 = vmatmul.bf16.gmra.mxu0 %v3262
    %v3363 = vpop.f32.mrf.mxu0
    %v3364 = vadd.f32 %v3351, %v3363
    %v3365 = vpop.f32.mrf.mxu0
    %3366 = vdwg.mxu0
    %3367 = vmatpush.bf16.msra.mxu0 %v961
    %3368 = vmatpush.bf16.msra.mxu0 %v953
    %3369 = vmatpush.bf16.msra.mxu0 %v945
    %3370 = vmatpush.bf16.msra.mxu0 %v937
    %3371 = vmatpush.bf16.msra.mxu0 %v929
    %3372 = vmatpush.bf16.msra.mxu0 %v921
    %3373 = vmatpush.bf16.msra.mxu0 %v913
    %3374 = vmatpush.bf16.msra.mxu0 %v905
    %3375 = vmatmul.bf16.gmra.mxu0 %v3261
    %v3376 = vpop.f32.mrf.mxu0
    %v3377 = vadd.f32 0.0, %v3376
    %v3378 = vpop.f32.mrf.mxu0
    %3379 = vdwg.mxu0
    %3380 = vmatpush.bf16.msra.mxu0 %v1025
    %3381 = vmatpush.bf16.msra.mxu0 %v1017
    %3382 = vmatpush.bf16.msra.mxu0 %v1009
    %3383 = vmatpush.bf16.msra.mxu0 %v1001
    %3384 = vmatpush.bf16.msra.mxu0 %v993
    %3385 = vmatpush.bf16.msra.mxu0 %v985
    %3386 = vmatpush.bf16.msra.mxu0 %v977
    %3387 = vmatpush.bf16.msra.mxu0 %v969
    %3388 = vmatmul.bf16.gmra.mxu0 %v3262
    %v3389 = vpop.f32.mrf.mxu0
    %v3390 = vadd.f32 %v3377, %v3389
    %v3391 = vpop.f32.mrf.mxu0
    %3392 = vdwg.mxu0
    %3393 = vmatpush.bf16.msra.mxu0 %v962
    %3394 = vmatpush.bf16.msra.mxu0 %v954
    %3395 = vmatpush.bf16.msra.mxu0 %v946
    %3396 = vmatpush.bf16.msra.mxu0 %v938
    %3397 = vmatpush.bf16.msra.mxu0 %v930
    %3398 = vmatpush.bf16.msra.mxu0 %v922
    %3399 = vmatpush.bf16.msra.mxu0 %v914
    %3400 = vmatpush.bf16.msra.mxu0 %v906
    %3401 = vmatmul.bf16.gmra.mxu0 %v3261
    %v3402 = vpop.f32.mrf.mxu0
    %v3403 = vadd.f32 0.0, %v3402
    %v3404 = vpop.f32.mrf.mxu0
    %3405 = vdwg.mxu0
    %3406 = vmatpush.bf16.msra.mxu0 %v1026
    %3407 = vmatpush.bf16.msra.mxu0 %v1018
    %3408 = vmatpush.bf16.msra.mxu0 %v1010
    %3409 = vmatpush.bf16.msra.mxu0 %v1002
    %3410 = vmatpush.bf16.msra.mxu0 %v994
    %3411 = vmatpush.bf16.msra.mxu0 %v986
    %3412 = vmatpush.bf16.msra.mxu0 %v978
    %3413 = vmatpush.bf16.msra.mxu0 %v970
    %3414 = vmatmul.bf16.gmra.mxu0 %v3262
    %v3415 = vpop.f32.mrf.mxu0
    %v3416 = vadd.f32 %v3403, %v3415
    %v3417 = vpop.f32.mrf.mxu0
    %3418 = vdwg.mxu0
    %3419 = vmatpush.bf16.msra.mxu0 %v963
    %3420 = vmatpush.bf16.msra.mxu0 %v955
    %3421 = vmatpush.bf16.msra.mxu0 %v947
    %3422 = vmatpush.bf16.msra.mxu0 %v939
    %3423 = vmatpush.bf16.msra.mxu0 %v931
    %3424 = vmatpush.bf16.msra.mxu0 %v923
    %3425 = vmatpush.bf16.msra.mxu0 %v915
    %3426 = vmatpush.bf16.msra.mxu0 %v907
    %3427 = vmatmul.bf16.gmra.mxu0 %v3261
    %v3428 = vpop.f32.mrf.mxu0
    %v3429 = vadd.f32 0.0, %v3428
    %v3430 = vpop.f32.mrf.mxu0
    %3431 = vdwg.mxu0
    %3432 = vmatpush.bf16.msra.mxu0 %v1027
    %3433 = vmatpush.bf16.msra.mxu0 %v1019
    %3434 = vmatpush.bf16.msra.mxu0 %v1011
    %3435 = vmatpush.bf16.msra.mxu0 %v1003
    %3436 = vmatpush.bf16.msra.mxu0 %v995
    %3437 = vmatpush.bf16.msra.mxu0 %v987
    %3438 = vmatpush.bf16.msra.mxu0 %v979
    %3439 = vmatpush.bf16.msra.mxu0 %v971
    %3440 = vmatmul.bf16.gmra.mxu0 %v3262
    %v3441 = vpop.f32.mrf.mxu0
    %v3442 = vadd.f32 %v3429, %v3441
    %v3443 = vpop.f32.mrf.mxu0
    %3444 = vdwg.mxu0
    %3445 = vmatpush.bf16.msra.mxu0 %v964
    %3446 = vmatpush.bf16.msra.mxu0 %v956
    %3447 = vmatpush.bf16.msra.mxu0 %v948
    %3448 = vmatpush.bf16.msra.mxu0 %v940
    %3449 = vmatpush.bf16.msra.mxu0 %v932
    %3450 = vmatpush.bf16.msra.mxu0 %v924
    %3451 = vmatpush.bf16.msra.mxu0 %v916
    %3452 = vmatpush.bf16.msra.mxu0 %v908
    %3453 = vmatmul.bf16.gmra.mxu0 %v3261
    %v3454 = vpop.f32.mrf.mxu0
    %v3455 = vadd.f32 0.0, %v3454
    %v3456 = vpop.f32.mrf.mxu0
    %3457 = vdwg.mxu0
    %3458 = vmatpush.bf16.msra.mxu0 %v1028
    %3459 = vmatpush.bf16.msra.mxu0 %v1020
    %3460 = vmatpush.bf16.msra.mxu0 %v1012
    %3461 = vmatpush.bf16.msra.mxu0 %v1004
    %3462 = vmatpush.bf16.msra.mxu0 %v996
    %3463 = vmatpush.bf16.msra.mxu0 %v988
    %3464 = vmatpush.bf16.msra.mxu0 %v980
    %3465 = vmatpush.bf16.msra.mxu0 %v972
    %3466 = vmatmul.bf16.gmra.mxu0 %v3262
    %v3467 = vpop.f32.mrf.mxu0
    %v3468 = vadd.f32 %v3455, %v3467
    %v3469 = vpop.f32.mrf.mxu0
    %3470 = vdwg.mxu0
    %v3471 = vadd.f32 %v3390, %v306
    %v3472 = vadd.f32 %v3416, %v307
    %v3473 = vadd.f32 %v3442, %v308
    %v3474 = vadd.f32 %v3468, %v309
    %v3475 = vxor.u32 %v3471, 2147483648
    %v3476 = vmul.f32 %v3475, 1.442695
    %v3477 = vpow.pop %v3476
    %v3478 = vadd.f32 %v3477, 1.0
    %v3479 = vrcp.pop %v3478
    %v3480 = vmul.f32 %v3478, %v3479
    %v3481 = vsub.f32 1.0, %v3480
    %v3482 = vmul.f32 %v3479, %v3481
    %v3483 = vadd.f32 %v3479, %v3482
    %vm3484 = vweird.f32 %v3478
    %vm3485 = vweird.f32 %v3479
    %vm3486 = vmor %vm3484, %vm3485
    %v3487 = vsel %vm3486, %v3479, %v3483
    %v3488 = vand.u32 2147483647, %v3478
    %vm3489 = vcmp.eq.f32.partialorder %v3488, 8.507059e+37
    %v3490 = vand.u32 %v3478, 2147483648
    %v3491 = vor.u32 1.1754944e-38, %v3490
    %v3492 = vsel %vm3489, %v3491, %v3487
    %v3493 = vmul.f32 1.0, %v3492
    %v3494 = vxor.u32 %v3472, 2147483648
    %v3495 = vmul.f32 %v3494, 1.442695
    %v3496 = vpow.pop %v3495
    %v3497 = vadd.f32 %v3496, 1.0
    %v3498 = vrcp.pop %v3497
    %v3499 = vmul.f32 %v3497, %v3498
    %v3500 = vsub.f32 1.0, %v3499
    %v3501 = vmul.f32 %v3498, %v3500
    %v3502 = vadd.f32 %v3498, %v3501
    %vm3503 = vweird.f32 %v3497
    %vm3504 = vweird.f32 %v3498
    %vm3505 = vmor %vm3503, %vm3504
    %v3506 = vsel %vm3505, %v3498, %v3502
    %v3507 = vand.u32 2147483647, %v3497
    %vm3508 = vcmp.eq.f32.partialorder %v3507, 8.507059e+37
    %v3509 = vand.u32 %v3497, 2147483648
    %v3510 = vor.u32 1.1754944e-38, %v3509
    %v3511 = vsel %vm3508, %v3510, %v3506
    %v3512 = vmul.f32 1.0, %v3511
    %v3513 = vtanh.pop %v3473
    %v3514 = vxor.u32 %v3474, 2147483648
    %v3515 = vmul.f32 %v3514, 1.442695
    %v3516 = vpow.pop %v3515
    %v3517 = vadd.f32 %v3516, 1.0
    %v3518 = vrcp.pop %v3517
    %v3519 = vmul.f32 %v3517, %v3518
    %v3520 = vsub.f32 1.0, %v3519
    %v3521 = vmul.f32 %v3518, %v3520
    %v3522 = vadd.f32 %v3518, %v3521
    %vm3523 = vweird.f32 %v3517
    %vm3524 = vweird.f32 %v3518
    %vm3525 = vmor %vm3523, %vm3524
    %v3526 = vsel %vm3525, %v3518, %v3522
    %v3527 = vand.u32 2147483647, %v3517
    %vm3528 = vcmp.eq.f32.partialorder %v3527, 8.507059e+37
    %v3529 = vand.u32 %v3517, 2147483648
    %v3530 = vor.u32 1.1754944e-38, %v3529
    %v3531 = vsel %vm3528, %v3530, %v3526
    %v3532 = vmul.f32 1.0, %v3531
    %v3533 = vmul.f32 %v3512, %v3184
    %v3534 = vmul.f32 %v3493, %v3513
    %v3535 = vadd.f32 %v3533, %v3534
    %v3536 = vtanh.pop %v3535
    %v3537 = vmul.f32 %v3532, %v3536
    %s3538 = smul.u32 7, 4
    %s3539 = smul.addr %s3538, 8
    %s3540 = scalar_lea.vmem [#allocation2], %s3539
    %v3541 = vld [vmem:[%s3540] sm:$0xff]
    %v3542 = vld [vmem:[%s3540 + $0x8] sm:$0xff]
    %v3543 = vld [vmem:[%s3540 + $0x10] sm:$0xff]
    %v3544 = vld [vmem:[%s3540 + $0x18] sm:$0xff]
    %v3545 = vadd.f32 %v3541, %v3286
    %v3546 = vadd.f32 %v3542, %v3312
    %v3547 = vadd.f32 %v3543, %v3338
    %v3548 = vadd.f32 %v3544, %v3364
    %v3549 = vxor.u32 %v3545, 2147483648
    %v3550 = vmul.f32 %v3549, 1.442695
    %v3551 = vpow.pop %v3550
    %v3552 = vadd.f32 %v3551, 1.0
    %v3553 = vrcp.pop %v3552
    %v3554 = vmul.f32 %v3552, %v3553
    %v3555 = vsub.f32 1.0, %v3554
    %v3556 = vmul.f32 %v3553, %v3555
    %v3557 = vadd.f32 %v3553, %v3556
    %vm3558 = vweird.f32 %v3552
    %vm3559 = vweird.f32 %v3553
    %vm3560 = vmor %vm3558, %vm3559
    %v3561 = vsel %vm3560, %v3553, %v3557
    %v3562 = vand.u32 2147483647, %v3552
    %vm3563 = vcmp.eq.f32.partialorder %v3562, 8.507059e+37
    %v3564 = vand.u32 %v3552, 2147483648
    %v3565 = vor.u32 1.1754944e-38, %v3564
    %v3566 = vsel %vm3563, %v3565, %v3561
    %v3567 = vmul.f32 1.0, %v3566
    %v3568 = vxor.u32 %v3546, 2147483648
    %v3569 = vmul.f32 %v3568, 1.442695
    %v3570 = vpow.pop %v3569
    %v3571 = vadd.f32 %v3570, 1.0
    %v3572 = vrcp.pop %v3571
    %v3573 = vmul.f32 %v3571, %v3572
    %v3574 = vsub.f32 1.0, %v3573
    %v3575 = vmul.f32 %v3572, %v3574
    %v3576 = vadd.f32 %v3572, %v3575
    %vm3577 = vweird.f32 %v3571
    %vm3578 = vweird.f32 %v3572
    %vm3579 = vmor %vm3577, %vm3578
    %v3580 = vsel %vm3579, %v3572, %v3576
    %v3581 = vand.u32 2147483647, %v3571
    %vm3582 = vcmp.eq.f32.partialorder %v3581, 8.507059e+37
    %v3583 = vand.u32 %v3571, 2147483648
    %v3584 = vor.u32 1.1754944e-38, %v3583
    %v3585 = vsel %vm3582, %v3584, %v3580
    %v3586 = vmul.f32 1.0, %v3585
    %v3587 = vtanh.pop %v3547
    %v3588 = vxor.u32 %v3548, 2147483648
    %v3589 = vmul.f32 %v3588, 1.442695
    %v3590 = vpow.pop %v3589
    %v3591 = vadd.f32 %v3590, 1.0
    %v3592 = vrcp.pop %v3591
    %v3593 = vmul.f32 %v3591, %v3592
    %v3594 = vsub.f32 1.0, %v3593
    %v3595 = vmul.f32 %v3592, %v3594
    %v3596 = vadd.f32 %v3592, %v3595
    %vm3597 = vweird.f32 %v3591
    %vm3598 = vweird.f32 %v3592
    %vm3599 = vmor %vm3597, %vm3598
    %v3600 = vsel %vm3599, %v3592, %v3596
    %v3601 = vand.u32 2147483647, %v3591
    %vm3602 = vcmp.eq.f32.partialorder %v3601, 8.507059e+37
    %v3603 = vand.u32 %v3591, 2147483648
    %v3604 = vor.u32 1.1754944e-38, %v3603
    %v3605 = vsel %vm3602, %v3604, %v3600
    %v3606 = vmul.f32 1.0, %v3605
    %v3607 = vmul.f32 %v3586, %v3258
    %v3608 = vmul.f32 %v3567, %v3587
    %v3609 = vadd.f32 %v3607, %v3608
    %v3610 = vtanh.pop %v3609
    %v3611 = vmul.f32 %v3606, %v3610
    %v3612 = vpack.c.bf16 %v3611, %v3611
    %v3613 = vpack.c.bf16 %v3537, %v3537
    %3614 = vmatpush.bf16.msra.mxu0 %v961
    %3615 = vmatpush.bf16.msra.mxu0 %v953
    %3616 = vmatpush.bf16.msra.mxu0 %v945
    %3617 = vmatpush.bf16.msra.mxu0 %v937
    %3618 = vmatpush.bf16.msra.mxu0 %v929
    %3619 = vmatpush.bf16.msra.mxu0 %v921
    %3620 = vmatpush.bf16.msra.mxu0 %v913
    %3621 = vmatpush.bf16.msra.mxu0 %v905
    %3622 = vmatmul.bf16.gmra.mxu0 %v3612
    %v3623 = vpop.f32.mrf.mxu0
    %v3624 = vadd.f32 0.0, %v3623
    %v3625 = vpop.f32.mrf.mxu0
    %3626 = vdwg.mxu0
    %3627 = vmatpush.bf16.msra.mxu0 %v1025
    %3628 = vmatpush.bf16.msra.mxu0 %v1017
    %3629 = vmatpush.bf16.msra.mxu0 %v1009
    %3630 = vmatpush.bf16.msra.mxu0 %v1001
    %3631 = vmatpush.bf16.msra.mxu0 %v993
    %3632 = vmatpush.bf16.msra.mxu0 %v985
    %3633 = vmatpush.bf16.msra.mxu0 %v977
    %3634 = vmatpush.bf16.msra.mxu0 %v969
    %3635 = vmatmul.bf16.gmra.mxu0 %v3613
    %v3636 = vpop.f32.mrf.mxu0
    %v3637 = vadd.f32 %v3624, %v3636
    %v3638 = vpop.f32.mrf.mxu0
    %3639 = vdwg.mxu0
    %3640 = vmatpush.bf16.msra.mxu0 %v962
    %3641 = vmatpush.bf16.msra.mxu0 %v954
    %3642 = vmatpush.bf16.msra.mxu0 %v946
    %3643 = vmatpush.bf16.msra.mxu0 %v938
    %3644 = vmatpush.bf16.msra.mxu0 %v930
    %3645 = vmatpush.bf16.msra.mxu0 %v922
    %3646 = vmatpush.bf16.msra.mxu0 %v914
    %3647 = vmatpush.bf16.msra.mxu0 %v906
    %3648 = vmatmul.bf16.gmra.mxu0 %v3612
    %v3649 = vpop.f32.mrf.mxu0
    %v3650 = vadd.f32 0.0, %v3649
    %v3651 = vpop.f32.mrf.mxu0
    %3652 = vdwg.mxu0
    %3653 = vmatpush.bf16.msra.mxu0 %v1026
    %3654 = vmatpush.bf16.msra.mxu0 %v1018
    %3655 = vmatpush.bf16.msra.mxu0 %v1010
    %3656 = vmatpush.bf16.msra.mxu0 %v1002
    %3657 = vmatpush.bf16.msra.mxu0 %v994
    %3658 = vmatpush.bf16.msra.mxu0 %v986
    %3659 = vmatpush.bf16.msra.mxu0 %v978
    %3660 = vmatpush.bf16.msra.mxu0 %v970
    %3661 = vmatmul.bf16.gmra.mxu0 %v3613
    %v3662 = vpop.f32.mrf.mxu0
    %v3663 = vadd.f32 %v3650, %v3662
    %v3664 = vpop.f32.mrf.mxu0
    %3665 = vdwg.mxu0
    %3666 = vmatpush.bf16.msra.mxu0 %v963
    %3667 = vmatpush.bf16.msra.mxu0 %v955
    %3668 = vmatpush.bf16.msra.mxu0 %v947
    %3669 = vmatpush.bf16.msra.mxu0 %v939
    %3670 = vmatpush.bf16.msra.mxu0 %v931
    %3671 = vmatpush.bf16.msra.mxu0 %v923
    %3672 = vmatpush.bf16.msra.mxu0 %v915
    %3673 = vmatpush.bf16.msra.mxu0 %v907
    %3674 = vmatmul.bf16.gmra.mxu0 %v3612
    %v3675 = vpop.f32.mrf.mxu0
    %v3676 = vadd.f32 0.0, %v3675
    %v3677 = vpop.f32.mrf.mxu0
    %3678 = vdwg.mxu0
    %3679 = vmatpush.bf16.msra.mxu0 %v1027
    %3680 = vmatpush.bf16.msra.mxu0 %v1019
    %3681 = vmatpush.bf16.msra.mxu0 %v1011
    %3682 = vmatpush.bf16.msra.mxu0 %v1003
    %3683 = vmatpush.bf16.msra.mxu0 %v995
    %3684 = vmatpush.bf16.msra.mxu0 %v987
    %3685 = vmatpush.bf16.msra.mxu0 %v979
    %3686 = vmatpush.bf16.msra.mxu0 %v971
    %3687 = vmatmul.bf16.gmra.mxu0 %v3613
    %v3688 = vpop.f32.mrf.mxu0
    %v3689 = vadd.f32 %v3676, %v3688
    %v3690 = vpop.f32.mrf.mxu0
    %3691 = vdwg.mxu0
    %3692 = vmatpush.bf16.msra.mxu0 %v964
    %3693 = vmatpush.bf16.msra.mxu0 %v956
    %3694 = vmatpush.bf16.msra.mxu0 %v948
    %3695 = vmatpush.bf16.msra.mxu0 %v940
    %3696 = vmatpush.bf16.msra.mxu0 %v932
    %3697 = vmatpush.bf16.msra.mxu0 %v924
    %3698 = vmatpush.bf16.msra.mxu0 %v916
    %3699 = vmatpush.bf16.msra.mxu0 %v908
    %3700 = vmatmul.bf16.gmra.mxu0 %v3612
    %v3701 = vpop.f32.mrf.mxu0
    %v3702 = vadd.f32 0.0, %v3701
    %v3703 = vpop.f32.mrf.mxu0
    %3704 = vdwg.mxu0
    %3705 = vmatpush.bf16.msra.mxu0 %v1028
    %3706 = vmatpush.bf16.msra.mxu0 %v1020
    %3707 = vmatpush.bf16.msra.mxu0 %v1012
    %3708 = vmatpush.bf16.msra.mxu0 %v1004
    %3709 = vmatpush.bf16.msra.mxu0 %v996
    %3710 = vmatpush.bf16.msra.mxu0 %v988
    %3711 = vmatpush.bf16.msra.mxu0 %v980
    %3712 = vmatpush.bf16.msra.mxu0 %v972
    %3713 = vmatmul.bf16.gmra.mxu0 %v3613
    %v3714 = vpop.f32.mrf.mxu0
    %v3715 = vadd.f32 %v3702, %v3714
    %v3716 = vpop.f32.mrf.mxu0
    %3717 = vdwg.mxu0
    %v3718 = vadd.f32 %v3637, %v306
    %v3719 = vadd.f32 %v3663, %v307
    %v3720 = vadd.f32 %v3689, %v308
    %v3721 = vadd.f32 %v3715, %v309
    %v3722 = vxor.u32 %v3718, 2147483648
    %v3723 = vmul.f32 %v3722, 1.442695
    %v3724 = vpow.pop %v3723
    %v3725 = vadd.f32 %v3724, 1.0
    %v3726 = vrcp.pop %v3725
    %v3727 = vmul.f32 %v3725, %v3726
    %v3728 = vsub.f32 1.0, %v3727
    %v3729 = vmul.f32 %v3726, %v3728
    %v3730 = vadd.f32 %v3726, %v3729
    %vm3731 = vweird.f32 %v3725
    %vm3732 = vweird.f32 %v3726
    %vm3733 = vmor %vm3731, %vm3732
    %v3734 = vsel %vm3733, %v3726, %v3730
    %v3735 = vand.u32 2147483647, %v3725
    %vm3736 = vcmp.eq.f32.partialorder %v3735, 8.507059e+37
    %v3737 = vand.u32 %v3725, 2147483648
    %v3738 = vor.u32 1.1754944e-38, %v3737
    %v3739 = vsel %vm3736, %v3738, %v3734
    %v3740 = vmul.f32 1.0, %v3739
    %v3741 = vxor.u32 %v3719, 2147483648
    %v3742 = vmul.f32 %v3741, 1.442695
    %v3743 = vpow.pop %v3742
    %v3744 = vadd.f32 %v3743, 1.0
    %v3745 = vrcp.pop %v3744
    %v3746 = vmul.f32 %v3744, %v3745
    %v3747 = vsub.f32 1.0, %v3746
    %v3748 = vmul.f32 %v3745, %v3747
    %v3749 = vadd.f32 %v3745, %v3748
    %vm3750 = vweird.f32 %v3744
    %vm3751 = vweird.f32 %v3745
    %vm3752 = vmor %vm3750, %vm3751
    %v3753 = vsel %vm3752, %v3745, %v3749
    %v3754 = vand.u32 2147483647, %v3744
    %vm3755 = vcmp.eq.f32.partialorder %v3754, 8.507059e+37
    %v3756 = vand.u32 %v3744, 2147483648
    %v3757 = vor.u32 1.1754944e-38, %v3756
    %v3758 = vsel %vm3755, %v3757, %v3753
    %v3759 = vmul.f32 1.0, %v3758
    %v3760 = vtanh.pop %v3720
    %v3761 = vxor.u32 %v3721, 2147483648
    %v3762 = vmul.f32 %v3761, 1.442695
    %v3763 = vpow.pop %v3762
    %v3764 = vadd.f32 %v3763, 1.0
    %v3765 = vrcp.pop %v3764
    %v3766 = vmul.f32 %v3764, %v3765
    %v3767 = vsub.f32 1.0, %v3766
    %v3768 = vmul.f32 %v3765, %v3767
    %v3769 = vadd.f32 %v3765, %v3768
    %vm3770 = vweird.f32 %v3764
    %vm3771 = vweird.f32 %v3765
    %vm3772 = vmor %vm3770, %vm3771
    %v3773 = vsel %vm3772, %v3765, %v3769
    %v3774 = vand.u32 2147483647, %v3764
    %vm3775 = vcmp.eq.f32.partialorder %v3774, 8.507059e+37
    %v3776 = vand.u32 %v3764, 2147483648
    %v3777 = vor.u32 1.1754944e-38, %v3776
    %v3778 = vsel %vm3775, %v3777, %v3773
    %v3779 = vmul.f32 1.0, %v3778
    %v3780 = vmul.f32 %v3759, %v3535
    %v3781 = vmul.f32 %v3740, %v3760
    %v3782 = vadd.f32 %v3780, %v3781
    %v3783 = vtanh.pop %v3782
    %v3784 = vmul.f32 %v3779, %v3783
    %v3785 = vld [vmem:[%s5] sm:$0x1]
    %v3787 = vperm.slane %v3785, 0
    %v3789 = vmul.f32 %v3784, %v3787
    %3790 = vadd.xlane.f32.xlu0 %v3789
    %v3791 = vpop.xlane.xlu0 %3790
    %v3792 = vld [vmem:[#allocation3] sm:$0x1]
    %v3794 = vperm.slane %v3792, 0
    %v3796 = vadd.f32 %v3791, %v3794
    %vm3797 = vcmask 7168
    %3798 = vst.msk [vmem:[%s7] sm:$0xff] %vm3797, %v3796
    // Predicated region
    $region34: #{lstm_module_forward.1} parent=1 // pred_check
      _
    $region35: #{lstm_module_forward.1} parent=1 // pred_check_branch
      %3800 = sbr.rel (0) target = $region37
    $region36: #{lstm_module_forward.1} parent=1 // pred_region
      _
    $region37: #{lstm_module_forward.1} parent=1 // pred_fallthru
      _
    // Predicated region
    $region38: #{lstm_module_forward.1} parent=1 // pred_check
      _
    $region39: #{lstm_module_forward.1} parent=1 // pred_check_branch
      %3802 = sbr.rel (0) target = $region41
    $region40: #{lstm_module_forward.1} parent=1 // pred_region
      _
    $region41: #{lstm_module_forward.1} parent=1 // pred_fallthru
      _
    %3803 = vsyncpa [#allocation5], 1

</llo_original>
